<compile_context>
chip_gen: v5e
topology: v5e:2x2
jax: 0.10.0
libtpu: 0.0.40
codegen_flags: <defaults>
</compile_context>

<pallas_src>
import numpy as np
import jax
import jax.numpy as jnp
from jax import lax
from jax.experimental import pallas as pl
from jax.experimental.pallas import tpu as pltpu

GN_EPS = 1e-5
DILATIONS = (2, 3)        # AMBConv passes dilation_range=(2, 3)
KSIZE = 3
PAD = max(DILATIONS) * (KSIZE - 1) // 2     # shared zero-pad border (= 3)


# ----------------------------------------------------------------------------
# GroupNorm on a lane-interleaved 2-D tile (rows = D*H, lanes = W*C)
# ----------------------------------------------------------------------------
def _gn_lanes(y, gamma_t, beta_t, *, num_groups, group0_mask, relu):
    """GroupNorm over a (rows, lanes) tile holding one full sample.

    `group0_mask` is a precomputed (1, lanes) bool selecting group-0 lanes
    (only used for 2 groups).  Single-pass sum / sum-of-squares stats in f32.
    """
    rows, lanes = y.shape
    total = float(rows * lanes)
    ysq = y * y                     # computed once, reused for all group stats
    s_all = jnp.sum(y)
    ss_all = jnp.sum(ysq)
    if num_groups == 1:
        mu = s_all / total
        var = jnp.maximum(ss_all / total - mu * mu, 0.0)
        mean_l = mu
        inv_l = lax.rsqrt(var + GN_EPS)
    elif num_groups == 2:
        cnt = total * 0.5
        s0 = jnp.sum(jnp.where(group0_mask, y, 0.0))
        ss0 = jnp.sum(jnp.where(group0_mask, ysq, 0.0))
        mu0 = s0 / cnt
        mu1 = (s_all - s0) / cnt
        v0 = jnp.maximum(ss0 / cnt - mu0 * mu0, 0.0)
        v1 = jnp.maximum((ss_all - ss0) / cnt - mu1 * mu1, 0.0)
        mean_l = jnp.where(group0_mask, mu0, mu1)
        inv_l = jnp.where(group0_mask, lax.rsqrt(v0 + GN_EPS),
                          lax.rsqrt(v1 + GN_EPS))
    else:
        raise NotImplementedError("AMBConv only needs 1 or 2 groups")
    out = (y - mean_l) * inv_l * gamma_t + beta_t
    if relu:
        out = jnp.maximum(out, 0.0)
    return out


# ----------------------------------------------------------------------------
# Fully fused AMBConv kernel: expand conv + GN(2) + ReLU -> VMEM zero-pad ->
# adaptive dilated depthwise (18 banded MXU contractions) + GN(1) + ReLU ->
# SE -> pointwise conv + GN(2)
# ----------------------------------------------------------------------------
def _fused_amb_call(x2, w1_exp, g1t, b1t, bands, gdw_t, bdw_t, sel, selT,
                    w_se1, b_se1, w_se2, b_se2, wpw_exp, g2t, b2t,
                    *, D, H, W, E, Cout):
    N, DH, WCin = x2.shape
    WE, WC = W * E, W * Cout
    Dp, Hp = D + 2 * PAD, H + 2 * PAD
    Er = w_se1.shape[1]
    NB = bands.shape[0]                       # len(DILATIONS) * 9 (dz,dy) groups
    inv_spatial = 1.0 / float(D * H * W)

    def kernel(x_ref, w1_ref, g1_ref, b1_ref, band_ref, gdw_ref, bdw_ref,
               sel_ref, selT_ref, wse1_ref, bse1_ref, wse2_ref, bse2_ref,
               wpw_ref, g2_ref, b2_ref, o_ref, hp_ref):
        # Group-0 lane masks for the two 2-group GroupNorms (hoisted: built
        # once per grid step, not per GN call).
        lane_e = lax.broadcasted_iota(jnp.int32, (1, WE), 1)
        m0_exp = (lane_e % E) < (E // 2)
        lane_c = lax.broadcasted_iota(jnp.int32, (1, WC), 1)
        m0_pw = (lane_c % Cout) < (Cout // 2)

        # ---- stage 1: expand 1x1x1 conv + GN(2) + ReLU (never leaves VMEM).
        h1 = jnp.dot(x_ref[0], w1_ref[...], preferred_element_type=jnp.float32)
        h1 = _gn_lanes(h1, g1_ref[...], b1_ref[...],
                       num_groups=2, group0_mask=m0_exp, relu=True)

        # ---- zero-padded slab built directly in VMEM (no HBM pad round trip).
        #      Only D and H get a zero border; the W axis stays at exactly
        #      WE lanes -- W-shift + zero padding live in the banded matrices.
        hp_ref[...] = jnp.zeros_like(hp_ref)
        hp_ref[pl.ds(PAD, D), pl.ds(PAD, H), :] = h1.reshape(D, H, WE)

        # ---- adaptive dilated depthwise conv: for each (dilation, dz, dy)
        #      load ONE aligned (D,H,WE) slice (18 loads, not 54) and contract
        #      its lanes with a banded (WE,WE) matrix that folds the 3 W-taps,
        #      per-channel depthwise weights, softmax dilation mixture and the
        #      W-boundary zero padding.  Runs on the otherwise-idle MXU.
        acc = jnp.zeros((DH, WE), jnp.float32)
        g = 0
        for dil in DILATIONS:
            for a in range(KSIZE):
                for b in range(KSIZE):
                    z0 = PAD + (a - 1) * dil
                    y0 = PAD + (b - 1) * dil
                    sl = hp_ref[pl.ds(z0, D), pl.ds(y0, H), :].reshape(DH, WE)
                    acc = acc + jnp.dot(sl, band_ref[g],
                                        preferred_element_type=jnp.float32)
                    g += 1
        h = _gn_lanes(acc, gdw_ref[...], bdw_ref[...],
                      num_groups=1, group0_mask=None, relu=True)

        # ---- Squeeze & Excitation
        rowsum = jnp.sum(h, axis=0, keepdims=True)                 # (1, W*E)
        ch_mean = jnp.dot(rowsum, sel_ref[...],
                          preferred_element_type=jnp.float32) * inv_spatial
        z1 = jnp.maximum(
            jnp.dot(ch_mean, wse1_ref[...],
                    preferred_element_type=jnp.float32) + bse1_ref[...], 0.0)
        pre = jnp.dot(z1, wse2_ref[...],
                      preferred_element_type=jnp.float32) + bse2_ref[...]
        gate = pl.reciprocal(1.0 + jnp.exp(-pre), approx=True)     # sigmoid (EUP)
        gate_l = jnp.dot(gate, selT_ref[...],
                         preferred_element_type=jnp.float32)       # (1, W*E)
        h = h * gate_l

        # ---- pointwise 1x1x1 conv + GN(2 groups), no activation
        y = jnp.dot(h, wpw_ref[...], preferred_element_type=jnp.float32)
        o_ref[0] = _gn_lanes(y, g2_ref[...], b2_ref[...],
                             num_groups=2, group0_mask=m0_pw, relu=False)

    const2 = lambda n: (0, 0)
    in_specs = [
        pl.BlockSpec((1, DH, WCin), lambda n: (n, 0, 0)),   # x2 (per sample)
        pl.BlockSpec((WCin, WE), const2),                   # w1_exp
        pl.BlockSpec((1, WE), const2),                      # g1t
        pl.BlockSpec((1, WE), const2),                      # b1t
        pl.BlockSpec((NB, WE, WE), lambda n: (0, 0, 0)),    # banded dw matrices
        pl.BlockSpec((1, WE), const2),                      # g_dw
        pl.BlockSpec((1, WE), const2),                      # b_dw
        pl.BlockSpec((WE, E), const2),                      # sel (lanes -> ch)
        pl.BlockSpec((E, WE), const2),                      # selT (ch -> lanes)
        pl.BlockSpec((E, Er), const2),                      # w_se1
        pl.BlockSpec((1, Er), const2),                      # b_se1
        pl.BlockSpec((Er, E), const2),                      # w_se2
        pl.BlockSpec((1, E), const2),                       # b_se2
        pl.BlockSpec((WE, WC), const2),                     # wpw_exp
        pl.BlockSpec((1, WC), const2),                      # g_pw
        pl.BlockSpec((1, WC), const2),                      # b_pw
    ]
    return pl.pallas_call(
        kernel,
        out_shape=jax.ShapeDtypeStruct((N, DH, WC), jnp.float32),
        grid_spec=pltpu.PrefetchScalarGridSpec(
            num_scalar_prefetch=0,
            grid=(N,),
            in_specs=in_specs,
            out_specs=pl.BlockSpec((1, DH, WC), lambda n: (n, 0, 0)),
            scratch_shapes=[pltpu.VMEM((Dp, Hp, WE), jnp.float32)],
        ),
        compiler_params=pltpu.CompilerParams(
            dimension_semantics=("parallel",),
            vmem_limit_bytes=32 * 1024 * 1024),
    )(x2, w1_exp, g1t, b1t, bands, gdw_t, bdw_t, sel, selT,
      w_se1, b_se1, w_se2, b_se2, wpw_exp, g2t, b2t)


# ----------------------------------------------------------------------------
# Host-side forward: layout prep (reshape / kron / tile / banded matrices) +
# one fused kernel.  No NCDHW<->NDHWC transposes, no HBM-side padding.
# ----------------------------------------------------------------------------
def _shift_matrix(W, dw):
    """(W, W) matrix P with P[w_src, w_dst] = 1 iff w_src == w_dst + dw and
    0 <= w_src < W (W-axis tap shift + zero 'same' padding)."""
    p = np.zeros((W, W), np.float32)
    for wd in range(W):
        ws = wd + dw
        if 0 <= ws < W:
            p[ws, wd] = 1.0
    return jnp.asarray(p)


def amb_conv_forward(x, params):
    """AMBConv forward.  x: (N, D, H, W, Cin) channels-last (as the PyTorch
    module expects before its internal permute).  Returns (N, D, H, W, Cout).
    """
    N, D, H, W, Cin = x.shape
    E = params["w1"].shape[1]
    Cout = params["w_pw"].shape[1]
    WE, WC = W * E, W * Cout
    f32 = jnp.float32
    eye_w = jnp.eye(W, dtype=f32)

    # Lane-interleaved layout: rows = (d, h), lanes = (w, channel).
    x2 = x.reshape(N, D * H, W * Cin)

    # expand 1x1x1 conv as a block-diagonal (W*Cin, W*E) matmul weight.
    w1_exp = jnp.kron(eye_w, params["w1"])
    g1t = jnp.tile(params["g1"], W).reshape(1, WE)
    b1t = jnp.tile(params["b1"], W).reshape(1, WE)

    # Banded (WE, WE) lane matrices, one per (dilation, dz, dy).  The softmax
    # mixture fold is valid because AdaptiveDilatedConv3d mixes the dilation
    # branches linearly BEFORE its (single) GroupNorm/ReLU; PyTorch Conv3d
    # default zero padding matches the zero-filled slab / missing band entries.
    sw = jax.nn.softmax(params["dw_select"])
    bands = []
    for di, dil in enumerate(DILATIONS):
        for a in range(KSIZE):
            for b in range(KSIZE):
                m = jnp.zeros((WE, WE), f32)
                for c in range(KSIZE):
                    m = m + jnp.kron(
                        _shift_matrix(W, (c - 1) * dil),
                        jnp.diag(sw[di] * params["dw_w"][di, a, b, c]))
                bands.append(m)
    bands = jnp.stack(bands)                                   # (18, WE, WE)

    gdw_t = jnp.tile(params["g_dw"], W).reshape(1, WE)
    bdw_t = jnp.tile(params["b_dw"], W).reshape(1, WE)
    # SE lane <-> channel reduction / broadcast matrices.
    sel = jnp.kron(jnp.ones((W, 1), f32), jnp.eye(E, dtype=f32))   # (W*E, E)
    selT = sel.T                                                    # (E, W*E)
    # pointwise 1x1x1 conv as a block-diagonal (W*E, W*Cout) weight.
    wpw_exp = jnp.kron(eye_w, params["w_pw"])
    g2t = jnp.tile(params["g_pw"], W).reshape(1, WC)
    b2t = jnp.tile(params["b_pw"], W).reshape(1, WC)

    out = _fused_amb_call(x2, w1_exp, g1t, b1t, bands, gdw_t, bdw_t, sel, selT,
                          params["w_se1"], params["b_se1"],
                          params["w_se2"], params["b_se2"],
                          wpw_exp, g2t, b2t,
                          D=D, H=H, W=W, E=E, Cout=Cout)
    return out.reshape(N, D, H, W, Cout)


# ----------------------------------------------------------------------------
# Deterministic parameter init (shapes from AMBConv(in_ch, out_ch))
# ----------------------------------------------------------------------------
def init_params(key, in_ch, out_ch, expansion=4, ratio=4):
    E = expansion * in_ch
    Er = max(E // ratio, 1)
    ks = jax.random.split(key, 13)

    def w(k, shape, fan_in):
        return jax.random.normal(k, shape, jnp.float32) * (fan_in ** -0.5)

    return {
        # expand_proj: ConvNormAct(in_ch, E, k=1) -> GN(2) -> ReLU
        "w1": w(ks[0], (in_ch, E), in_ch),
        "g1": 1.0 + 0.1 * jax.random.normal(ks[1], (E,), jnp.float32),
        "b1": 0.1 * jax.random.normal(ks[2], (E,), jnp.float32),
        # AdaptiveDilatedConv3d: depthwise 3x3x3, dilations (2, 3), learnable mix
        "dw_w": w(ks[3], (len(DILATIONS), KSIZE, KSIZE, KSIZE, E), KSIZE ** 3),
        "dw_select": jnp.ones((len(DILATIONS),), jnp.float32),
        "g_dw": 1.0 + 0.1 * jax.random.normal(ks[4], (E,), jnp.float32),
        "b_dw": 0.1 * jax.random.normal(ks[5], (E,), jnp.float32),
        # SEBlock (1x1x1 convs with bias)
        "w_se1": w(ks[6], (E, Er), E),
        "b_se1": 0.1 * jax.random.normal(ks[7], (1, Er), jnp.float32),
        "w_se2": w(ks[8], (Er, E), Er),
        "b_se2": 0.1 * jax.random.normal(ks[9], (1, E), jnp.float32),
        # pointwise: ConvNormAct(E, out_ch, k=1, act=False) -> GN(2)
        "w_pw": w(ks[10], (E, out_ch), E),
        "g_pw": 1.0 + 0.1 * jax.random.normal(ks[11], (out_ch,), jnp.float32),
        "b_pw": 0.1 * jax.random.normal(ks[12], (out_ch,), jnp.float32),
    }


if __name__ == "__main__":
    key = jax.random.PRNGKey(0)
    k_x, k_p = jax.random.split(key)

    # expansion=4 -> expanded channels E = 16, so W*E = 128 (lane-dense
    # activations); out_ch=16 also makes the output store W*Cout = 128 dense.
    N, Cin, Cout = 2, 4, 16
    D = H = W = 8
    x = jax.random.normal(k_x, (N, D, H, W, Cin), jnp.float32)
    params = init_params(k_p, Cin, Cout, expansion=4, ratio=4)

    fwd = jax.jit(amb_conv_forward)
    out = fwd(x, params)
    jax.block_until_ready(out)

    assert out.shape == (N, D, H, W, Cout), (out.shape, (N, D, H, W, Cout))
    assert bool(jnp.all(jnp.isfinite(out)))
    print("KERNEL_OK")
</pallas_src>

<mosaic_0001>
module attributes {stable_mosaic.version = 11 : i64} {
  func.func @kernel(%arg0: i32, %arg1: memref<1x64x32xf32, #tpu.memory_space<vmem>>, %arg2: memref<32x128xf32, #tpu.memory_space<vmem>>, %arg3: memref<1x128xf32, #tpu.memory_space<vmem>>, %arg4: memref<1x128xf32, #tpu.memory_space<vmem>>, %arg5: memref<18x128x128xf32, #tpu.memory_space<vmem>>, %arg6: memref<1x128xf32, #tpu.memory_space<vmem>>, %arg7: memref<1x128xf32, #tpu.memory_space<vmem>>, %arg8: memref<128x16xf32, #tpu.memory_space<vmem>>, %arg9: memref<16x128xf32, #tpu.memory_space<vmem>>, %arg10: memref<16x4xf32, #tpu.memory_space<vmem>>, %arg11: memref<1x4xf32, #tpu.memory_space<vmem>>, %arg12: memref<4x16xf32, #tpu.memory_space<vmem>>, %arg13: memref<1x16xf32, #tpu.memory_space<vmem>>, %arg14: memref<128x128xf32, #tpu.memory_space<vmem>>, %arg15: memref<1x128xf32, #tpu.memory_space<vmem>>, %arg16: memref<1x128xf32, #tpu.memory_space<vmem>>, %arg17: memref<1x64x128xf32, #tpu.memory_space<vmem>>, %arg18: memref<14x14x128xf32, #tpu.memory_space<vmem>>) attributes {dimension_semantics = [#tpu.dimension_semantics<parallel>], iteration_bounds = array<i64: 2>, scalar_prefetch = 0 : i64, scratch_operands = 1 : i64, tpu.core_type = #tpu.core_type<tc>, window_params = [{transform_indices = @transform_0, window_bounds = array<i64: 1, 64, 32>}, {pipeline_mode = #tpu.pipeline_mode<synchronous>, transform_indices = @transform_1, window_bounds = array<i64: 32, 128>}, {pipeline_mode = #tpu.pipeline_mode<synchronous>, transform_indices = @transform_2, window_bounds = array<i64: 1, 128>}, {pipeline_mode = #tpu.pipeline_mode<synchronous>, transform_indices = @transform_3, window_bounds = array<i64: 1, 128>}, {pipeline_mode = #tpu.pipeline_mode<synchronous>, transform_indices = @transform_4, window_bounds = array<i64: 18, 128, 128>}, {pipeline_mode = #tpu.pipeline_mode<synchronous>, transform_indices = @transform_5, window_bounds = array<i64: 1, 128>}, {pipeline_mode = #tpu.pipeline_mode<synchronous>, transform_indices = @transform_6, window_bounds = array<i64: 1, 128>}, {pipeline_mode = #tpu.pipeline_mode<synchronous>, transform_indices = @transform_7, window_bounds = array<i64: 128, 16>}, {pipeline_mode = #tpu.pipeline_mode<synchronous>, transform_indices = @transform_8, window_bounds = array<i64: 16, 128>}, {pipeline_mode = #tpu.pipeline_mode<synchronous>, transform_indices = @transform_9, window_bounds = array<i64: 16, 4>}, {pipeline_mode = #tpu.pipeline_mode<synchronous>, transform_indices = @transform_10, window_bounds = array<i64: 1, 4>}, {pipeline_mode = #tpu.pipeline_mode<synchronous>, transform_indices = @transform_11, window_bounds = array<i64: 4, 16>}, {pipeline_mode = #tpu.pipeline_mode<synchronous>, transform_indices = @transform_12, window_bounds = array<i64: 1, 16>}, {pipeline_mode = #tpu.pipeline_mode<synchronous>, transform_indices = @transform_13, window_bounds = array<i64: 128, 128>}, {pipeline_mode = #tpu.pipeline_mode<synchronous>, transform_indices = @transform_14, window_bounds = array<i64: 1, 128>}, {pipeline_mode = #tpu.pipeline_mode<synchronous>, transform_indices = @transform_15, window_bounds = array<i64: 1, 128>}, {transform_indices = @transform_16, window_bounds = array<i64: 1, 64, 128>}]} {
    %0 = tpu.iota {dimensions = array<i32: 1>} : vector<1x128xi32>
    %c16_i32 = arith.constant 16 : i32
    %c0_i32 = arith.constant 0 : i32
    %1 = arith.cmpi eq, %c16_i32, %c0_i32 : i32
    %c1_i32 = arith.constant 1 : i32
    %2 = arith.select %1, %c1_i32, %c16_i32 : i32
    %3 = vector.broadcast %2 : i32 to vector<1x128xi32>
    %4 = arith.remsi %0, %3 : vector<1x128xi32>
    %c0_i32_0 = arith.constant 0 : i32
    %5 = vector.broadcast %c0_i32_0 : i32 to vector<1x128xi32>
    %6 = arith.cmpi ne, %4, %5 : vector<1x128xi32>
    %c0_i32_1 = arith.constant 0 : i32
    %7 = vector.broadcast %c0_i32_1 : i32 to vector<1x128xi32>
    %8 = arith.cmpi slt, %4, %7 : vector<1x128xi32>
    %c0_i32_2 = arith.constant 0 : i32
    %9 = arith.cmpi slt, %2, %c0_i32_2 : i32
    %10 = vector.broadcast %9 : i1 to vector<1x128xi1>
    %11 = vector.broadcast %10 : vector<1x128xi1> to vector<1x128xi1>
    %12 = arith.xori %8, %11 : vector<1x128xi1>
    %13 = arith.andi %12, %6 : vector<1x128xi1>
    %14 = vector.broadcast %2 : i32 to vector<1x128xi32>
    %15 = arith.addi %4, %14 : vector<1x128xi32>
    %16 = arith.select %13, %15, %4 : vector<1x128xi1>, vector<1x128xi32>
    %c8_i32 = arith.constant 8 : i32
    %17 = vector.broadcast %c8_i32 : i32 to vector<1x128xi32>
    %18 = arith.cmpi slt, %16, %17 : vector<1x128xi32>
    %19 = tpu.iota {dimensions = array<i32: 1>} : vector<1x128xi32>
    %c16_i32_3 = arith.constant 16 : i32
    %c0_i32_4 = arith.constant 0 : i32
    %20 = arith.cmpi eq, %c16_i32_3, %c0_i32_4 : i32
    %c1_i32_5 = arith.constant 1 : i32
    %21 = arith.select %20, %c1_i32_5, %c16_i32_3 : i32
    %22 = vector.broadcast %21 : i32 to vector<1x128xi32>
    %23 = arith.remsi %19, %22 : vector<1x128xi32>
    %c0_i32_6 = arith.constant 0 : i32
    %24 = vector.broadcast %c0_i32_6 : i32 to vector<1x128xi32>
    %25 = arith.cmpi ne, %23, %24 : vector<1x128xi32>
    %c0_i32_7 = arith.constant 0 : i32
    %26 = vector.broadcast %c0_i32_7 : i32 to vector<1x128xi32>
    %27 = arith.cmpi slt, %23, %26 : vector<1x128xi32>
    %c0_i32_8 = arith.constant 0 : i32
    %28 = arith.cmpi slt, %21, %c0_i32_8 : i32
    %29 = vector.broadcast %28 : i1 to vector<1x128xi1>
    %30 = vector.broadcast %29 : vector<1x128xi1> to vector<1x128xi1>
    %31 = arith.xori %27, %30 : vector<1x128xi1>
    %32 = arith.andi %31, %25 : vector<1x128xi1>
    %33 = vector.broadcast %21 : i32 to vector<1x128xi32>
    %34 = arith.addi %23, %33 : vector<1x128xi32>
    %35 = arith.select %32, %34, %23 : vector<1x128xi1>, vector<1x128xi32>
    %c8_i32_9 = arith.constant 8 : i32
    %36 = vector.broadcast %c8_i32_9 : i32 to vector<1x128xi32>
    %37 = arith.cmpi slt, %35, %36 : vector<1x128xi32>
    %c0 = arith.constant 0 : index
    %c0_10 = arith.constant 0 : index
    %c0_11 = arith.constant 0 : index
    %38 = vector.load %arg1[%c0, %c0_10, %c0_11] : memref<1x64x32xf32, #tpu.memory_space<vmem>>, vector<1x64x32xf32>
    %39 = vector.shape_cast %38 : vector<1x64x32xf32> to vector<64x32xf32>
    %c0_12 = arith.constant 0 : index
    %c0_13 = arith.constant 0 : index
    %40 = vector.load %arg2[%c0_12, %c0_13] : memref<32x128xf32, #tpu.memory_space<vmem>>, vector<32x128xf32>
    %cst = arith.constant dense<0.000000e+00> : vector<64x128xf32>
    %41 = tpu.matmul %39, %40, %cst {dimension_numbers = #tpu.dot_dimension_numbers<[1], [0], [0], [1], [0, 0, 1, 1], [], []>} : vector<64x32xf32>, vector<32x128xf32>, vector<64x128xf32> -> vector<64x128xf32>
    %c0_14 = arith.constant 0 : index
    %c0_15 = arith.constant 0 : index
    %42 = vector.load %arg3[%c0_14, %c0_15] : memref<1x128xf32, #tpu.memory_space<vmem>>, vector<1x128xf32>
    %c0_16 = arith.constant 0 : index
    %c0_17 = arith.constant 0 : index
    %43 = vector.load %arg4[%c0_16, %c0_17] : memref<1x128xf32, #tpu.memory_space<vmem>>, vector<1x128xf32>
    %44 = arith.mulf %41, %41 : vector<64x128xf32>
    %45 = vector.shape_cast %41 : vector<64x128xf32> to vector<1x64x128xf32>
    %cst_18 = arith.constant dense<0.000000e+00> : vector<1xf32>
    %46 = vector.multi_reduction <add>, %45, %cst_18 [1, 2] : vector<1x64x128xf32> to vector<1xf32>
    %47 = vector.shape_cast %46 : vector<1xf32> to vector<1x1x1xf32>
    %48 = vector.extract %47[0, 0, 0] : f32 from vector<1x1x1xf32>
    %49 = vector.shape_cast %44 : vector<64x128xf32> to vector<1x64x128xf32>
    %cst_19 = arith.constant dense<0.000000e+00> : vector<1xf32>
    %50 = vector.multi_reduction <add>, %49, %cst_19 [1, 2] : vector<1x64x128xf32> to vector<1xf32>
    %51 = vector.shape_cast %50 : vector<1xf32> to vector<1x1x1xf32>
    %52 = vector.extract %51[0, 0, 0] : f32 from vector<1x1x1xf32>
    %cst_20 = arith.constant 0.000000e+00 : f32
    %53 = vector.shape_cast %18 : vector<1x128xi1> to vector<1x128xi1>
    %54 = vector.broadcast %53 : vector<1x128xi1> to vector<64x128xi1>
    %55 = vector.broadcast %cst_20 : f32 to vector<64x128xf32>
    %56 = arith.select %54, %41, %55 : vector<64x128xi1>, vector<64x128xf32>
    %57 = vector.shape_cast %56 : vector<64x128xf32> to vector<1x64x128xf32>
    %cst_21 = arith.constant dense<0.000000e+00> : vector<1xf32>
    %58 = vector.multi_reduction <add>, %57, %cst_21 [1, 2] : vector<1x64x128xf32> to vector<1xf32>
    %59 = vector.shape_cast %58 : vector<1xf32> to vector<1x1x1xf32>
    %60 = vector.extract %59[0, 0, 0] : f32 from vector<1x1x1xf32>
    %cst_22 = arith.constant 0.000000e+00 : f32
    %61 = vector.shape_cast %18 : vector<1x128xi1> to vector<1x128xi1>
    %62 = vector.broadcast %61 : vector<1x128xi1> to vector<64x128xi1>
    %63 = vector.broadcast %cst_22 : f32 to vector<64x128xf32>
    %64 = arith.select %62, %44, %63 : vector<64x128xi1>, vector<64x128xf32>
    %65 = vector.shape_cast %64 : vector<64x128xf32> to vector<1x64x128xf32>
    %cst_23 = arith.constant dense<0.000000e+00> : vector<1xf32>
    %66 = vector.multi_reduction <add>, %65, %cst_23 [1, 2] : vector<1x64x128xf32> to vector<1xf32>
    %67 = vector.shape_cast %66 : vector<1xf32> to vector<1x1x1xf32>
    %68 = vector.extract %67[0, 0, 0] : f32 from vector<1x1x1xf32>
    %cst_24 = arith.constant 4.096000e+03 : f32
    %69 = arith.divf %60, %cst_24 : f32
    %70 = arith.subf %48, %60 : f32
    %cst_25 = arith.constant 4.096000e+03 : f32
    %71 = arith.divf %70, %cst_25 : f32
    %cst_26 = arith.constant 4.096000e+03 : f32
    %72 = arith.divf %68, %cst_26 : f32
    %73 = arith.mulf %69, %69 : f32
    %74 = arith.subf %72, %73 : f32
    %cst_27 = arith.constant 0.000000e+00 : f32
    %75 = arith.maximumf %74, %cst_27 : f32
    %76 = arith.subf %52, %68 : f32
    %cst_28 = arith.constant 4.096000e+03 : f32
    %77 = arith.divf %76, %cst_28 : f32
    %78 = arith.mulf %71, %71 : f32
    %79 = arith.subf %77, %78 : f32
    %cst_29 = arith.constant 0.000000e+00 : f32
    %80 = arith.maximumf %79, %cst_29 : f32
    %81 = vector.broadcast %69 : f32 to vector<1x128xf32>
    %82 = vector.broadcast %71 : f32 to vector<1x128xf32>
    %83 = arith.select %18, %81, %82 : vector<1x128xi1>, vector<1x128xf32>
    %cst_30 = arith.constant 9.99999974E-6 : f32
    %84 = arith.addf %75, %cst_30 : f32
    %85 = math.rsqrt %84 : f32
    %cst_31 = arith.constant 9.99999974E-6 : f32
    %86 = arith.addf %80, %cst_31 : f32
    %87 = math.rsqrt %86 : f32
    %88 = vector.broadcast %85 : f32 to vector<1x128xf32>
    %89 = vector.broadcast %87 : f32 to vector<1x128xf32>
    %90 = arith.select %18, %88, %89 : vector<1x128xi1>, vector<1x128xf32>
    %91 = vector.broadcast %83 : vector<1x128xf32> to vector<64x128xf32>
    %92 = arith.subf %41, %91 : vector<64x128xf32>
    %93 = vector.broadcast %90 : vector<1x128xf32> to vector<64x128xf32>
    %94 = arith.mulf %92, %93 : vector<64x128xf32>
    %95 = vector.broadcast %42 : vector<1x128xf32> to vector<64x128xf32>
    %96 = arith.mulf %94, %95 : vector<64x128xf32>
    %97 = vector.broadcast %43 : vector<1x128xf32> to vector<64x128xf32>
    %98 = arith.addf %96, %97 : vector<64x128xf32>
    %cst_32 = arith.constant 0.000000e+00 : f32
    %99 = vector.broadcast %cst_32 : f32 to vector<64x128xf32>
    %100 = arith.maximumf %98, %99 : vector<64x128xf32>
    %cst_33 = arith.constant 0.000000e+00 : f32
    %101 = vector.broadcast %cst_33 : f32 to vector<14x14x128xf32>
    %c0_34 = arith.constant 0 : index
    %c0_35 = arith.constant 0 : index
    %c0_36 = arith.constant 0 : index
    %102 = vector.load %arg18[%c0_34, %c0_35, %c0_36] : memref<14x14x128xf32, #tpu.memory_space<vmem>>, vector<14x14x128xf32>
    tpu.vector_store %arg18[%c0_34, %c0_35, %c0_36], %101 {strides = array<i32>} : memref<14x14x128xf32, #tpu.memory_space<vmem>>, vector<14x14x128xf32>,
    %103 = vector.shape_cast %100 : vector<64x128xf32> to vector<8x8x128xf32>
    %c3 = arith.constant 3 : index
    %c3_37 = arith.constant 3 : index
    %c0_38 = arith.constant 0 : index
    %104 = vector.load %arg18[%c3, %c3_37, %c0_38] : memref<14x14x128xf32, #tpu.memory_space<vmem>>, vector<8x8x128xf32>
    tpu.vector_store %arg18[%c3, %c3_37, %c0_38], %103 {strides = array<i32>} : memref<14x14x128xf32, #tpu.memory_space<vmem>>, vector<8x8x128xf32>,
    %cst_39 = arith.constant 0.000000e+00 : f32
    %105 = vector.broadcast %cst_39 : f32 to vector<64x128xf32>
    %c1 = arith.constant 1 : index
    %c1_40 = arith.constant 1 : index
    %c0_41 = arith.constant 0 : index
    %106 = vector.load %arg18[%c1, %c1_40, %c0_41] : memref<14x14x128xf32, #tpu.memory_space<vmem>>, vector<8x8x128xf32>
    %107 = vector.shape_cast %106 : vector<8x8x128xf32> to vector<64x128xf32>
    %c0_42 = arith.constant 0 : index
    %c0_43 = arith.constant 0 : index
    %c0_44 = arith.constant 0 : index
    %108 = vector.load %arg5[%c0_42, %c0_43, %c0_44] : memref<18x128x128xf32, #tpu.memory_space<vmem>>, vector<1x128x128xf32>
    %109 = vector.shape_cast %108 : vector<1x128x128xf32> to vector<128x128xf32>
    %cst_45 = arith.constant dense<0.000000e+00> : vector<64x128xf32>
    %110 = tpu.matmul %107, %109, %cst_45 {dimension_numbers = #tpu.dot_dimension_numbers<[1], [0], [0], [1], [0, 0, 1, 1], [], []>} : vector<64x128xf32>, vector<128x128xf32>, vector<64x128xf32> -> vector<64x128xf32>
    %111 = arith.addf %105, %110 : vector<64x128xf32>
    %c1_46 = arith.constant 1 : index
    %c3_47 = arith.constant 3 : index
    %c0_48 = arith.constant 0 : index
    %112 = vector.load %arg18[%c1_46, %c3_47, %c0_48] : memref<14x14x128xf32, #tpu.memory_space<vmem>>, vector<8x8x128xf32>
    %113 = vector.shape_cast %112 : vector<8x8x128xf32> to vector<64x128xf32>
    %c1_49 = arith.constant 1 : index
    %c0_50 = arith.constant 0 : index
    %c0_51 = arith.constant 0 : index
    %114 = vector.load %arg5[%c1_49, %c0_50, %c0_51] : memref<18x128x128xf32, #tpu.memory_space<vmem>>, vector<1x128x128xf32>
    %115 = vector.shape_cast %114 : vector<1x128x128xf32> to vector<128x128xf32>
    %cst_52 = arith.constant dense<0.000000e+00> : vector<64x128xf32>
    %116 = tpu.matmul %113, %115, %cst_52 {dimension_numbers = #tpu.dot_dimension_numbers<[1], [0], [0], [1], [0, 0, 1, 1], [], []>} : vector<64x128xf32>, vector<128x128xf32>, vector<64x128xf32> -> vector<64x128xf32>
    %117 = arith.addf %111, %116 : vector<64x128xf32>
    %c1_53 = arith.constant 1 : index
    %c5 = arith.constant 5 : index
    %c0_54 = arith.constant 0 : index
    %118 = vector.load %arg18[%c1_53, %c5, %c0_54] : memref<14x14x128xf32, #tpu.memory_space<vmem>>, vector<8x8x128xf32>
    %119 = vector.shape_cast %118 : vector<8x8x128xf32> to vector<64x128xf32>
    %c2 = arith.constant 2 : index
    %c0_55 = arith.constant 0 : index
    %c0_56 = arith.constant 0 : index
    %120 = vector.load %arg5[%c2, %c0_55, %c0_56] : memref<18x128x128xf32, #tpu.memory_space<vmem>>, vector<1x128x128xf32>
    %121 = vector.shape_cast %120 : vector<1x128x128xf32> to vector<128x128xf32>
    %cst_57 = arith.constant dense<0.000000e+00> : vector<64x128xf32>
    %122 = tpu.matmul %119, %121, %cst_57 {dimension_numbers = #tpu.dot_dimension_numbers<[1], [0], [0], [1], [0, 0, 1, 1], [], []>} : vector<64x128xf32>, vector<128x128xf32>, vector<64x128xf32> -> vector<64x128xf32>
    %123 = arith.addf %117, %122 : vector<64x128xf32>
    %c3_58 = arith.constant 3 : index
    %c1_59 = arith.constant 1 : index
    %c0_60 = arith.constant 0 : index
    %124 = vector.load %arg18[%c3_58, %c1_59, %c0_60] : memref<14x14x128xf32, #tpu.memory_space<vmem>>, vector<8x8x128xf32>
    %125 = vector.shape_cast %124 : vector<8x8x128xf32> to vector<64x128xf32>
    %c3_61 = arith.constant 3 : index
    %c0_62 = arith.constant 0 : index
    %c0_63 = arith.constant 0 : index
    %126 = vector.load %arg5[%c3_61, %c0_62, %c0_63] : memref<18x128x128xf32, #tpu.memory_space<vmem>>, vector<1x128x128xf32>
    %127 = vector.shape_cast %126 : vector<1x128x128xf32> to vector<128x128xf32>
    %cst_64 = arith.constant dense<0.000000e+00> : vector<64x128xf32>
    %128 = tpu.matmul %125, %127, %cst_64 {dimension_numbers = #tpu.dot_dimension_numbers<[1], [0], [0], [1], [0, 0, 1, 1], [], []>} : vector<64x128xf32>, vector<128x128xf32>, vector<64x128xf32> -> vector<64x128xf32>
    %129 = arith.addf %123, %128 : vector<64x128xf32>
    %c3_65 = arith.constant 3 : index
    %c3_66 = arith.constant 3 : index
    %c0_67 = arith.constant 0 : index
    %130 = vector.load %arg18[%c3_65, %c3_66, %c0_67] : memref<14x14x128xf32, #tpu.memory_space<vmem>>, vector<8x8x128xf32>
    %131 = vector.shape_cast %130 : vector<8x8x128xf32> to vector<64x128xf32>
    %c4 = arith.constant 4 : index
    %c0_68 = arith.constant 0 : index
    %c0_69 = arith.constant 0 : index
    %132 = vector.load %arg5[%c4, %c0_68, %c0_69] : memref<18x128x128xf32, #tpu.memory_space<vmem>>, vector<1x128x128xf32>
    %133 = vector.shape_cast %132 : vector<1x128x128xf32> to vector<128x128xf32>
    %cst_70 = arith.constant dense<0.000000e+00> : vector<64x128xf32>
    %134 = tpu.matmul %131, %133, %cst_70 {dimension_numbers = #tpu.dot_dimension_numbers<[1], [0], [0], [1], [0, 0, 1, 1], [], []>} : vector<64x128xf32>, vector<128x128xf32>, vector<64x128xf32> -> vector<64x128xf32>
    %135 = arith.addf %129, %134 : vector<64x128xf32>
    %c3_71 = arith.constant 3 : index
    %c5_72 = arith.constant 5 : index
    %c0_73 = arith.constant 0 : index
    %136 = vector.load %arg18[%c3_71, %c5_72, %c0_73] : memref<14x14x128xf32, #tpu.memory_space<vmem>>, vector<8x8x128xf32>
    %137 = vector.shape_cast %136 : vector<8x8x128xf32> to vector<64x128xf32>
    %c5_74 = arith.constant 5 : index
    %c0_75 = arith.constant 0 : index
    %c0_76 = arith.constant 0 : index
    %138 = vector.load %arg5[%c5_74, %c0_75, %c0_76] : memref<18x128x128xf32, #tpu.memory_space<vmem>>, vector<1x128x128xf32>
    %139 = vector.shape_cast %138 : vector<1x128x128xf32> to vector<128x128xf32>
    %cst_77 = arith.constant dense<0.000000e+00> : vector<64x128xf32>
    %140 = tpu.matmul %137, %139, %cst_77 {dimension_numbers = #tpu.dot_dimension_numbers<[1], [0], [0], [1], [0, 0, 1, 1], [], []>} : vector<64x128xf32>, vector<128x128xf32>, vector<64x128xf32> -> vector<64x128xf32>
    %141 = arith.addf %135, %140 : vector<64x128xf32>
    %c5_78 = arith.constant 5 : index
    %c1_79 = arith.constant 1 : index
    %c0_80 = arith.constant 0 : index
    %142 = vector.load %arg18[%c5_78, %c1_79, %c0_80] : memref<14x14x128xf32, #tpu.memory_space<vmem>>, vector<8x8x128xf32>
    %143 = vector.shape_cast %142 : vector<8x8x128xf32> to vector<64x128xf32>
    %c6 = arith.constant 6 : index
    %c0_81 = arith.constant 0 : index
    %c0_82 = arith.constant 0 : index
    %144 = vector.load %arg5[%c6, %c0_81, %c0_82] : memref<18x128x128xf32, #tpu.memory_space<vmem>>, vector<1x128x128xf32>
    %145 = vector.shape_cast %144 : vector<1x128x128xf32> to vector<128x128xf32>
    %cst_83 = arith.constant dense<0.000000e+00> : vector<64x128xf32>
    %146 = tpu.matmul %143, %145, %cst_83 {dimension_numbers = #tpu.dot_dimension_numbers<[1], [0], [0], [1], [0, 0, 1, 1], [], []>} : vector<64x128xf32>, vector<128x128xf32>, vector<64x128xf32> -> vector<64x128xf32>
    %147 = arith.addf %141, %146 : vector<64x128xf32>
    %c5_84 = arith.constant 5 : index
    %c3_85 = arith.constant 3 : index
    %c0_86 = arith.constant 0 : index
    %148 = vector.load %arg18[%c5_84, %c3_85, %c0_86] : memref<14x14x128xf32, #tpu.memory_space<vmem>>, vector<8x8x128xf32>
    %149 = vector.shape_cast %148 : vector<8x8x128xf32> to vector<64x128xf32>
    %c7 = arith.constant 7 : index
    %c0_87 = arith.constant 0 : index
    %c0_88 = arith.constant 0 : index
    %150 = vector.load %arg5[%c7, %c0_87, %c0_88] : memref<18x128x128xf32, #tpu.memory_space<vmem>>, vector<1x128x128xf32>
    %151 = vector.shape_cast %150 : vector<1x128x128xf32> to vector<128x128xf32>
    %cst_89 = arith.constant dense<0.000000e+00> : vector<64x128xf32>
    %152 = tpu.matmul %149, %151, %cst_89 {dimension_numbers = #tpu.dot_dimension_numbers<[1], [0], [0], [1], [0, 0, 1, 1], [], []>} : vector<64x128xf32>, vector<128x128xf32>, vector<64x128xf32> -> vector<64x128xf32>
    %153 = arith.addf %147, %152 : vector<64x128xf32>
    %c5_90 = arith.constant 5 : index
    %c5_91 = arith.constant 5 : index
    %c0_92 = arith.constant 0 : index
    %154 = vector.load %arg18[%c5_90, %c5_91, %c0_92] : memref<14x14x128xf32, #tpu.memory_space<vmem>>, vector<8x8x128xf32>
    %155 = vector.shape_cast %154 : vector<8x8x128xf32> to vector<64x128xf32>
    %c8 = arith.constant 8 : index
    %c0_93 = arith.constant 0 : index
    %c0_94 = arith.constant 0 : index
    %156 = vector.load %arg5[%c8, %c0_93, %c0_94] : memref<18x128x128xf32, #tpu.memory_space<vmem>>, vector<1x128x128xf32>
    %157 = vector.shape_cast %156 : vector<1x128x128xf32> to vector<128x128xf32>
    %cst_95 = arith.constant dense<0.000000e+00> : vector<64x128xf32>
    %158 = tpu.matmul %155, %157, %cst_95 {dimension_numbers = #tpu.dot_dimension_numbers<[1], [0], [0], [1], [0, 0, 1, 1], [], []>} : vector<64x128xf32>, vector<128x128xf32>, vector<64x128xf32> -> vector<64x128xf32>
    %159 = arith.addf %153, %158 : vector<64x128xf32>
    %c0_96 = arith.constant 0 : index
    %c0_97 = arith.constant 0 : index
    %c0_98 = arith.constant 0 : index
    %160 = vector.load %arg18[%c0_96, %c0_97, %c0_98] : memref<14x14x128xf32, #tpu.memory_space<vmem>>, vector<8x8x128xf32>
    %161 = vector.shape_cast %160 : vector<8x8x128xf32> to vector<64x128xf32>
    %c9 = arith.constant 9 : index
    %c0_99 = arith.constant 0 : index
    %c0_100 = arith.constant 0 : index
    %162 = vector.load %arg5[%c9, %c0_99, %c0_100] : memref<18x128x128xf32, #tpu.memory_space<vmem>>, vector<1x128x128xf32>
    %163 = vector.shape_cast %162 : vector<1x128x128xf32> to vector<128x128xf32>
    %cst_101 = arith.constant dense<0.000000e+00> : vector<64x128xf32>
    %164 = tpu.matmul %161, %163, %cst_101 {dimension_numbers = #tpu.dot_dimension_numbers<[1], [0], [0], [1], [0, 0, 1, 1], [], []>} : vector<64x128xf32>, vector<128x128xf32>, vector<64x128xf32> -> vector<64x128xf32>
    %165 = arith.addf %159, %164 : vector<64x128xf32>
    %c0_102 = arith.constant 0 : index
    %c3_103 = arith.constant 3 : index
    %c0_104 = arith.constant 0 : index
    %166 = vector.load %arg18[%c0_102, %c3_103, %c0_104] : memref<14x14x128xf32, #tpu.memory_space<vmem>>, vector<8x8x128xf32>
    %167 = vector.shape_cast %166 : vector<8x8x128xf32> to vector<64x128xf32>
    %c10 = arith.constant 10 : index
    %c0_105 = arith.constant 0 : index
    %c0_106 = arith.constant 0 : index
    %168 = vector.load %arg5[%c10, %c0_105, %c0_106] : memref<18x128x128xf32, #tpu.memory_space<vmem>>, vector<1x128x128xf32>
    %169 = vector.shape_cast %168 : vector<1x128x128xf32> to vector<128x128xf32>
    %cst_107 = arith.constant dense<0.000000e+00> : vector<64x128xf32>
    %170 = tpu.matmul %167, %169, %cst_107 {dimension_numbers = #tpu.dot_dimension_numbers<[1], [0], [0], [1], [0, 0, 1, 1], [], []>} : vector<64x128xf32>, vector<128x128xf32>, vector<64x128xf32> -> vector<64x128xf32>
    %171 = arith.addf %165, %170 : vector<64x128xf32>
    %c0_108 = arith.constant 0 : index
    %c6_109 = arith.constant 6 : index
    %c0_110 = arith.constant 0 : index
    %172 = vector.load %arg18[%c0_108, %c6_109, %c0_110] : memref<14x14x128xf32, #tpu.memory_space<vmem>>, vector<8x8x128xf32>
    %173 = vector.shape_cast %172 : vector<8x8x128xf32> to vector<64x128xf32>
    %c11 = arith.constant 11 : index
    %c0_111 = arith.constant 0 : index
    %c0_112 = arith.constant 0 : index
    %174 = vector.load %arg5[%c11, %c0_111, %c0_112] : memref<18x128x128xf32, #tpu.memory_space<vmem>>, vector<1x128x128xf32>
    %175 = vector.shape_cast %174 : vector<1x128x128xf32> to vector<128x128xf32>
    %cst_113 = arith.constant dense<0.000000e+00> : vector<64x128xf32>
    %176 = tpu.matmul %173, %175, %cst_113 {dimension_numbers = #tpu.dot_dimension_numbers<[1], [0], [0], [1], [0, 0, 1, 1], [], []>} : vector<64x128xf32>, vector<128x128xf32>, vector<64x128xf32> -> vector<64x128xf32>
    %177 = arith.addf %171, %176 : vector<64x128xf32>
    %c3_114 = arith.constant 3 : index
    %c0_115 = arith.constant 0 : index
    %c0_116 = arith.constant 0 : index
    %178 = vector.load %arg18[%c3_114, %c0_115, %c0_116] : memref<14x14x128xf32, #tpu.memory_space<vmem>>, vector<8x8x128xf32>
    %179 = vector.shape_cast %178 : vector<8x8x128xf32> to vector<64x128xf32>
    %c12 = arith.constant 12 : index
    %c0_117 = arith.constant 0 : index
    %c0_118 = arith.constant 0 : index
    %180 = vector.load %arg5[%c12, %c0_117, %c0_118] : memref<18x128x128xf32, #tpu.memory_space<vmem>>, vector<1x128x128xf32>
    %181 = vector.shape_cast %180 : vector<1x128x128xf32> to vector<128x128xf32>
    %cst_119 = arith.constant dense<0.000000e+00> : vector<64x128xf32>
    %182 = tpu.matmul %179, %181, %cst_119 {dimension_numbers = #tpu.dot_dimension_numbers<[1], [0], [0], [1], [0, 0, 1, 1], [], []>} : vector<64x128xf32>, vector<128x128xf32>, vector<64x128xf32> -> vector<64x128xf32>
    %183 = arith.addf %177, %182 : vector<64x128xf32>
    %c3_120 = arith.constant 3 : index
    %c3_121 = arith.constant 3 : index
    %c0_122 = arith.constant 0 : index
    %184 = vector.load %arg18[%c3_120, %c3_121, %c0_122] : memref<14x14x128xf32, #tpu.memory_space<vmem>>, vector<8x8x128xf32>
    %185 = vector.shape_cast %184 : vector<8x8x128xf32> to vector<64x128xf32>
    %c13 = arith.constant 13 : index
    %c0_123 = arith.constant 0 : index
    %c0_124 = arith.constant 0 : index
    %186 = vector.load %arg5[%c13, %c0_123, %c0_124] : memref<18x128x128xf32, #tpu.memory_space<vmem>>, vector<1x128x128xf32>
    %187 = vector.shape_cast %186 : vector<1x128x128xf32> to vector<128x128xf32>
    %cst_125 = arith.constant dense<0.000000e+00> : vector<64x128xf32>
    %188 = tpu.matmul %185, %187, %cst_125 {dimension_numbers = #tpu.dot_dimension_numbers<[1], [0], [0], [1], [0, 0, 1, 1], [], []>} : vector<64x128xf32>, vector<128x128xf32>, vector<64x128xf32> -> vector<64x128xf32>
    %189 = arith.addf %183, %188 : vector<64x128xf32>
    %c3_126 = arith.constant 3 : index
    %c6_127 = arith.constant 6 : index
    %c0_128 = arith.constant 0 : index
    %190 = vector.load %arg18[%c3_126, %c6_127, %c0_128] : memref<14x14x128xf32, #tpu.memory_space<vmem>>, vector<8x8x128xf32>
    %191 = vector.shape_cast %190 : vector<8x8x128xf32> to vector<64x128xf32>
    %c14 = arith.constant 14 : index
    %c0_129 = arith.constant 0 : index
    %c0_130 = arith.constant 0 : index
    %192 = vector.load %arg5[%c14, %c0_129, %c0_130] : memref<18x128x128xf32, #tpu.memory_space<vmem>>, vector<1x128x128xf32>
    %193 = vector.shape_cast %192 : vector<1x128x128xf32> to vector<128x128xf32>
    %cst_131 = arith.constant dense<0.000000e+00> : vector<64x128xf32>
    %194 = tpu.matmul %191, %193, %cst_131 {dimension_numbers = #tpu.dot_dimension_numbers<[1], [0], [0], [1], [0, 0, 1, 1], [], []>} : vector<64x128xf32>, vector<128x128xf32>, vector<64x128xf32> -> vector<64x128xf32>
    %195 = arith.addf %189, %194 : vector<64x128xf32>
    %c6_132 = arith.constant 6 : index
    %c0_133 = arith.constant 0 : index
    %c0_134 = arith.constant 0 : index
    %196 = vector.load %arg18[%c6_132, %c0_133, %c0_134] : memref<14x14x128xf32, #tpu.memory_space<vmem>>, vector<8x8x128xf32>
    %197 = vector.shape_cast %196 : vector<8x8x128xf32> to vector<64x128xf32>
    %c15 = arith.constant 15 : index
    %c0_135 = arith.constant 0 : index
    %c0_136 = arith.constant 0 : index
    %198 = vector.load %arg5[%c15, %c0_135, %c0_136] : memref<18x128x128xf32, #tpu.memory_space<vmem>>, vector<1x128x128xf32>
    %199 = vector.shape_cast %198 : vector<1x128x128xf32> to vector<128x128xf32>
    %cst_137 = arith.constant dense<0.000000e+00> : vector<64x128xf32>
    %200 = tpu.matmul %197, %199, %cst_137 {dimension_numbers = #tpu.dot_dimension_numbers<[1], [0], [0], [1], [0, 0, 1, 1], [], []>} : vector<64x128xf32>, vector<128x128xf32>, vector<64x128xf32> -> vector<64x128xf32>
    %201 = arith.addf %195, %200 : vector<64x128xf32>
    %c6_138 = arith.constant 6 : index
    %c3_139 = arith.constant 3 : index
    %c0_140 = arith.constant 0 : index
    %202 = vector.load %arg18[%c6_138, %c3_139, %c0_140] : memref<14x14x128xf32, #tpu.memory_space<vmem>>, vector<8x8x128xf32>
    %203 = vector.shape_cast %202 : vector<8x8x128xf32> to vector<64x128xf32>
    %c16 = arith.constant 16 : index
    %c0_141 = arith.constant 0 : index
    %c0_142 = arith.constant 0 : index
    %204 = vector.load %arg5[%c16, %c0_141, %c0_142] : memref<18x128x128xf32, #tpu.memory_space<vmem>>, vector<1x128x128xf32>
    %205 = vector.shape_cast %204 : vector<1x128x128xf32> to vector<128x128xf32>
    %cst_143 = arith.constant dense<0.000000e+00> : vector<64x128xf32>
    %206 = tpu.matmul %203, %205, %cst_143 {dimension_numbers = #tpu.dot_dimension_numbers<[1], [0], [0], [1], [0, 0, 1, 1], [], []>} : vector<64x128xf32>, vector<128x128xf32>, vector<64x128xf32> -> vector<64x128xf32>
    %207 = arith.addf %201, %206 : vector<64x128xf32>
    %c6_144 = arith.constant 6 : index
    %c6_145 = arith.constant 6 : index
    %c0_146 = arith.constant 0 : index
    %208 = vector.load %arg18[%c6_144, %c6_145, %c0_146] : memref<14x14x128xf32, #tpu.memory_space<vmem>>, vector<8x8x128xf32>
    %209 = vector.shape_cast %208 : vector<8x8x128xf32> to vector<64x128xf32>
    %c17 = arith.constant 17 : index
    %c0_147 = arith.constant 0 : index
    %c0_148 = arith.constant 0 : index
    %210 = vector.load %arg5[%c17, %c0_147, %c0_148] : memref<18x128x128xf32, #tpu.memory_space<vmem>>, vector<1x128x128xf32>
    %211 = vector.shape_cast %210 : vector<1x128x128xf32> to vector<128x128xf32>
    %cst_149 = arith.constant dense<0.000000e+00> : vector<64x128xf32>
    %212 = tpu.matmul %209, %211, %cst_149 {dimension_numbers = #tpu.dot_dimension_numbers<[1], [0], [0], [1], [0, 0, 1, 1], [], []>} : vector<64x128xf32>, vector<128x128xf32>, vector<64x128xf32> -> vector<64x128xf32>
    %213 = arith.addf %207, %212 : vector<64x128xf32>
    %c0_150 = arith.constant 0 : index
    %c0_151 = arith.constant 0 : index
    %214 = vector.load %arg6[%c0_150, %c0_151] : memref<1x128xf32, #tpu.memory_space<vmem>>, vector<1x128xf32>
    %c0_152 = arith.constant 0 : index
    %c0_153 = arith.constant 0 : index
    %215 = vector.load %arg7[%c0_152, %c0_153] : memref<1x128xf32, #tpu.memory_space<vmem>>, vector<1x128xf32>
    %216 = arith.mulf %213, %213 : vector<64x128xf32>
    %217 = vector.shape_cast %213 : vector<64x128xf32> to vector<1x64x128xf32>
    %cst_154 = arith.constant dense<0.000000e+00> : vector<1xf32>
    %218 = vector.multi_reduction <add>, %217, %cst_154 [1, 2] : vector<1x64x128xf32> to vector<1xf32>
    %219 = vector.shape_cast %218 : vector<1xf32> to vector<1x1x1xf32>
    %220 = vector.extract %219[0, 0, 0] : f32 from vector<1x1x1xf32>
    %221 = vector.shape_cast %216 : vector<64x128xf32> to vector<1x64x128xf32>
    %cst_155 = arith.constant dense<0.000000e+00> : vector<1xf32>
    %222 = vector.multi_reduction <add>, %221, %cst_155 [1, 2] : vector<1x64x128xf32> to vector<1xf32>
    %223 = vector.shape_cast %222 : vector<1xf32> to vector<1x1x1xf32>
    %224 = vector.extract %223[0, 0, 0] : f32 from vector<1x1x1xf32>
    %cst_156 = arith.constant 8.192000e+03 : f32
    %225 = arith.divf %220, %cst_156 : f32
    %cst_157 = arith.constant 8.192000e+03 : f32
    %226 = arith.divf %224, %cst_157 : f32
    %227 = arith.mulf %225, %225 : f32
    %228 = arith.subf %226, %227 : f32
    %cst_158 = arith.constant 0.000000e+00 : f32
    %229 = arith.maximumf %228, %cst_158 : f32
    %cst_159 = arith.constant 9.99999974E-6 : f32
    %230 = arith.addf %229, %cst_159 : f32
    %231 = math.rsqrt %230 : f32
    %232 = vector.broadcast %225 : f32 to vector<64x128xf32>
    %233 = arith.subf %213, %232 : vector<64x128xf32>
    %234 = vector.broadcast %231 : f32 to vector<64x128xf32>
    %235 = arith.mulf %233, %234 : vector<64x128xf32>
    %236 = vector.broadcast %214 : vector<1x128xf32> to vector<64x128xf32>
    %237 = arith.mulf %235, %236 : vector<64x128xf32>
    %238 = vector.broadcast %215 : vector<1x128xf32> to vector<64x128xf32>
    %239 = arith.addf %237, %238 : vector<64x128xf32>
    %cst_160 = arith.constant 0.000000e+00 : f32
    %240 = vector.broadcast %cst_160 : f32 to vector<64x128xf32>
    %241 = arith.maximumf %239, %240 : vector<64x128xf32>
    %cst_161 = arith.constant dense<0.000000e+00> : vector<128xf32>
    %242 = vector.multi_reduction <add>, %241, %cst_161 [0] : vector<64x128xf32> to vector<128xf32>
    %243 = vector.shape_cast %242 : vector<128xf32> to vector<1x128xf32>
    %c0_162 = arith.constant 0 : index
    %c0_163 = arith.constant 0 : index
    %244 = vector.load %arg8[%c0_162, %c0_163] : memref<128x16xf32, #tpu.memory_space<vmem>>, vector<128x16xf32>
    %cst_164 = arith.constant dense<0.000000e+00> : vector<1x16xf32>
    %245 = tpu.matmul %243, %244, %cst_164 {dimension_numbers = #tpu.dot_dimension_numbers<[1], [0], [0], [1], [0, 0, 1, 1], [], []>} : vector<1x128xf32>, vector<128x16xf32>, vector<1x16xf32> -> vector<1x16xf32>
    %cst_165 = arith.constant 0.001953125 : f32
    %246 = vector.broadcast %cst_165 : f32 to vector<1x16xf32>
    %247 = arith.mulf %245, %246 : vector<1x16xf32>
    %c0_166 = arith.constant 0 : index
    %c0_167 = arith.constant 0 : index
    %248 = vector.load %arg10[%c0_166, %c0_167] : memref<16x4xf32, #tpu.memory_space<vmem>>, vector<16x4xf32>
    %cst_168 = arith.constant dense<0.000000e+00> : vector<1x4xf32>
    %249 = tpu.matmul %247, %248, %cst_168 {dimension_numbers = #tpu.dot_dimension_numbers<[1], [0], [0], [1], [0, 0, 1, 1], [], []>} : vector<1x16xf32>, vector<16x4xf32>, vector<1x4xf32> -> vector<1x4xf32>
    %c0_169 = arith.constant 0 : index
    %c0_170 = arith.constant 0 : index
    %250 = vector.load %arg11[%c0_169, %c0_170] : memref<1x4xf32, #tpu.memory_space<vmem>>, vector<1x4xf32>
    %251 = arith.addf %249, %250 : vector<1x4xf32>
    %cst_171 = arith.constant 0.000000e+00 : f32
    %252 = vector.broadcast %cst_171 : f32 to vector<1x4xf32>
    %253 = arith.maximumf %251, %252 : vector<1x4xf32>
    %c0_172 = arith.constant 0 : index
    %c0_173 = arith.constant 0 : index
    %254 = vector.load %arg12[%c0_172, %c0_173] : memref<4x16xf32, #tpu.memory_space<vmem>>, vector<4x16xf32>
    %cst_174 = arith.constant dense<0.000000e+00> : vector<1x16xf32>
    %255 = tpu.matmul %253, %254, %cst_174 {dimension_numbers = #tpu.dot_dimension_numbers<[1], [0], [0], [1], [0, 0, 1, 1], [], []>} : vector<1x4xf32>, vector<4x16xf32>, vector<1x16xf32> -> vector<1x16xf32>
    %c0_175 = arith.constant 0 : index
    %c0_176 = arith.constant 0 : index
    %256 = vector.load %arg13[%c0_175, %c0_176] : memref<1x16xf32, #tpu.memory_space<vmem>>, vector<1x16xf32>
    %257 = arith.addf %255, %256 : vector<1x16xf32>
    %cst_177 = arith.constant 0.000000e+00 : f32
    %258 = vector.broadcast %cst_177 : f32 to vector<1x16xf32>
    %259 = arith.subf %258, %257 : vector<1x16xf32>
    %260 = math.exp %259 : vector<1x16xf32>
    %cst_178 = arith.constant 1.000000e+00 : f32
    %261 = vector.broadcast %cst_178 : f32 to vector<1x16xf32>
    %262 = arith.addf %261, %260 : vector<1x16xf32>
    %263 = tpu.reciprocal %262 {approx = true} : vector<1x16xf32> -> vector<1x16xf32>
    %c0_179 = arith.constant 0 : index
    %c0_180 = arith.constant 0 : index
    %264 = vector.load %arg9[%c0_179, %c0_180] : memref<16x128xf32, #tpu.memory_space<vmem>>, vector<16x128xf32>
    %cst_181 = arith.constant dense<0.000000e+00> : vector<1x128xf32>
    %265 = tpu.matmul %263, %264, %cst_181 {dimension_numbers = #tpu.dot_dimension_numbers<[1], [0], [0], [1], [0, 0, 1, 1], [], []>} : vector<1x16xf32>, vector<16x128xf32>, vector<1x128xf32> -> vector<1x128xf32>
    %266 = vector.broadcast %265 : vector<1x128xf32> to vector<64x128xf32>
    %267 = arith.mulf %241, %266 : vector<64x128xf32>
    %c0_182 = arith.constant 0 : index
    %c0_183 = arith.constant 0 : index
    %268 = vector.load %arg14[%c0_182, %c0_183] : memref<128x128xf32, #tpu.memory_space<vmem>>, vector<128x128xf32>
    %cst_184 = arith.constant dense<0.000000e+00> : vector<64x128xf32>
    %269 = tpu.matmul %267, %268, %cst_184 {dimension_numbers = #tpu.dot_dimension_numbers<[1], [0], [0], [1], [0, 0, 1, 1], [], []>} : vector<64x128xf32>, vector<128x128xf32>, vector<64x128xf32> -> vector<64x128xf32>
    %c0_185 = arith.constant 0 : index
    %c0_186 = arith.constant 0 : index
    %270 = vector.load %arg15[%c0_185, %c0_186] : memref<1x128xf32, #tpu.memory_space<vmem>>, vector<1x128xf32>
    %c0_187 = arith.constant 0 : index
    %c0_188 = arith.constant 0 : index
    %271 = vector.load %arg16[%c0_187, %c0_188] : memref<1x128xf32, #tpu.memory_space<vmem>>, vector<1x128xf32>
    %272 = arith.mulf %269, %269 : vector<64x128xf32>
    %273 = vector.shape_cast %269 : vector<64x128xf32> to vector<1x64x128xf32>
    %cst_189 = arith.constant dense<0.000000e+00> : vector<1xf32>
    %274 = vector.multi_reduction <add>, %273, %cst_189 [1, 2] : vector<1x64x128xf32> to vector<1xf32>
    %275 = vector.shape_cast %274 : vector<1xf32> to vector<1x1x1xf32>
    %276 = vector.extract %275[0, 0, 0] : f32 from vector<1x1x1xf32>
    %277 = vector.shape_cast %272 : vector<64x128xf32> to vector<1x64x128xf32>
    %cst_190 = arith.constant dense<0.000000e+00> : vector<1xf32>
    %278 = vector.multi_reduction <add>, %277, %cst_190 [1, 2] : vector<1x64x128xf32> to vector<1xf32>
    %279 = vector.shape_cast %278 : vector<1xf32> to vector<1x1x1xf32>
    %280 = vector.extract %279[0, 0, 0] : f32 from vector<1x1x1xf32>
    %cst_191 = arith.constant 0.000000e+00 : f32
    %281 = vector.shape_cast %37 : vector<1x128xi1> to vector<1x128xi1>
    %282 = vector.broadcast %281 : vector<1x128xi1> to vector<64x128xi1>
    %283 = vector.broadcast %cst_191 : f32 to vector<64x128xf32>
    %284 = arith.select %282, %269, %283 : vector<64x128xi1>, vector<64x128xf32>
    %285 = vector.shape_cast %284 : vector<64x128xf32> to vector<1x64x128xf32>
    %cst_192 = arith.constant dense<0.000000e+00> : vector<1xf32>
    %286 = vector.multi_reduction <add>, %285, %cst_192 [1, 2] : vector<1x64x128xf32> to vector<1xf32>
    %287 = vector.shape_cast %286 : vector<1xf32> to vector<1x1x1xf32>
    %288 = vector.extract %287[0, 0, 0] : f32 from vector<1x1x1xf32>
    %cst_193 = arith.constant 0.000000e+00 : f32
    %289 = vector.shape_cast %37 : vector<1x128xi1> to vector<1x128xi1>
    %290 = vector.broadcast %289 : vector<1x128xi1> to vector<64x128xi1>
    %291 = vector.broadcast %cst_193 : f32 to vector<64x128xf32>
    %292 = arith.select %290, %272, %291 : vector<64x128xi1>, vector<64x128xf32>
    %293 = vector.shape_cast %292 : vector<64x128xf32> to vector<1x64x128xf32>
    %cst_194 = arith.constant dense<0.000000e+00> : vector<1xf32>
    %294 = vector.multi_reduction <add>, %293, %cst_194 [1, 2] : vector<1x64x128xf32> to vector<1xf32>
    %295 = vector.shape_cast %294 : vector<1xf32> to vector<1x1x1xf32>
    %296 = vector.extract %295[0, 0, 0] : f32 from vector<1x1x1xf32>
    %cst_195 = arith.constant 4.096000e+03 : f32
    %297 = arith.divf %288, %cst_195 : f32
    %298 = arith.subf %276, %288 : f32
    %cst_196 = arith.constant 4.096000e+03 : f32
    %299 = arith.divf %298, %cst_196 : f32
    %cst_197 = arith.constant 4.096000e+03 : f32
    %300 = arith.divf %296, %cst_197 : f32
    %301 = arith.mulf %297, %297 : f32
    %302 = arith.subf %300, %301 : f32
    %cst_198 = arith.constant 0.000000e+00 : f32
    %303 = arith.maximumf %302, %cst_198 : f32
    %304 = arith.subf %280, %296 : f32
    %cst_199 = arith.constant 4.096000e+03 : f32
    %305 = arith.divf %304, %cst_199 : f32
    %306 = arith.mulf %299, %299 : f32
    %307 = arith.subf %305, %306 : f32
    %cst_200 = arith.constant 0.000000e+00 : f32
    %308 = arith.maximumf %307, %cst_200 : f32
    %309 = vector.broadcast %297 : f32 to vector<1x128xf32>
    %310 = vector.broadcast %299 : f32 to vector<1x128xf32>
    %311 = arith.select %37, %309, %310 : vector<1x128xi1>, vector<1x128xf32>
    %cst_201 = arith.constant 9.99999974E-6 : f32
    %312 = arith.addf %303, %cst_201 : f32
    %313 = math.rsqrt %312 : f32
    %cst_202 = arith.constant 9.99999974E-6 : f32
    %314 = arith.addf %308, %cst_202 : f32
    %315 = math.rsqrt %314 : f32
    %316 = vector.broadcast %313 : f32 to vector<1x128xf32>
    %317 = vector.broadcast %315 : f32 to vector<1x128xf32>
    %318 = arith.select %37, %316, %317 : vector<1x128xi1>, vector<1x128xf32>
    %319 = vector.broadcast %311 : vector<1x128xf32> to vector<64x128xf32>
    %320 = arith.subf %269, %319 : vector<64x128xf32>
    %321 = vector.broadcast %318 : vector<1x128xf32> to vector<64x128xf32>
    %322 = arith.mulf %320, %321 : vector<64x128xf32>
    %323 = vector.broadcast %270 : vector<1x128xf32> to vector<64x128xf32>
    %324 = arith.mulf %322, %323 : vector<64x128xf32>
    %325 = vector.broadcast %271 : vector<1x128xf32> to vector<64x128xf32>
    %326 = arith.addf %324, %325 : vector<64x128xf32>
    %c0_203 = arith.constant 0 : index
    %c0_204 = arith.constant 0 : index
    %c0_205 = arith.constant 0 : index
    %327 = vector.load %arg17[%c0_203, %c0_204, %c0_205] : memref<1x64x128xf32, #tpu.memory_space<vmem>>, vector<1x64x128xf32>
    %328 = vector.shape_cast %327 : vector<1x64x128xf32> to vector<64x128xf32>
    %329 = vector.shape_cast %326 : vector<64x128xf32> to vector<1x64x128xf32>
    tpu.vector_store %arg17[%c0_203, %c0_204, %c0_205], %329 {strides = array<i32>} : memref<1x64x128xf32, #tpu.memory_space<vmem>>, vector<1x64x128xf32>,
    return
  }
  func.func @transform_0(%arg0: i32) -> (i32, i32, i32) {
    %c0_i32 = arith.constant 0 : i32
    %c0_i32_0 = arith.constant 0 : i32
    %c0_i32_1 = arith.constant 0 : i32
    return %arg0, %c0_i32, %c0_i32_0 : i32, i32, i32
  }
  func.func @transform_1(%arg0: i32) -> (i32, i32) {
    %c0_i32 = arith.constant 0 : i32
    %c0_i32_0 = arith.constant 0 : i32
    %c0_i32_1 = arith.constant 0 : i32
    return %c0_i32, %c0_i32_0 : i32, i32
  }
  func.func @transform_2(%arg0: i32) -> (i32, i32) {
    %c0_i32 = arith.constant 0 : i32
    %c0_i32_0 = arith.constant 0 : i32
    %c0_i32_1 = arith.constant 0 : i32
    return %c0_i32, %c0_i32_0 : i32, i32
  }
  func.func @transform_3(%arg0: i32) -> (i32, i32) {
    %c0_i32 = arith.constant 0 : i32
    %c0_i32_0 = arith.constant 0 : i32
    %c0_i32_1 = arith.constant 0 : i32
    return %c0_i32, %c0_i32_0 : i32, i32
  }
  func.func @transform_4(%arg0: i32) -> (i32, i32, i32) {
    %c0_i32 = arith.constant 0 : i32
    %c0_i32_0 = arith.constant 0 : i32
    %c0_i32_1 = arith.constant 0 : i32
    %c0_i32_2 = arith.constant 0 : i32
    return %c0_i32, %c0_i32_0, %c0_i32_1 : i32, i32, i32
  }
  func.func @transform_5(%arg0: i32) -> (i32, i32) {
    %c0_i32 = arith.constant 0 : i32
    %c0_i32_0 = arith.constant 0 : i32
    %c0_i32_1 = arith.constant 0 : i32
    return %c0_i32, %c0_i32_0 : i32, i32
  }
  func.func @transform_6(%arg0: i32) -> (i32, i32) {
    %c0_i32 = arith.constant 0 : i32
    %c0_i32_0 = arith.constant 0 : i32
    %c0_i32_1 = arith.constant 0 : i32
    return %c0_i32, %c0_i32_0 : i32, i32
  }
  func.func @transform_7(%arg0: i32) -> (i32, i32) {
    %c0_i32 = arith.constant 0 : i32
    %c0_i32_0 = arith.constant 0 : i32
    %c0_i32_1 = arith.constant 0 : i32
    return %c0_i32, %c0_i32_0 : i32, i32
  }
  func.func @transform_8(%arg0: i32) -> (i32, i32) {
    %c0_i32 = arith.constant 0 : i32
    %c0_i32_0 = arith.constant 0 : i32
    %c0_i32_1 = arith.constant 0 : i32
    return %c0_i32, %c0_i32_0 : i32, i32
  }
  func.func @transform_9(%arg0: i32) -> (i32, i32) {
    %c0_i32 = arith.constant 0 : i32
    %c0_i32_0 = arith.constant 0 : i32
    %c0_i32_1 = arith.constant 0 : i32
    return %c0_i32, %c0_i32_0 : i32, i32
  }
  func.func @transform_10(%arg0: i32) -> (i32, i32) {
    %c0_i32 = arith.constant 0 : i32
    %c0_i32_0 = arith.constant 0 : i32
    %c0_i32_1 = arith.constant 0 : i32
    return %c0_i32, %c0_i32_0 : i32, i32
  }
  func.func @transform_11(%arg0: i32) -> (i32, i32) {
    %c0_i32 = arith.constant 0 : i32
    %c0_i32_0 = arith.constant 0 : i32
    %c0_i32_1 = arith.constant 0 : i32
    return %c0_i32, %c0_i32_0 : i32, i32
  }
  func.func @transform_12(%arg0: i32) -> (i32, i32) {
    %c0_i32 = arith.constant 0 : i32
    %c0_i32_0 = arith.constant 0 : i32
    %c0_i32_1 = arith.constant 0 : i32
    return %c0_i32, %c0_i32_0 : i32, i32
  }
  func.func @transform_13(%arg0: i32) -> (i32, i32) {
    %c0_i32 = arith.constant 0 : i32
    %c0_i32_0 = arith.constant 0 : i32
    %c0_i32_1 = arith.constant 0 : i32
    return %c0_i32, %c0_i32_0 : i32, i32
  }
  func.func @transform_14(%arg0: i32) -> (i32, i32) {
    %c0_i32 = arith.constant 0 : i32
    %c0_i32_0 = arith.constant 0 : i32
    %c0_i32_1 = arith.constant 0 : i32
    return %c0_i32, %c0_i32_0 : i32, i32
  }
  func.func @transform_15(%arg0: i32) -> (i32, i32) {
    %c0_i32 = arith.constant 0 : i32
    %c0_i32_0 = arith.constant 0 : i32
    %c0_i32_1 = arith.constant 0 : i32
    return %c0_i32, %c0_i32_0 : i32, i32
  }
  func.func @transform_16(%arg0: i32) -> (i32, i32, i32) {
    %c0_i32 = arith.constant 0 : i32
    %c0_i32_0 = arith.constant 0 : i32
    %c0_i32_1 = arith.constant 0 : i32
    return %arg0, %c0_i32, %c0_i32_0 : i32, i32, i32
  }
}

</mosaic_0001>

<llo_original>
// kernel: tile.38
$region0: #{tile.38}
  #allocation2 [shape = 's32[1]{0}', space=sflag, size = 0x4, scoped, tag = 'scoped memory for tile.38']
  %s0 = inlined_call_operand.hbm [shape: f32[16], index: 0, kind: input, shape index: {}]
  %s1 = inlined_call_operand.vmem [shape: f32[8,16], index: 1, kind: output, shape index: {}]
  $region1: #{tile.38} parent=0
    #allocation0 [shape = 'u8[512]{0}', space=vmem, size = 0x400, scoped, tag = 'operand span for operand 0']
    #allocation1 [shape = 's32[1]{0}', space=sflag, size = 0x4, scoped, tag = 'scoped memory for tile.38']
    %2 = vsyncpa [#allocation1], 0
    // Predicated region
    $region2: #{tile.38} parent=1 // pred_check
      _
    $region3: #{tile.38} parent=1 // pred_check_branch
      %4 = sbr.rel (0) target = $region5
    $region4: #{tile.38} parent=1 // pred_region
      %6 = vsyncadd [#allocation1], 0
      %s8 = sshll.u32 %s0, 4
      %s9 = int_to_ptr.hbm [resolvable:$true] %s8
      %s10 = sshll.u32 [#allocation0], 4
      %s11 = int_to_ptr.vmem [resolvable:$true] %s10
      %13 = dma.hbm_to_vmem [thread:$0]  %s9, 16, %s11, [#allocation1]
    $region5: #{tile.38} parent=1 // pred_fallthru
      _
    // Predicated region
    $region6: #{tile.38} parent=1 // pred_check
      _
    $region7: #{tile.38} parent=1 // pred_check_branch
      %15 = sbr.rel (0) target = $region9
    $region8: #{tile.38} parent=1 // pred_region
      %17 = dma.done [#allocation1], 16
    $region9: #{tile.38} parent=1 // pred_fallthru
      _
    %v18 = vld [vmem:[#allocation0] ss:$0 sm:$0xff]
    %19 = vst [vmem:[%s1] sm:$0xff] %v18
    %20 = vsyncpa [#allocation1], 1

// kernel: tile.39
$region0: #{tile.39}
  %s0 = inlined_call_operand.vmem [shape: f32[8,16], index: 0, kind: input, shape index: {}]
  %s1 = inlined_call_operand.vmem [shape: f32[1,128], index: 1, kind: output, shape index: {}]
  $region1: #{tile.39} parent=0
    #allocation0 [shape = 'u8[4096]{0}', space=vmem, size = 0x1000, scoped, tag = 'scoped mem for output reshape']
    %v2 = vld [vmem:[%s0] sm:$0x1]
    %vm3 = vcmask 130048
    %4 = vst.msk [vmem:[#allocation0] sm:$0x1] %vm3, %v2
    %s5 = scalar_lea.vmem %s0, 7
    %v6 = vld [vmem:[%s5] sm:$0x1]
    %7 = vrot.lane.b32.xlu0 %v6, 112
    %v8 = vpop.permute.xlu0 %7
    %vm9 = vcmask 1048448
    %10 = vst.msk [vmem:[#allocation0] sm:$0x1] %vm9, %v8
    %s11 = scalar_lea.vmem %s0, 6
    %v12 = vld [vmem:[%s11] sm:$0x1]
    %13 = vrot.lane.b32.xlu0 %v12, 96
    %v14 = vpop.permute.xlu0 %13
    %vm15 = vcmask 917248
    %16 = vst.msk [vmem:[#allocation0] sm:$0x1] %vm15, %v14
    %s17 = scalar_lea.vmem %s0, 5
    %v18 = vld [vmem:[%s17] sm:$0x1]
    %19 = vrot.lane.b32.xlu0 %v18, 80
    %v20 = vpop.permute.xlu0 %19
    %vm21 = vcmask 786048
    %22 = vst.msk [vmem:[#allocation0] sm:$0x1] %vm21, %v20
    %s23 = scalar_lea.vmem %s0, 4
    %v24 = vld [vmem:[%s23] sm:$0x1]
    %25 = vrot.lane.b32.xlu0 %v24, 64
    %v26 = vpop.permute.xlu0 %25
    %vm27 = vcmask 654848
    %28 = vst.msk [vmem:[#allocation0] sm:$0x1] %vm27, %v26
    %s29 = scalar_lea.vmem %s0, 3
    %v30 = vld [vmem:[%s29] sm:$0x1]
    %31 = vrot.lane.b32.xlu0 %v30, 48
    %v32 = vpop.permute.xlu0 %31
    %vm33 = vcmask 523648
    %34 = vst.msk [vmem:[#allocation0] sm:$0x1] %vm33, %v32
    %s35 = scalar_lea.vmem %s0, 2
    %v36 = vld [vmem:[%s35] sm:$0x1]
    %37 = vrot.lane.b32.xlu0 %v36, 32
    %v38 = vpop.permute.xlu0 %37
    %vm39 = vcmask 392448
    %40 = vst.msk [vmem:[#allocation0] sm:$0x1] %vm39, %v38
    %s41 = scalar_lea.vmem %s0, 1
    %v42 = vld [vmem:[%s41] sm:$0x1]
    %43 = vrot.lane.b32.xlu0 %v42, 16
    %v44 = vpop.permute.xlu0 %43
    %vm45 = vcmask 261248
    %46 = vst.msk [vmem:[#allocation0] sm:$0x1] %vm45, %v44
    %s48 = ssub.s32 2, 1
    %v49 = vld [vmem:[#allocation0] sm:%s48]
    %s51 = ssub.s32 2, 1
    %52 = vst [vmem:[%s1] sm:%s51] %v49

// kernel: amb_conv_forward.1
$region0: #{amb_conv_forward.1}
  #allocation0 [shape = 'u32[]', space=smem, size = 0x4, offset = 0x4, fixed_abs, tag = 'smem constant byte address 0x4 - core index']
  #allocation1 [shape = 'u32[72,128]{1,0:T(1,128)}', space=vmem, size = 0x9000, scoped, tag = 'internal scratch']
  #allocation2 [shape = 'f32[14,14,128]{2,1,0:T(8,128)}', space=vmem, size = 0x1c000, scoped, tag = 'scratch operand']
  %s0 = inlined_call_operand.vmem [shape: f32[2,64,32], index: 0, kind: input, shape index: {}]
  %s1 = inlined_call_operand.vmem [shape: f32[32,128], index: 1, kind: input, shape index: {}]
  %s2 = inlined_call_operand.vmem [shape: f32[1,128], index: 2, kind: input, shape index: {}]
  %s3 = inlined_call_operand.vmem [shape: f32[1,128], index: 3, kind: input, shape index: {}]
  %s4 = inlined_call_operand.vmem [shape: f32[18,128,128], index: 4, kind: input, shape index: {}]
  %s5 = inlined_call_operand.vmem [shape: f32[1,128], index: 5, kind: input, shape index: {}]
  %s6 = inlined_call_operand.vmem [shape: f32[1,128], index: 6, kind: input, shape index: {}]
  %s7 = inlined_call_operand.vmem [shape: f32[128,16], index: 7, kind: input, shape index: {}]
  %s8 = inlined_call_operand.vmem [shape: f32[16,128], index: 8, kind: input, shape index: {}]
  %s9 = inlined_call_operand.vmem [shape: f32[16,4], index: 9, kind: input, shape index: {}]
  %s10 = inlined_call_operand.vmem [shape: f32[1,4], index: 10, kind: input, shape index: {}]
  %s11 = inlined_call_operand.vmem [shape: f32[4,16], index: 11, kind: input, shape index: {}]
  %s12 = inlined_call_operand.vmem [shape: f32[1,16], index: 12, kind: input, shape index: {}]
  %s13 = inlined_call_operand.vmem [shape: f32[128,128], index: 13, kind: input, shape index: {}]
  %s14 = inlined_call_operand.vmem [shape: f32[1,128], index: 14, kind: input, shape index: {}]
  %s15 = inlined_call_operand.vmem [shape: f32[1,128], index: 15, kind: input, shape index: {}]
  %s16 = inlined_call_operand.vmem [shape: f32[2,64,128], index: 16, kind: output, shape index: {}]
  %s17 = sld [smem:[#allocation0]]
  $region97: #{amb_conv_forward.1} parent=0
    _
  %s19 = ssub.s32 1, %s17
  %s20 = scalar_select 0, %s19, %s17
  loop: start=0, step=1, limit=4
  $region2: #{amb_conv_forward.1} parent=0 // loop_pre_header
    _
  $region3: #{amb_conv_forward.1} parent=0 // loop_header
    %s22 = sphi 0, %s26
    %p23 = scmp.ge.s32.totalorder %s22, 4
    %s32 = sphi 0, %s34
    %s35 = sphi 0, %s32
    %s36 = sphi 0, %s35
    %s52 = sphi 0, %s36
    %s56 = sphi 0, %s56
    %s58 = sphi 0, %s56
    %s59 = sphi 0, %s58
    %s73 = sphi 0, %s59
    %s77 = sphi 0, %s77
    %s79 = sphi 0, %s77
    %s80 = sphi 0, %s79
    %s94 = sphi 0, %s80
    %s98 = sphi 0, %s98
    %s100 = sphi 0, %s98
    %s101 = sphi 0, %s100
    %s115 = sphi 0, %s101
    %s119 = sphi 0, %s119
    %s121 = sphi 0, %s119
    %s122 = sphi 0, %s121
    %s136 = sphi 0, %s122
    %s140 = sphi 0, %s140
    %s142 = sphi 0, %s140
    %s143 = sphi 0, %s142
    %s157 = sphi 0, %s143
    %s161 = sphi 0, %s161
    %s163 = sphi 0, %s161
    %s164 = sphi 0, %s163
    %s178 = sphi 0, %s164
    %s182 = sphi 0, %s182
    %s184 = sphi 0, %s182
    %s185 = sphi 0, %s184
    %s199 = sphi 0, %s185
    %s203 = sphi 0, %s203
    %s205 = sphi 0, %s203
    %s206 = sphi 0, %s205
    %s220 = sphi 0, %s206
    %s224 = sphi 0, %s224
    %s226 = sphi 0, %s224
    %s227 = sphi 0, %s226
    %s241 = sphi 0, %s227
    %s245 = sphi 0, %s245
    %s247 = sphi 0, %s245
    %s248 = sphi 0, %s247
    %s262 = sphi 0, %s248
    %s266 = sphi 0, %s266
    %s268 = sphi 0, %s266
    %s269 = sphi 0, %s268
    %s283 = sphi 0, %s269
    %s287 = sphi 0, %s287
    %s289 = sphi 0, %s287
    %s290 = sphi 0, %s289
    %s304 = sphi 0, %s290
    %s308 = sphi 0, %s308
    %s310 = sphi 0, %s308
    %s311 = sphi 0, %s310
    %s325 = sphi 0, %s311
    %s329 = sphi 0, %s329
    %s331 = sphi 0, %s329
    %s332 = sphi 0, %s331
    %s346 = sphi 0, %s332
    %s350 = sphi 0, %s350
    %s352 = sphi 0, %s350
    %s353 = sphi 0, %s352
    %s367 = sphi 0, %s353
    %s373 = sphi 0, %s375
    %s376 = sphi 0, %s373
    %s377 = sphi 0, %s376
    %s393 = sphi 0, %s377
  $region4: #{amb_conv_forward.1} parent=0 // loop_header_branch
    %25 = sbr.rel (%p23) target = $region8
  $region5: #{amb_conv_forward.1} parent=0 // loop_body
    %s27 = ssub.s32 %s22, 1
    %s28 = ssub.s32 %s22, 2
    %s29 = sadd.s32 %s22, 1
    %s30 = ssub.s32 %s22, %s29
    %p31 = scmp.eq.s32.totalorder %s30, 0
    %s33 = sadd.s32 %s32, 1
    %s34 = scalar_select %p31, %s32, %s33
    %p37 = pneg %p31
    %p38 = scmp.eq.s32.totalorder %s22, 1
    %p39 = por %p37, %p38
    %p40 = scmp.ne.s32.totalorder %s32, %s35
    %p41 = scmp.eq.s32.totalorder %s22, 0
    %p42 = por %p40, %p41
    %p43 = scmp.ne.s32.totalorder %s32, %s35
    %p44 = scmp.eq.s32.totalorder %s27, 1
    %p45 = por %p43, %p44
    %p46 = scmp.ne.s32.totalorder %s35, %s36
    %p47 = scmp.eq.s32.totalorder %s27, 0
    %p48 = por %p46, %p47
    %p49 = scmp.ne.s32.totalorder %s35, %s36
    %p50 = scmp.eq.s32.totalorder %s28, 1
    %p51 = por %p49, %p50
    %p53 = scmp.ne.s32.totalorder %s36, %s52
    %p54 = scmp.eq.s32.totalorder %s28, 0
    %p55 = por %p53, %p54
    %s57 = sadd.s32 %s56, 1
    %p60 = scmp.eq.s32.totalorder %s22, 1
    %p61 = scmp.ne.s32.totalorder %s56, %s58
    %p62 = scmp.eq.s32.totalorder %s22, 0
    %p63 = por %p61, %p62
    %p64 = scmp.ne.s32.totalorder %s56, %s58
    %p65 = scmp.eq.s32.totalorder %s27, 1
    %p66 = por %p64, %p65
    %p67 = scmp.ne.s32.totalorder %s58, %s59
    %p68 = scmp.eq.s32.totalorder %s27, 0
    %p69 = por %p67, %p68
    %p70 = scmp.ne.s32.totalorder %s58, %s59
    %p71 = scmp.eq.s32.totalorder %s28, 1
    %p72 = por %p70, %p71
    %p74 = scmp.ne.s32.totalorder %s59, %s73
    %p75 = scmp.eq.s32.totalorder %s28, 0
    %p76 = por %p74, %p75
    %s78 = sadd.s32 %s77, 1
    %p81 = scmp.eq.s32.totalorder %s22, 1
    %p82 = scmp.ne.s32.totalorder %s77, %s79
    %p83 = scmp.eq.s32.totalorder %s22, 0
    %p84 = por %p82, %p83
    %p85 = scmp.ne.s32.totalorder %s77, %s79
    %p86 = scmp.eq.s32.totalorder %s27, 1
    %p87 = por %p85, %p86
    %p88 = scmp.ne.s32.totalorder %s79, %s80
    %p89 = scmp.eq.s32.totalorder %s27, 0
    %p90 = por %p88, %p89
    %p91 = scmp.ne.s32.totalorder %s79, %s80
    %p92 = scmp.eq.s32.totalorder %s28, 1
    %p93 = por %p91, %p92
    %p95 = scmp.ne.s32.totalorder %s80, %s94
    %p96 = scmp.eq.s32.totalorder %s28, 0
    %p97 = por %p95, %p96
    %s99 = sadd.s32 %s98, 1
    %p102 = scmp.eq.s32.totalorder %s22, 1
    %p103 = scmp.ne.s32.totalorder %s98, %s100
    %p104 = scmp.eq.s32.totalorder %s22, 0
    %p105 = por %p103, %p104
    %p106 = scmp.ne.s32.totalorder %s98, %s100
    %p107 = scmp.eq.s32.totalorder %s27, 1
    %p108 = por %p106, %p107
    %p109 = scmp.ne.s32.totalorder %s100, %s101
    %p110 = scmp.eq.s32.totalorder %s27, 0
    %p111 = por %p109, %p110
    %p112 = scmp.ne.s32.totalorder %s100, %s101
    %p113 = scmp.eq.s32.totalorder %s28, 1
    %p114 = por %p112, %p113
    %p116 = scmp.ne.s32.totalorder %s101, %s115
    %p117 = scmp.eq.s32.totalorder %s28, 0
    %p118 = por %p116, %p117
    %s120 = sadd.s32 %s119, 1
    %p123 = scmp.eq.s32.totalorder %s22, 1
    %p124 = scmp.ne.s32.totalorder %s119, %s121
    %p125 = scmp.eq.s32.totalorder %s22, 0
    %p126 = por %p124, %p125
    %p127 = scmp.ne.s32.totalorder %s119, %s121
    %p128 = scmp.eq.s32.totalorder %s27, 1
    %p129 = por %p127, %p128
    %p130 = scmp.ne.s32.totalorder %s121, %s122
    %p131 = scmp.eq.s32.totalorder %s27, 0
    %p132 = por %p130, %p131
    %p133 = scmp.ne.s32.totalorder %s121, %s122
    %p134 = scmp.eq.s32.totalorder %s28, 1
    %p135 = por %p133, %p134
    %p137 = scmp.ne.s32.totalorder %s122, %s136
    %p138 = scmp.eq.s32.totalorder %s28, 0
    %p139 = por %p137, %p138
    %s141 = sadd.s32 %s140, 1
    %p144 = scmp.eq.s32.totalorder %s22, 1
    %p145 = scmp.ne.s32.totalorder %s140, %s142
    %p146 = scmp.eq.s32.totalorder %s22, 0
    %p147 = por %p145, %p146
    %p148 = scmp.ne.s32.totalorder %s140, %s142
    %p149 = scmp.eq.s32.totalorder %s27, 1
    %p150 = por %p148, %p149
    %p151 = scmp.ne.s32.totalorder %s142, %s143
    %p152 = scmp.eq.s32.totalorder %s27, 0
    %p153 = por %p151, %p152
    %p154 = scmp.ne.s32.totalorder %s142, %s143
    %p155 = scmp.eq.s32.totalorder %s28, 1
    %p156 = por %p154, %p155
    %p158 = scmp.ne.s32.totalorder %s143, %s157
    %p159 = scmp.eq.s32.totalorder %s28, 0
    %p160 = por %p158, %p159
    %s162 = sadd.s32 %s161, 1
    %p165 = scmp.eq.s32.totalorder %s22, 1
    %p166 = scmp.ne.s32.totalorder %s161, %s163
    %p167 = scmp.eq.s32.totalorder %s22, 0
    %p168 = por %p166, %p167
    %p169 = scmp.ne.s32.totalorder %s161, %s163
    %p170 = scmp.eq.s32.totalorder %s27, 1
    %p171 = por %p169, %p170
    %p172 = scmp.ne.s32.totalorder %s163, %s164
    %p173 = scmp.eq.s32.totalorder %s27, 0
    %p174 = por %p172, %p173
    %p175 = scmp.ne.s32.totalorder %s163, %s164
    %p176 = scmp.eq.s32.totalorder %s28, 1
    %p177 = por %p175, %p176
    %p179 = scmp.ne.s32.totalorder %s164, %s178
    %p180 = scmp.eq.s32.totalorder %s28, 0
    %p181 = por %p179, %p180
    %s183 = sadd.s32 %s182, 1
    %p186 = scmp.eq.s32.totalorder %s22, 1
    %p187 = scmp.ne.s32.totalorder %s182, %s184
    %p188 = scmp.eq.s32.totalorder %s22, 0
    %p189 = por %p187, %p188
    %p190 = scmp.ne.s32.totalorder %s182, %s184
    %p191 = scmp.eq.s32.totalorder %s27, 1
    %p192 = por %p190, %p191
    %p193 = scmp.ne.s32.totalorder %s184, %s185
    %p194 = scmp.eq.s32.totalorder %s27, 0
    %p195 = por %p193, %p194
    %p196 = scmp.ne.s32.totalorder %s184, %s185
    %p197 = scmp.eq.s32.totalorder %s28, 1
    %p198 = por %p196, %p197
    %p200 = scmp.ne.s32.totalorder %s185, %s199
    %p201 = scmp.eq.s32.totalorder %s28, 0
    %p202 = por %p200, %p201
    %s204 = sadd.s32 %s203, 1
    %p207 = scmp.eq.s32.totalorder %s22, 1
    %p208 = scmp.ne.s32.totalorder %s203, %s205
    %p209 = scmp.eq.s32.totalorder %s22, 0
    %p210 = por %p208, %p209
    %p211 = scmp.ne.s32.totalorder %s203, %s205
    %p212 = scmp.eq.s32.totalorder %s27, 1
    %p213 = por %p211, %p212
    %p214 = scmp.ne.s32.totalorder %s205, %s206
    %p215 = scmp.eq.s32.totalorder %s27, 0
    %p216 = por %p214, %p215
    %p217 = scmp.ne.s32.totalorder %s205, %s206
    %p218 = scmp.eq.s32.totalorder %s28, 1
    %p219 = por %p217, %p218
    %p221 = scmp.ne.s32.totalorder %s206, %s220
    %p222 = scmp.eq.s32.totalorder %s28, 0
    %p223 = por %p221, %p222
    %s225 = sadd.s32 %s224, 1
    %p228 = scmp.eq.s32.totalorder %s22, 1
    %p229 = scmp.ne.s32.totalorder %s224, %s226
    %p230 = scmp.eq.s32.totalorder %s22, 0
    %p231 = por %p229, %p230
    %p232 = scmp.ne.s32.totalorder %s224, %s226
    %p233 = scmp.eq.s32.totalorder %s27, 1
    %p234 = por %p232, %p233
    %p235 = scmp.ne.s32.totalorder %s226, %s227
    %p236 = scmp.eq.s32.totalorder %s27, 0
    %p237 = por %p235, %p236
    %p238 = scmp.ne.s32.totalorder %s226, %s227
    %p239 = scmp.eq.s32.totalorder %s28, 1
    %p240 = por %p238, %p239
    %p242 = scmp.ne.s32.totalorder %s227, %s241
    %p243 = scmp.eq.s32.totalorder %s28, 0
    %p244 = por %p242, %p243
    %s246 = sadd.s32 %s245, 1
    %p249 = scmp.eq.s32.totalorder %s22, 1
    %p250 = scmp.ne.s32.totalorder %s245, %s247
    %p251 = scmp.eq.s32.totalorder %s22, 0
    %p252 = por %p250, %p251
    %p253 = scmp.ne.s32.totalorder %s245, %s247
    %p254 = scmp.eq.s32.totalorder %s27, 1
    %p255 = por %p253, %p254
    %p256 = scmp.ne.s32.totalorder %s247, %s248
    %p257 = scmp.eq.s32.totalorder %s27, 0
    %p258 = por %p256, %p257
    %p259 = scmp.ne.s32.totalorder %s247, %s248
    %p260 = scmp.eq.s32.totalorder %s28, 1
    %p261 = por %p259, %p260
    %p263 = scmp.ne.s32.totalorder %s248, %s262
    %p264 = scmp.eq.s32.totalorder %s28, 0
    %p265 = por %p263, %p264
    %s267 = sadd.s32 %s266, 1
    %p270 = scmp.eq.s32.totalorder %s22, 1
    %p271 = scmp.ne.s32.totalorder %s266, %s268
    %p272 = scmp.eq.s32.totalorder %s22, 0
    %p273 = por %p271, %p272
    %p274 = scmp.ne.s32.totalorder %s266, %s268
    %p275 = scmp.eq.s32.totalorder %s27, 1
    %p276 = por %p274, %p275
    %p277 = scmp.ne.s32.totalorder %s268, %s269
    %p278 = scmp.eq.s32.totalorder %s27, 0
    %p279 = por %p277, %p278
    %p280 = scmp.ne.s32.totalorder %s268, %s269
    %p281 = scmp.eq.s32.totalorder %s28, 1
    %p282 = por %p280, %p281
    %p284 = scmp.ne.s32.totalorder %s269, %s283
    %p285 = scmp.eq.s32.totalorder %s28, 0
    %p286 = por %p284, %p285
    %s288 = sadd.s32 %s287, 1
    %p291 = scmp.eq.s32.totalorder %s22, 1
    %p292 = scmp.ne.s32.totalorder %s287, %s289
    %p293 = scmp.eq.s32.totalorder %s22, 0
    %p294 = por %p292, %p293
    %p295 = scmp.ne.s32.totalorder %s287, %s289
    %p296 = scmp.eq.s32.totalorder %s27, 1
    %p297 = por %p295, %p296
    %p298 = scmp.ne.s32.totalorder %s289, %s290
    %p299 = scmp.eq.s32.totalorder %s27, 0
    %p300 = por %p298, %p299
    %p301 = scmp.ne.s32.totalorder %s289, %s290
    %p302 = scmp.eq.s32.totalorder %s28, 1
    %p303 = por %p301, %p302
    %p305 = scmp.ne.s32.totalorder %s290, %s304
    %p306 = scmp.eq.s32.totalorder %s28, 0
    %p307 = por %p305, %p306
    %s309 = sadd.s32 %s308, 1
    %p312 = scmp.eq.s32.totalorder %s22, 1
    %p313 = scmp.ne.s32.totalorder %s308, %s310
    %p314 = scmp.eq.s32.totalorder %s22, 0
    %p315 = por %p313, %p314
    %p316 = scmp.ne.s32.totalorder %s308, %s310
    %p317 = scmp.eq.s32.totalorder %s27, 1
    %p318 = por %p316, %p317
    %p319 = scmp.ne.s32.totalorder %s310, %s311
    %p320 = scmp.eq.s32.totalorder %s27, 0
    %p321 = por %p319, %p320
    %p322 = scmp.ne.s32.totalorder %s310, %s311
    %p323 = scmp.eq.s32.totalorder %s28, 1
    %p324 = por %p322, %p323
    %p326 = scmp.ne.s32.totalorder %s311, %s325
    %p327 = scmp.eq.s32.totalorder %s28, 0
    %p328 = por %p326, %p327
    %s330 = sadd.s32 %s329, 1
    %p333 = scmp.eq.s32.totalorder %s22, 1
    %p334 = scmp.ne.s32.totalorder %s329, %s331
    %p335 = scmp.eq.s32.totalorder %s22, 0
    %p336 = por %p334, %p335
    %p337 = scmp.ne.s32.totalorder %s329, %s331
    %p338 = scmp.eq.s32.totalorder %s27, 1
    %p339 = por %p337, %p338
    %p340 = scmp.ne.s32.totalorder %s331, %s332
    %p341 = scmp.eq.s32.totalorder %s27, 0
    %p342 = por %p340, %p341
    %p343 = scmp.ne.s32.totalorder %s331, %s332
    %p344 = scmp.eq.s32.totalorder %s28, 1
    %p345 = por %p343, %p344
    %p347 = scmp.ne.s32.totalorder %s332, %s346
    %p348 = scmp.eq.s32.totalorder %s28, 0
    %p349 = por %p347, %p348
    %s351 = sadd.s32 %s350, 1
    %p354 = scmp.eq.s32.totalorder %s22, 1
    %p355 = scmp.ne.s32.totalorder %s350, %s352
    %p356 = scmp.eq.s32.totalorder %s22, 0
    %p357 = por %p355, %p356
    %p358 = scmp.ne.s32.totalorder %s350, %s352
    %p359 = scmp.eq.s32.totalorder %s27, 1
    %p360 = por %p358, %p359
    %p361 = scmp.ne.s32.totalorder %s352, %s353
    %p362 = scmp.eq.s32.totalorder %s27, 0
    %p363 = por %p361, %p362
    %p364 = scmp.ne.s32.totalorder %s352, %s353
    %p365 = scmp.eq.s32.totalorder %s28, 1
    %p366 = por %p364, %p365
    %p368 = scmp.ne.s32.totalorder %s353, %s367
    %p369 = scmp.eq.s32.totalorder %s28, 0
    %p370 = por %p368, %p369
    %s371 = ssub.s32 %s22, %s29
    %p372 = scmp.eq.s32.totalorder %s371, 0
    %s374 = sadd.s32 %s373, 1
    %s375 = scalar_select %p372, %s373, %s374
    %p378 = pneg %p372
    %p379 = scmp.eq.s32.totalorder %s22, 1
    %p380 = por %p378, %p379
    %p381 = scmp.ne.s32.totalorder %s373, %s376
    %p382 = scmp.eq.s32.totalorder %s22, 0
    %p383 = por %p381, %p382
    %p384 = scmp.ne.s32.totalorder %s373, %s376
    %p385 = scmp.eq.s32.totalorder %s27, 1
    %p386 = por %p384, %p385
    %p387 = scmp.ne.s32.totalorder %s376, %s377
    %p388 = scmp.eq.s32.totalorder %s27, 0
    %p389 = por %p387, %p388
    %p390 = scmp.ne.s32.totalorder %s376, %s377
    %p391 = scmp.eq.s32.totalorder %s28, 1
    %p392 = por %p390, %p391
    %p394 = scmp.ne.s32.totalorder %s377, %s393
    %p395 = scmp.eq.s32.totalorder %s28, 0
    %p396 = por %p394, %p395
    %p397 = scmp.le.s32.totalorder 1, %s22
    %p398 = scmp.lt.s32.totalorder %s22, 3
    %p399 = pnand %p397, %p398
    %p400 = pneg %p399
    // Predicated region
    $region9: #{amb_conv_forward.1} parent=5 // pred_check
      _
    $region10: #{amb_conv_forward.1} parent=5 // pred_check_branch
      %402 = sbr.rel (%p399) target = $region12
    $region11: #{amb_conv_forward.1} parent=5 // pred_region
      %s403 = ssub.s32 %s22, 1
      // Predicated region
      $region13: #{amb_conv_forward.1} parent=11 // pred_check
        %p404 = pneg %p69
      $region14: #{amb_conv_forward.1} parent=11 // pred_check_branch
        %406 = sbr.rel (%p404) target = $region16
      $region15: #{amb_conv_forward.1} parent=11 // pred_region
        _
      $region16: #{amb_conv_forward.1} parent=11 // pred_fallthru
        _
      // Predicated region
      $region17: #{amb_conv_forward.1} parent=11 // pred_check
        %p407 = pneg %p90
      $region18: #{amb_conv_forward.1} parent=11 // pred_check_branch
        %409 = sbr.rel (%p407) target = $region20
      $region19: #{amb_conv_forward.1} parent=11 // pred_region
        _
      $region20: #{amb_conv_forward.1} parent=11 // pred_fallthru
        _
      // Predicated region
      $region21: #{amb_conv_forward.1} parent=11 // pred_check
        %p410 = pneg %p111
      $region22: #{amb_conv_forward.1} parent=11 // pred_check_branch
        %412 = sbr.rel (%p410) target = $region24
      $region23: #{amb_conv_forward.1} parent=11 // pred_region
        _
      $region24: #{amb_conv_forward.1} parent=11 // pred_fallthru
        _
      // Predicated region
      $region25: #{amb_conv_forward.1} parent=11 // pred_check
        %p413 = pneg %p132
      $region26: #{amb_conv_forward.1} parent=11 // pred_check_branch
        %415 = sbr.rel (%p413) target = $region28
      $region27: #{amb_conv_forward.1} parent=11 // pred_region
        _
      $region28: #{amb_conv_forward.1} parent=11 // pred_fallthru
        _
      // Predicated region
      $region29: #{amb_conv_forward.1} parent=11 // pred_check
        %p416 = pneg %p153
      $region30: #{amb_conv_forward.1} parent=11 // pred_check_branch
        %418 = sbr.rel (%p416) target = $region32
      $region31: #{amb_conv_forward.1} parent=11 // pred_region
        _
      $region32: #{amb_conv_forward.1} parent=11 // pred_fallthru
        _
      // Predicated region
      $region33: #{amb_conv_forward.1} parent=11 // pred_check
        %p419 = pneg %p174
      $region34: #{amb_conv_forward.1} parent=11 // pred_check_branch
        %421 = sbr.rel (%p419) target = $region36
      $region35: #{amb_conv_forward.1} parent=11 // pred_region
        _
      $region36: #{amb_conv_forward.1} parent=11 // pred_fallthru
        _
      // Predicated region
      $region37: #{amb_conv_forward.1} parent=11 // pred_check
        %p422 = pneg %p195
      $region38: #{amb_conv_forward.1} parent=11 // pred_check_branch
        %424 = sbr.rel (%p422) target = $region40
      $region39: #{amb_conv_forward.1} parent=11 // pred_region
        _
      $region40: #{amb_conv_forward.1} parent=11 // pred_fallthru
        _
      // Predicated region
      $region41: #{amb_conv_forward.1} parent=11 // pred_check
        %p425 = pneg %p216
      $region42: #{amb_conv_forward.1} parent=11 // pred_check_branch
        %427 = sbr.rel (%p425) target = $region44
      $region43: #{amb_conv_forward.1} parent=11 // pred_region
        _
      $region44: #{amb_conv_forward.1} parent=11 // pred_fallthru
        _
      // Predicated region
      $region45: #{amb_conv_forward.1} parent=11 // pred_check
        %p428 = pneg %p237
      $region46: #{amb_conv_forward.1} parent=11 // pred_check_branch
        %430 = sbr.rel (%p428) target = $region48
      $region47: #{amb_conv_forward.1} parent=11 // pred_region
        _
      $region48: #{amb_conv_forward.1} parent=11 // pred_fallthru
        _
      // Predicated region
      $region49: #{amb_conv_forward.1} parent=11 // pred_check
        %p431 = pneg %p258
      $region50: #{amb_conv_forward.1} parent=11 // pred_check_branch
        %433 = sbr.rel (%p431) target = $region52
      $region51: #{amb_conv_forward.1} parent=11 // pred_region
        _
      $region52: #{amb_conv_forward.1} parent=11 // pred_fallthru
        _
      // Predicated region
      $region53: #{amb_conv_forward.1} parent=11 // pred_check
        %p434 = pneg %p279
      $region54: #{amb_conv_forward.1} parent=11 // pred_check_branch
        %436 = sbr.rel (%p434) target = $region56
      $region55: #{amb_conv_forward.1} parent=11 // pred_region
        _
      $region56: #{amb_conv_forward.1} parent=11 // pred_fallthru
        _
      // Predicated region
      $region57: #{amb_conv_forward.1} parent=11 // pred_check
        %p437 = pneg %p300
      $region58: #{amb_conv_forward.1} parent=11 // pred_check_branch
        %439 = sbr.rel (%p437) target = $region60
      $region59: #{amb_conv_forward.1} parent=11 // pred_region
        _
      $region60: #{amb_conv_forward.1} parent=11 // pred_fallthru
        _
      // Predicated region
      $region61: #{amb_conv_forward.1} parent=11 // pred_check
        %p440 = pneg %p321
      $region62: #{amb_conv_forward.1} parent=11 // pred_check_branch
        %442 = sbr.rel (%p440) target = $region64
      $region63: #{amb_conv_forward.1} parent=11 // pred_region
        _
      $region64: #{amb_conv_forward.1} parent=11 // pred_fallthru
        _
      // Predicated region
      $region65: #{amb_conv_forward.1} parent=11 // pred_check
        %p443 = pneg %p342
      $region66: #{amb_conv_forward.1} parent=11 // pred_check_branch
        %445 = sbr.rel (%p443) target = $region68
      $region67: #{amb_conv_forward.1} parent=11 // pred_region
        _
      $region68: #{amb_conv_forward.1} parent=11 // pred_fallthru
        _
      // Predicated region
      $region69: #{amb_conv_forward.1} parent=11 // pred_check
        %p446 = pneg %p363
      $region70: #{amb_conv_forward.1} parent=11 // pred_check_branch
        %448 = sbr.rel (%p446) target = $region72
      $region71: #{amb_conv_forward.1} parent=11 // pred_region
        _
      $region72: #{amb_conv_forward.1} parent=11 // pred_fallthru
        _
    $region12: #{amb_conv_forward.1} parent=5 // pred_fallthru
      _
    %p449 = scmp.lt.s32.totalorder %s22, 2
    // Predicated region
    $region73: #{amb_conv_forward.1} parent=5 // pred_check
      %p450 = pneg %p449
    $region74: #{amb_conv_forward.1} parent=5 // pred_check_branch
      %452 = sbr.rel (%p450) target = $region76
    $region75: #{amb_conv_forward.1} parent=5 // pred_region
      // Predicated region
      $region77: #{amb_conv_forward.1} parent=75 // pred_check
        %p453 = pneg %p42
      $region78: #{amb_conv_forward.1} parent=75 // pred_check_branch
        %455 = sbr.rel (%p453) target = $region80
      $region79: #{amb_conv_forward.1} parent=75 // pred_region
        %p456 = scmp.lt.s32.totalorder %s22, 1
        %s457 = scalar_select %p456, %s22, 1
        %s458 = smul.addr %s457, 8
        %s459 = smul.addr %s458, 8
        %s460 = scalar_lea.vmem %s0, %s459
      $region80: #{amb_conv_forward.1} parent=75 // pred_fallthru
        _
    $region76: #{amb_conv_forward.1} parent=5 // pred_fallthru
      _
    %p461 = scmp.le.s32.totalorder 1, %s22
    %p462 = scmp.lt.s32.totalorder %s22, 3
    %p463 = pnand %p461, %p462
    %p464 = pneg %p463
    // Predicated region
    $region81: #{amb_conv_forward.1} parent=5 // pred_check
      _
    $region82: #{amb_conv_forward.1} parent=5 // pred_check_branch
      %466 = sbr.rel (%p463) target = $region84
    $region83: #{amb_conv_forward.1} parent=5 // pred_region
      %s467 = ssub.s32 %s22, 1
      %p468 = scmp.lt.s32.totalorder %s27, 1
      %s469 = scalar_select %p468, %s27, 1
      %s470 = smul.addr %s469, 8
      %s471 = smul.addr %s470, 8
      %s472 = scalar_lea.vmem %s0, %s471
      %p473 = pneg %p48
      %p474 = pneg %p45
      %p475 = pneg %p69
      %p476 = pneg %p66
      %p477 = pneg %p90
      %p478 = pneg %p87
      %p479 = pneg %p111
      %p480 = pneg %p108
      %p481 = pneg %p132
      %p482 = pneg %p129
      %p483 = pneg %p153
      %p484 = pneg %p150
      %p485 = pneg %p174
      %p486 = pneg %p171
      %p487 = pneg %p195
      %p488 = pneg %p192
      %p489 = pneg %p216
      %p490 = pneg %p213
      %p491 = pneg %p237
      %p492 = pneg %p234
      %p493 = pneg %p258
      %p494 = pneg %p255
      %p495 = pneg %p279
      %p496 = pneg %p276
      %p497 = pneg %p300
      %p498 = pneg %p297
      %p499 = pneg %p321
      %p500 = pneg %p318
      %p501 = pneg %p342
      %p502 = pneg %p339
      %p503 = pneg %p363
      %p504 = pneg %p360
      %p505 = pneg %p389
      %p506 = pneg %p386
      %p507 = scmp.lt.s32.totalorder %s27, 1
      %s508 = scalar_select %p507, %s27, 1
      %s509 = smul.addr %s508, 8
      %s510 = smul.addr %s509, 8
      %s511 = scalar_lea.vmem %s16, %s510
      %p512 = scmp.lt.s32.totalorder %s27, 1
      %s513 = scalar_select %p512, %s27, 1
      %s514 = smul.addr %s513, 8
      %s515 = smul.addr %s514, 8
      %s516 = scalar_lea.vmem %s0, %s515
      %p517 = scmp.lt.s32.totalorder %s27, 1
      %s518 = scalar_select %p517, %s27, 1
      %s519 = smul.addr %s518, 8
      %s520 = smul.addr %s519, 8
      %s521 = scalar_lea.vmem %s16, %s520
      %v522 = vlaneseq
      %v523 = vand.u32 %v522, 127
      %vm524 = vcmp.lt.s32.totalorder %v523, 0
      %v525 = vsub.s32 0, %v523
      %v526 = vsel %vm524, %v525, %v523
      %v527 = vshrl.u32 %v526, 4
      %v528 = vand.u32 %v526, 15
      %v529 = vsub.s32 0, %v528
      %v530 = vsel %vm524, %v529, %v528
      %vm531 = vcmp.ne.s32.totalorder %v530, 0
      %vm532 = vcmp.lt.s32.totalorder %v530, 0
      %vm533 = vmand %vm532, %vm531
      %v534 = vadd.s32 %v530, 16
      %v535 = vsel %vm533, %v534, %v530
      %vm536 = vcmp.lt.s32.totalorder %v535, 8
      %v537 = vld [vmem:[%s516] sm:$0xff]
      %v538 = vld [vmem:[%s516 + $0x8] sm:$0xff]
      %v539 = vld [vmem:[%s516 + $0x10] sm:$0xff]
      %v540 = vld [vmem:[%s516 + $0x18] sm:$0xff]
      %v541 = vld [vmem:[%s516 + $0x20] sm:$0xff]
      %v542 = vld [vmem:[%s516 + $0x28] sm:$0xff]
      %v543 = vld [vmem:[%s516 + $0x30] sm:$0xff]
      %v544 = vld [vmem:[%s516 + $0x38] sm:$0xff]
      %v545 = vld [vmem:[%s1] sm:$0xff]
      %v546 = vld [vmem:[%s1 + $0x8] sm:$0xff]
      %v547 = vld [vmem:[%s1 + $0x10] sm:$0xff]
      %v548 = vld [vmem:[%s1 + $0x18] sm:$0xff]
      %vm549 = vcmask 261120
      %v551 = vsel %vm549, %v537, 0
      %v554 = vsel %vm549, %v538, 0
      %v557 = vsel %vm549, %v539, 0
      %v560 = vsel %vm549, %v540, 0
      %v563 = vsel %vm549, %v541, 0
      %v566 = vsel %vm549, %v542, 0
      %v569 = vsel %vm549, %v543, 0
      %v572 = vsel %vm549, %v544, 0
      %574 = vmatpush.msra.mxu0 0.0
      %575 = vmatpush.msra.mxu0 0.0
      %576 = vmatpush.msra.mxu0 0.0
      %577 = vmatpush.msra.mxu0 0.0
      %578 = vmatpush.msra.mxu0 0.0
      %579 = vmatpush.msra.mxu0 0.0
      %580 = vmatpush.msra.mxu0 0.0
      %581 = vmatpush.msra.mxu0 0.0
      %582 = vmatpush.msra.mxu0 0.0
      %583 = vmatpush.msra.mxu0 0.0
      %584 = vmatpush.msra.mxu0 0.0
      %585 = vmatpush.msra.mxu0 0.0
      %586 = vmatpush.msra.mxu0 %v548
      %587 = vmatpush.msra.mxu0 %v547
      %588 = vmatpush.msra.mxu0 %v546
      %589 = vmatpush.msra.mxu0 %v545
      %590 = vmatmul.f32.gmra.mxu0 %v551
      %v591 = vpop.f32.mrf.mxu0
      %v592 = vadd.f32 0.0, %v591
      %593 = vmatmul.f32.gmra.mxu0 %v554
      %v594 = vpop.f32.mrf.mxu0
      %v595 = vadd.f32 0.0, %v594
      %596 = vmatmul.f32.gmra.mxu0 %v557
      %v597 = vpop.f32.mrf.mxu0
      %v598 = vadd.f32 0.0, %v597
      %599 = vmatmul.f32.gmra.mxu0 %v560
      %v600 = vpop.f32.mrf.mxu0
      %v601 = vadd.f32 0.0, %v600
      %602 = vmatmul.f32.gmra.mxu0 %v563
      %v603 = vpop.f32.mrf.mxu0
      %v604 = vadd.f32 0.0, %v603
      %605 = vmatmul.f32.gmra.mxu0 %v566
      %v606 = vpop.f32.mrf.mxu0
      %v607 = vadd.f32 0.0, %v606
      %608 = vmatmul.f32.gmra.mxu0 %v569
      %v609 = vpop.f32.mrf.mxu0
      %v610 = vadd.f32 0.0, %v609
      %611 = vmatmul.f32.gmra.mxu0 %v572
      %v612 = vpop.f32.mrf.mxu0
      %v613 = vadd.f32 0.0, %v612
      %614 = vdwg.mxu0
      %v615 = vld [vmem:[%s2] sm:$0x1]
      %v616 = vld [vmem:[%s3] sm:$0x1]
      %v617 = vmul.f32 %v592, %v592
      %v618 = vmul.f32 %v595, %v595
      %v619 = vmul.f32 %v598, %v598
      %v620 = vmul.f32 %v601, %v601
      %v621 = vmul.f32 %v604, %v604
      %v622 = vmul.f32 %v607, %v607
      %v623 = vmul.f32 %v610, %v610
      %v624 = vmul.f32 %v613, %v613
      %v625 = vadd.f32 %v592, %v595
      %v626 = vadd.f32 %v625, %v598
      %v627 = vadd.f32 %v626, %v601
      %v628 = vadd.f32 %v627, %v604
      %v629 = vadd.f32 %v628, %v607
      %v630 = vadd.f32 %v629, %v610
      %v631 = vadd.f32 %v630, %v613
      %632 = vadd.xlane.f32.xlu0 %v631
      %v633 = vpop.xlane.xlu0 %632
      %v634 = vrot.slane %v633, 4
      %v635 = vadd.f32 %v633, %v634
      %v636 = vrot.slane %v635, 2
      %v637 = vadd.f32 %v635, %v636
      %v638 = vrot.slane %v637, 1
      %v639 = vadd.f32 %v637, %v638
      %s640 = vtos %v639
      %v641 = vadd.f32 %v617, %v618
      %v642 = vadd.f32 %v641, %v619
      %v643 = vadd.f32 %v642, %v620
      %v644 = vadd.f32 %v643, %v621
      %v645 = vadd.f32 %v644, %v622
      %v646 = vadd.f32 %v645, %v623
      %v647 = vadd.f32 %v646, %v624
      %648 = vadd.xlane.f32.xlu0 %v647
      %v649 = vpop.xlane.xlu0 %648
      %v650 = vrot.slane %v649, 4
      %v651 = vadd.f32 %v649, %v650
      %v652 = vrot.slane %v651, 2
      %v653 = vadd.f32 %v651, %v652
      %v654 = vrot.slane %v653, 1
      %v655 = vadd.f32 %v653, %v654
      %s656 = vtos %v655
      %v657 = vsel %vm536, 1, 0
      %vm658 = vcmp.eq.s32.totalorder %v657, 1
      %v659 = vsel %vm658, %v592, 0.0
      %v660 = vsel %vm658, %v595, 0.0
      %v661 = vsel %vm658, %v598, 0.0
      %v662 = vsel %vm658, %v601, 0.0
      %v663 = vsel %vm658, %v604, 0.0
      %v664 = vsel %vm658, %v607, 0.0
      %v665 = vsel %vm658, %v610, 0.0
      %v666 = vsel %vm658, %v613, 0.0
      %v667 = vadd.f32 %v659, %v660
      %v668 = vadd.f32 %v667, %v661
      %v669 = vadd.f32 %v668, %v662
      %v670 = vadd.f32 %v669, %v663
      %v671 = vadd.f32 %v670, %v664
      %v672 = vadd.f32 %v671, %v665
      %v673 = vadd.f32 %v672, %v666
      %674 = vadd.xlane.f32.xlu0 %v673
      %v675 = vpop.xlane.xlu0 %674
      %v676 = vrot.slane %v675, 4
      %v677 = vadd.f32 %v675, %v676
      %v678 = vrot.slane %v677, 2
      %v679 = vadd.f32 %v677, %v678
      %v680 = vrot.slane %v679, 1
      %v681 = vadd.f32 %v679, %v680
      %s682 = vtos %v681
      %v683 = vsel %vm658, %v617, 0.0
      %v684 = vsel %vm658, %v618, 0.0
      %v685 = vsel %vm658, %v619, 0.0
      %v686 = vsel %vm658, %v620, 0.0
      %v687 = vsel %vm658, %v621, 0.0
      %v688 = vsel %vm658, %v622, 0.0
      %v689 = vsel %vm658, %v623, 0.0
      %v690 = vsel %vm658, %v624, 0.0
      %v691 = vadd.f32 %v683, %v684
      %v692 = vadd.f32 %v691, %v685
      %v693 = vadd.f32 %v692, %v686
      %v694 = vadd.f32 %v693, %v687
      %v695 = vadd.f32 %v694, %v688
      %v696 = vadd.f32 %v695, %v689
      %v697 = vadd.f32 %v696, %v690
      %698 = vadd.xlane.f32.xlu0 %v697
      %v699 = vpop.xlane.xlu0 %698
      %v700 = vrot.slane %v699, 4
      %v701 = vadd.f32 %v699, %v700
      %v702 = vrot.slane %v701, 2
      %v703 = vadd.f32 %v701, %v702
      %v704 = vrot.slane %v703, 1
      %v705 = vadd.f32 %v703, %v704
      %s706 = vtos %v705
      %v707 = vrcp.pop 4096.0
      %v708 = vmul.f32 4096.0, %v707
      %v709 = vsub.f32 1.0, %v708
      %v710 = vmul.f32 %v707, %v709
      %v711 = vadd.f32 %v707, %v710
      %vm712 = vweird.f32 %v707
      %v713 = vsel %vm712, %v707, %v711
      %s714 = vtos %v713
      %s715 = smul.f32 %s682, %s714
      %s716 = ssub.f32 %s640, %s682
      %v717 = vrcp.pop 4096.0
      %v718 = vmul.f32 4096.0, %v717
      %v719 = vsub.f32 1.0, %v718
      %v720 = vmul.f32 %v717, %v719
      %v721 = vadd.f32 %v717, %v720
      %vm722 = vweird.f32 %v717
      %v723 = vsel %vm722, %v717, %v721
      %s724 = vtos %v723
      %s725 = smul.f32 %s716, %s724
      %v726 = vrcp.pop 4096.0
      %v727 = vmul.f32 4096.0, %v726
      %v728 = vsub.f32 1.0, %v727
      %v729 = vmul.f32 %v726, %v728
      %v730 = vadd.f32 %v726, %v729
      %vm731 = vweird.f32 %v726
      %v732 = vsel %vm731, %v726, %v730
      %s733 = vtos %v732
      %s734 = smul.f32 %s706, %s733
      %s735 = smul.f32 %s715, %s715
      %s736 = ssub.f32 %s734, %s735
      %s737 = smax.f32 %s736, 0.0
      %s738 = ssub.f32 %s656, %s706
      %v739 = vrcp.pop 4096.0
      %v740 = vmul.f32 4096.0, %v739
      %v741 = vsub.f32 1.0, %v740
      %v742 = vmul.f32 %v739, %v741
      %v743 = vadd.f32 %v739, %v742
      %vm744 = vweird.f32 %v739
      %v745 = vsel %vm744, %v739, %v743
      %s746 = vtos %v745
      %s747 = smul.f32 %s738, %s746
      %s748 = smul.f32 %s725, %s725
      %s749 = ssub.f32 %s747, %s748
      %s750 = smax.f32 %s749, 0.0
      %v751 = vstv %s715
      %v752 = vstv %s725
      %v753 = vsel %vm536, %v751, %v752
      %s754 = sadd.f32 %s737, 1e-05
      %v755 = vstv %s754
      %v756 = vrsqrt.pop %v755
      %v757 = vmul.f32 %v756, %v755
      %v758 = vmul.f32 %v757, %v756
      %v759 = vmul.f32 0.5, %v758
      %v760 = vsub.f32 1.5, %v759
      %v761 = vmul.f32 %v756, %v760
      %vm762 = vweird.f32 %v755
      %vm763 = vweird.f32 %v756
      %vm764 = vmor %vm762, %vm763
      %v765 = vsel %vm764, %v756, %v761
      %s766 = vtos %v765
      %s767 = sadd.f32 %s750, 1e-05
      %v768 = vstv %s767
      %v769 = vrsqrt.pop %v768
      %v770 = vmul.f32 %v769, %v768
      %v771 = vmul.f32 %v770, %v769
      %v772 = vmul.f32 0.5, %v771
      %v773 = vsub.f32 1.5, %v772
      %v774 = vmul.f32 %v769, %v773
      %vm775 = vweird.f32 %v768
      %vm776 = vweird.f32 %v769
      %vm777 = vmor %vm775, %vm776
      %v778 = vsel %vm777, %v769, %v774
      %s779 = vtos %v778
      %v780 = vstv %s766
      %v781 = vstv %s779
      %v782 = vsel %vm536, %v780, %v781
      %v783 = vsub.f32 %v592, %v753
      %v784 = vsub.f32 %v595, %v753
      %v785 = vsub.f32 %v598, %v753
      %v786 = vsub.f32 %v601, %v753
      %v787 = vsub.f32 %v604, %v753
      %v788 = vsub.f32 %v607, %v753
      %v789 = vsub.f32 %v610, %v753
      %v790 = vsub.f32 %v613, %v753
      %v791 = vmul.f32 %v783, %v782
      %v792 = vmul.f32 %v784, %v782
      %v793 = vmul.f32 %v785, %v782
      %v794 = vmul.f32 %v786, %v782
      %v795 = vmul.f32 %v787, %v782
      %v796 = vmul.f32 %v788, %v782
      %v797 = vmul.f32 %v789, %v782
      %v798 = vmul.f32 %v790, %v782
      %v800 = vperm.slane %v615, 0
      %v802 = vmul.f32 %v791, %v800
      %v803 = vmul.f32 %v792, %v800
      %v804 = vmul.f32 %v793, %v800
      %v805 = vmul.f32 %v794, %v800
      %v806 = vmul.f32 %v795, %v800
      %v807 = vmul.f32 %v796, %v800
      %v808 = vmul.f32 %v797, %v800
      %v809 = vmul.f32 %v798, %v800
      %v811 = vperm.slane %v616, 0
      %v813 = vadd.f32 %v802, %v811
      %v814 = vadd.f32 %v803, %v811
      %v815 = vadd.f32 %v804, %v811
      %v816 = vadd.f32 %v805, %v811
      %v817 = vadd.f32 %v806, %v811
      %v818 = vadd.f32 %v807, %v811
      %v819 = vadd.f32 %v808, %v811
      %v820 = vadd.f32 %v809, %v811
      %v821 = vmax.f32 %v813, 0.0
      %v822 = vmax.f32 %v814, 0.0
      %v823 = vmax.f32 %v815, 0.0
      %v824 = vmax.f32 %v816, 0.0
      %v825 = vmax.f32 %v817, 0.0
      %v826 = vmax.f32 %v818, 0.0
      %v827 = vmax.f32 %v819, 0.0
      %v828 = vmax.f32 %v820, 0.0
      %829 = vst [vmem:[#allocation2] sm:$0xff] 0.0
      %830 = vst [vmem:[#allocation2 + $0x8] sm:$0x3f] 0.0
      %831 = vst [vmem:[#allocation2 + $0x10] sm:$0xff] 0.0
      %832 = vst [vmem:[#allocation2 + $0x18] sm:$0x3f] 0.0
      %833 = vst [vmem:[#allocation2 + $0x20] sm:$0xff] 0.0
      %834 = vst [vmem:[#allocation2 + $0x28] sm:$0x3f] 0.0
      %835 = vst [vmem:[#allocation2 + $0x30] sm:$0xff] 0.0
      %836 = vst [vmem:[#allocation2 + $0x38] sm:$0x3f] 0.0
      %837 = vst [vmem:[#allocation2 + $0x40] sm:$0xff] 0.0
      %838 = vst [vmem:[#allocation2 + $0x48] sm:$0x3f] 0.0
      %839 = vst [vmem:[#allocation2 + $0x50] sm:$0xff] 0.0
      %840 = vst [vmem:[#allocation2 + $0x58] sm:$0x3f] 0.0
      %841 = vst [vmem:[#allocation2 + $0x60] sm:$0xff] 0.0
      %842 = vst [vmem:[#allocation2 + $0x68] sm:$0x3f] 0.0
      %843 = vst [vmem:[#allocation2 + $0x70] sm:$0xff] 0.0
      %844 = vst [vmem:[#allocation2 + $0x78] sm:$0x3f] 0.0
      %845 = vst [vmem:[#allocation2 + $0x80] sm:$0xff] 0.0
      %846 = vst [vmem:[#allocation2 + $0x88] sm:$0x3f] 0.0
      %847 = vst [vmem:[#allocation2 + $0x90] sm:$0xff] 0.0
      %848 = vst [vmem:[#allocation2 + $0x98] sm:$0x3f] 0.0
      %849 = vst [vmem:[#allocation2 + $0xa0] sm:$0xff] 0.0
      %850 = vst [vmem:[#allocation2 + $0xa8] sm:$0x3f] 0.0
      %851 = vst [vmem:[#allocation2 + $0xb0] sm:$0xff] 0.0
      %852 = vst [vmem:[#allocation2 + $0xb8] sm:$0x3f] 0.0
      %853 = vst [vmem:[#allocation2 + $0xc0] sm:$0xff] 0.0
      %854 = vst [vmem:[#allocation2 + $0xc8] sm:$0x3f] 0.0
      %855 = vst [vmem:[#allocation2 + $0xd0] sm:$0xff] 0.0
      %856 = vst [vmem:[#allocation2 + $0xd8] sm:$0x3f] 0.0
      %s857 = scalar_lea.vmem [#allocation2], 48
      %858 = vst [vmem:[%s857 + $0x3] sm:$0xff] %v821
      %859 = vst [vmem:[%s857 + $0x13] sm:$0xff] %v822
      %860 = vst [vmem:[%s857 + $0x23] sm:$0xff] %v823
      %861 = vst [vmem:[%s857 + $0x33] sm:$0xff] %v824
      %862 = vst [vmem:[%s857 + $0x43] sm:$0xff] %v825
      %863 = vst [vmem:[%s857 + $0x53] sm:$0xff] %v826
      %864 = vst [vmem:[%s857 + $0x63] sm:$0xff] %v827
      %865 = vst [vmem:[%s857 + $0x73] sm:$0xff] %v828
      %s866 = scalar_lea.vmem [#allocation2], 16
      %v867 = vld [vmem:[%s866 + $0x1] sm:$0xff]
      %v868 = vld [vmem:[%s866 + $0x11] sm:$0xff]
      %v869 = vld [vmem:[%s866 + $0x21] sm:$0xff]
      %v870 = vld [vmem:[%s866 + $0x31] sm:$0xff]
      %v871 = vld [vmem:[%s866 + $0x41] sm:$0xff]
      %v872 = vld [vmem:[%s866 + $0x51] sm:$0xff]
      %v873 = vld [vmem:[%s866 + $0x61] sm:$0xff]
      %v874 = vld [vmem:[%s866 + $0x71] sm:$0xff]
      %v875 = vld [vmem:[%s4] sm:$0xff]
      %v876 = vld [vmem:[%s4 + $0x8] sm:$0xff]
      %v877 = vld [vmem:[%s4 + $0x10] sm:$0xff]
      %v878 = vld [vmem:[%s4 + $0x18] sm:$0xff]
      %v879 = vld [vmem:[%s4 + $0x20] sm:$0xff]
      %v880 = vld [vmem:[%s4 + $0x28] sm:$0xff]
      %v881 = vld [vmem:[%s4 + $0x30] sm:$0xff]
      %v882 = vld [vmem:[%s4 + $0x38] sm:$0xff]
      %v883 = vld [vmem:[%s4 + $0x40] sm:$0xff]
      %v884 = vld [vmem:[%s4 + $0x48] sm:$0xff]
      %v885 = vld [vmem:[%s4 + $0x50] sm:$0xff]
      %v886 = vld [vmem:[%s4 + $0x58] sm:$0xff]
      %v887 = vld [vmem:[%s4 + $0x60] sm:$0xff]
      %v888 = vld [vmem:[%s4 + $0x68] sm:$0xff]
      %v889 = vld [vmem:[%s4 + $0x70] sm:$0xff]
      %v890 = vld [vmem:[%s4 + $0x78] sm:$0xff]
      %v891 = vld [vmem:[%s866 + $0x3] sm:$0xff]
      %v892 = vld [vmem:[%s866 + $0x13] sm:$0xff]
      %v893 = vld [vmem:[%s866 + $0x23] sm:$0xff]
      %v894 = vld [vmem:[%s866 + $0x33] sm:$0xff]
      %v895 = vld [vmem:[%s866 + $0x43] sm:$0xff]
      %v896 = vld [vmem:[%s866 + $0x53] sm:$0xff]
      %v897 = vld [vmem:[%s866 + $0x63] sm:$0xff]
      %v898 = vld [vmem:[%s866 + $0x73] sm:$0xff]
      %s899 = scalar_lea.vmem %s4, 128
      %v900 = vld [vmem:[%s899] sm:$0xff]
      %v901 = vld [vmem:[%s899 + $0x8] sm:$0xff]
      %v902 = vld [vmem:[%s899 + $0x10] sm:$0xff]
      %v903 = vld [vmem:[%s899 + $0x18] sm:$0xff]
      %v904 = vld [vmem:[%s899 + $0x20] sm:$0xff]
      %v905 = vld [vmem:[%s899 + $0x28] sm:$0xff]
      %v906 = vld [vmem:[%s899 + $0x30] sm:$0xff]
      %v907 = vld [vmem:[%s899 + $0x38] sm:$0xff]
      %v908 = vld [vmem:[%s899 + $0x40] sm:$0xff]
      %v909 = vld [vmem:[%s899 + $0x48] sm:$0xff]
      %v910 = vld [vmem:[%s899 + $0x50] sm:$0xff]
      %v911 = vld [vmem:[%s899 + $0x58] sm:$0xff]
      %v912 = vld [vmem:[%s899 + $0x60] sm:$0xff]
      %v913 = vld [vmem:[%s899 + $0x68] sm:$0xff]
      %v914 = vld [vmem:[%s899 + $0x70] sm:$0xff]
      %v915 = vld [vmem:[%s899 + $0x78] sm:$0xff]
      %916 = vmatpush.msra.mxu0 %v915
      %917 = vmatpush.msra.mxu0 %v914
      %918 = vmatpush.msra.mxu0 %v913
      %919 = vmatpush.msra.mxu0 %v912
      %920 = vmatpush.msra.mxu0 %v911
      %921 = vmatpush.msra.mxu0 %v910
      %922 = vmatpush.msra.mxu0 %v909
      %923 = vmatpush.msra.mxu0 %v908
      %924 = vmatpush.msra.mxu0 %v907
      %925 = vmatpush.msra.mxu0 %v906
      %926 = vmatpush.msra.mxu0 %v905
      %927 = vmatpush.msra.mxu0 %v904
      %928 = vmatpush.msra.mxu0 %v903
      %929 = vmatpush.msra.mxu0 %v902
      %930 = vmatpush.msra.mxu0 %v901
      %931 = vmatpush.msra.mxu0 %v900
      %932 = vmatmul.f32.gmra.mxu0 %v891
      %v933 = vpop.f32.mrf.mxu0
      %v934 = vadd.f32 0.0, %v933
      %935 = vmatmul.f32.gmra.mxu0 %v892
      %v936 = vpop.f32.mrf.mxu0
      %v937 = vadd.f32 0.0, %v936
      %938 = vmatmul.f32.gmra.mxu0 %v893
      %v939 = vpop.f32.mrf.mxu0
      %v940 = vadd.f32 0.0, %v939
      %941 = vmatmul.f32.gmra.mxu0 %v894
      %v942 = vpop.f32.mrf.mxu0
      %v943 = vadd.f32 0.0, %v942
      %944 = vmatmul.f32.gmra.mxu0 %v895
      %v945 = vpop.f32.mrf.mxu0
      %v946 = vadd.f32 0.0, %v945
      %947 = vmatmul.f32.gmra.mxu0 %v896
      %v948 = vpop.f32.mrf.mxu0
      %v949 = vadd.f32 0.0, %v948
      %950 = vmatmul.f32.gmra.mxu0 %v897
      %v951 = vpop.f32.mrf.mxu0
      %v952 = vadd.f32 0.0, %v951
      %953 = vmatmul.f32.gmra.mxu0 %v898
      %v954 = vpop.f32.mrf.mxu0
      %v955 = vadd.f32 0.0, %v954
      %956 = vdwg.mxu0
      %957 = vmatpush.msra.mxu0 %v890
      %958 = vmatpush.msra.mxu0 %v889
      %959 = vmatpush.msra.mxu0 %v888
      %960 = vmatpush.msra.mxu0 %v887
      %961 = vmatpush.msra.mxu0 %v886
      %962 = vmatpush.msra.mxu0 %v885
      %963 = vmatpush.msra.mxu0 %v884
      %964 = vmatpush.msra.mxu0 %v883
      %965 = vmatpush.msra.mxu0 %v882
      %966 = vmatpush.msra.mxu0 %v881
      %967 = vmatpush.msra.mxu0 %v880
      %968 = vmatpush.msra.mxu0 %v879
      %969 = vmatpush.msra.mxu0 %v878
      %970 = vmatpush.msra.mxu0 %v877
      %971 = vmatpush.msra.mxu0 %v876
      %972 = vmatpush.msra.mxu0 %v875
      %973 = vmatmul.f32.gmra.mxu0 %v867
      %v974 = vpop.f32.mrf.mxu0
      %v975 = vadd.f32 %v934, %v974
      %976 = vmatmul.f32.gmra.mxu0 %v868
      %v977 = vpop.f32.mrf.mxu0
      %v978 = vadd.f32 %v937, %v977
      %979 = vmatmul.f32.gmra.mxu0 %v869
      %v980 = vpop.f32.mrf.mxu0
      %v981 = vadd.f32 %v940, %v980
      %982 = vmatmul.f32.gmra.mxu0 %v870
      %v983 = vpop.f32.mrf.mxu0
      %v984 = vadd.f32 %v943, %v983
      %985 = vmatmul.f32.gmra.mxu0 %v871
      %v986 = vpop.f32.mrf.mxu0
      %v987 = vadd.f32 %v946, %v986
      %988 = vmatmul.f32.gmra.mxu0 %v872
      %v989 = vpop.f32.mrf.mxu0
      %v990 = vadd.f32 %v949, %v989
      %991 = vmatmul.f32.gmra.mxu0 %v873
      %v992 = vpop.f32.mrf.mxu0
      %v993 = vadd.f32 %v952, %v992
      %994 = vmatmul.f32.gmra.mxu0 %v874
      %v995 = vpop.f32.mrf.mxu0
      %v996 = vadd.f32 %v955, %v995
      %997 = vdwg.mxu0
      %v998 = vld [vmem:[%s866 + $0x5] sm:$0xff]
      %v999 = vld [vmem:[%s866 + $0x15] sm:$0xff]
      %v1000 = vld [vmem:[%s866 + $0x25] sm:$0xff]
      %v1001 = vld [vmem:[%s866 + $0x35] sm:$0xff]
      %v1002 = vld [vmem:[%s866 + $0x45] sm:$0xff]
      %v1003 = vld [vmem:[%s866 + $0x55] sm:$0xff]
      %v1004 = vld [vmem:[%s866 + $0x65] sm:$0xff]
      %v1005 = vld [vmem:[%s866 + $0x75] sm:$0xff]
      %s1006 = scalar_lea.vmem %s4, 256
      %v1007 = vld [vmem:[%s1006] sm:$0xff]
      %v1008 = vld [vmem:[%s1006 + $0x8] sm:$0xff]
      %v1009 = vld [vmem:[%s1006 + $0x10] sm:$0xff]
      %v1010 = vld [vmem:[%s1006 + $0x18] sm:$0xff]
      %v1011 = vld [vmem:[%s1006 + $0x20] sm:$0xff]
      %v1012 = vld [vmem:[%s1006 + $0x28] sm:$0xff]
      %v1013 = vld [vmem:[%s1006 + $0x30] sm:$0xff]
      %v1014 = vld [vmem:[%s1006 + $0x38] sm:$0xff]
      %v1015 = vld [vmem:[%s1006 + $0x40] sm:$0xff]
      %v1016 = vld [vmem:[%s1006 + $0x48] sm:$0xff]
      %v1017 = vld [vmem:[%s1006 + $0x50] sm:$0xff]
      %v1018 = vld [vmem:[%s1006 + $0x58] sm:$0xff]
      %v1019 = vld [vmem:[%s1006 + $0x60] sm:$0xff]
      %v1020 = vld [vmem:[%s1006 + $0x68] sm:$0xff]
      %v1021 = vld [vmem:[%s1006 + $0x70] sm:$0xff]
      %v1022 = vld [vmem:[%s1006 + $0x78] sm:$0xff]
      %1023 = vmatpush.msra.mxu0 %v1022
      %1024 = vmatpush.msra.mxu0 %v1021
      %1025 = vmatpush.msra.mxu0 %v1020
      %1026 = vmatpush.msra.mxu0 %v1019
      %1027 = vmatpush.msra.mxu0 %v1018
      %1028 = vmatpush.msra.mxu0 %v1017
      %1029 = vmatpush.msra.mxu0 %v1016
      %1030 = vmatpush.msra.mxu0 %v1015
      %1031 = vmatpush.msra.mxu0 %v1014
      %1032 = vmatpush.msra.mxu0 %v1013
      %1033 = vmatpush.msra.mxu0 %v1012
      %1034 = vmatpush.msra.mxu0 %v1011
      %1035 = vmatpush.msra.mxu0 %v1010
      %1036 = vmatpush.msra.mxu0 %v1009
      %1037 = vmatpush.msra.mxu0 %v1008
      %1038 = vmatpush.msra.mxu0 %v1007
      %1039 = vmatmul.f32.gmra.mxu0 %v998
      %v1040 = vpop.f32.mrf.mxu0
      %v1041 = vadd.f32 0.0, %v1040
      %1042 = vmatmul.f32.gmra.mxu0 %v999
      %v1043 = vpop.f32.mrf.mxu0
      %v1044 = vadd.f32 0.0, %v1043
      %1045 = vmatmul.f32.gmra.mxu0 %v1000
      %v1046 = vpop.f32.mrf.mxu0
      %v1047 = vadd.f32 0.0, %v1046
      %1048 = vmatmul.f32.gmra.mxu0 %v1001
      %v1049 = vpop.f32.mrf.mxu0
      %v1050 = vadd.f32 0.0, %v1049
      %1051 = vmatmul.f32.gmra.mxu0 %v1002
      %v1052 = vpop.f32.mrf.mxu0
      %v1053 = vadd.f32 0.0, %v1052
      %1054 = vmatmul.f32.gmra.mxu0 %v1003
      %v1055 = vpop.f32.mrf.mxu0
      %v1056 = vadd.f32 0.0, %v1055
      %1057 = vmatmul.f32.gmra.mxu0 %v1004
      %v1058 = vpop.f32.mrf.mxu0
      %v1059 = vadd.f32 0.0, %v1058
      %1060 = vmatmul.f32.gmra.mxu0 %v1005
      %v1061 = vpop.f32.mrf.mxu0
      %v1062 = vadd.f32 0.0, %v1061
      %1063 = vdwg.mxu0
      %v1064 = vadd.f32 %v975, %v1041
      %v1065 = vadd.f32 %v978, %v1044
      %v1066 = vadd.f32 %v981, %v1047
      %v1067 = vadd.f32 %v984, %v1050
      %v1068 = vadd.f32 %v987, %v1053
      %v1069 = vadd.f32 %v990, %v1056
      %v1070 = vadd.f32 %v993, %v1059
      %v1071 = vadd.f32 %v996, %v1062
      %v1072 = vld [vmem:[%s857 + $0x1] sm:$0xff]
      %v1073 = vld [vmem:[%s857 + $0x11] sm:$0xff]
      %v1074 = vld [vmem:[%s857 + $0x21] sm:$0xff]
      %v1075 = vld [vmem:[%s857 + $0x31] sm:$0xff]
      %v1076 = vld [vmem:[%s857 + $0x41] sm:$0xff]
      %v1077 = vld [vmem:[%s857 + $0x51] sm:$0xff]
      %v1078 = vld [vmem:[%s857 + $0x61] sm:$0xff]
      %v1079 = vld [vmem:[%s857 + $0x71] sm:$0xff]
      %s1080 = scalar_lea.vmem %s4, 384
      %v1081 = vld [vmem:[%s1080] sm:$0xff]
      %v1082 = vld [vmem:[%s1080 + $0x8] sm:$0xff]
      %v1083 = vld [vmem:[%s1080 + $0x10] sm:$0xff]
      %v1084 = vld [vmem:[%s1080 + $0x18] sm:$0xff]
      %v1085 = vld [vmem:[%s1080 + $0x20] sm:$0xff]
      %v1086 = vld [vmem:[%s1080 + $0x28] sm:$0xff]
      %v1087 = vld [vmem:[%s1080 + $0x30] sm:$0xff]
      %v1088 = vld [vmem:[%s1080 + $0x38] sm:$0xff]
      %v1089 = vld [vmem:[%s1080 + $0x40] sm:$0xff]
      %v1090 = vld [vmem:[%s1080 + $0x48] sm:$0xff]
      %v1091 = vld [vmem:[%s1080 + $0x50] sm:$0xff]
      %v1092 = vld [vmem:[%s1080 + $0x58] sm:$0xff]
      %v1093 = vld [vmem:[%s1080 + $0x60] sm:$0xff]
      %v1094 = vld [vmem:[%s1080 + $0x68] sm:$0xff]
      %v1095 = vld [vmem:[%s1080 + $0x70] sm:$0xff]
      %v1096 = vld [vmem:[%s1080 + $0x78] sm:$0xff]
      %1097 = vmatpush.msra.mxu0 %v1096
      %1098 = vmatpush.msra.mxu0 %v1095
      %1099 = vmatpush.msra.mxu0 %v1094
      %1100 = vmatpush.msra.mxu0 %v1093
      %1101 = vmatpush.msra.mxu0 %v1092
      %1102 = vmatpush.msra.mxu0 %v1091
      %1103 = vmatpush.msra.mxu0 %v1090
      %1104 = vmatpush.msra.mxu0 %v1089
      %1105 = vmatpush.msra.mxu0 %v1088
      %1106 = vmatpush.msra.mxu0 %v1087
      %1107 = vmatpush.msra.mxu0 %v1086
      %1108 = vmatpush.msra.mxu0 %v1085
      %1109 = vmatpush.msra.mxu0 %v1084
      %1110 = vmatpush.msra.mxu0 %v1083
      %1111 = vmatpush.msra.mxu0 %v1082
      %1112 = vmatpush.msra.mxu0 %v1081
      %1113 = vmatmul.f32.gmra.mxu0 %v1072
      %v1114 = vpop.f32.mrf.mxu0
      %v1115 = vadd.f32 0.0, %v1114
      %1116 = vmatmul.f32.gmra.mxu0 %v1073
      %v1117 = vpop.f32.mrf.mxu0
      %v1118 = vadd.f32 0.0, %v1117
      %1119 = vmatmul.f32.gmra.mxu0 %v1074
      %v1120 = vpop.f32.mrf.mxu0
      %v1121 = vadd.f32 0.0, %v1120
      %1122 = vmatmul.f32.gmra.mxu0 %v1075
      %v1123 = vpop.f32.mrf.mxu0
      %v1124 = vadd.f32 0.0, %v1123
      %1125 = vmatmul.f32.gmra.mxu0 %v1076
      %v1126 = vpop.f32.mrf.mxu0
      %v1127 = vadd.f32 0.0, %v1126
      %1128 = vmatmul.f32.gmra.mxu0 %v1077
      %v1129 = vpop.f32.mrf.mxu0
      %v1130 = vadd.f32 0.0, %v1129
      %1131 = vmatmul.f32.gmra.mxu0 %v1078
      %v1132 = vpop.f32.mrf.mxu0
      %v1133 = vadd.f32 0.0, %v1132
      %1134 = vmatmul.f32.gmra.mxu0 %v1079
      %v1135 = vpop.f32.mrf.mxu0
      %v1136 = vadd.f32 0.0, %v1135
      %1137 = vdwg.mxu0
      %v1138 = vadd.f32 %v1064, %v1115
      %v1139 = vadd.f32 %v1065, %v1118
      %v1140 = vadd.f32 %v1066, %v1121
      %v1141 = vadd.f32 %v1067, %v1124
      %v1142 = vadd.f32 %v1068, %v1127
      %v1143 = vadd.f32 %v1069, %v1130
      %v1144 = vadd.f32 %v1070, %v1133
      %v1145 = vadd.f32 %v1071, %v1136
      %v1146 = vld [vmem:[%s857 + $0x3] sm:$0xff]
      %v1147 = vld [vmem:[%s857 + $0x13] sm:$0xff]
      %v1148 = vld [vmem:[%s857 + $0x23] sm:$0xff]
      %v1149 = vld [vmem:[%s857 + $0x33] sm:$0xff]
      %v1150 = vld [vmem:[%s857 + $0x43] sm:$0xff]
      %v1151 = vld [vmem:[%s857 + $0x53] sm:$0xff]
      %v1152 = vld [vmem:[%s857 + $0x63] sm:$0xff]
      %v1153 = vld [vmem:[%s857 + $0x73] sm:$0xff]
      %s1154 = scalar_lea.vmem %s4, 512
      %v1155 = vld [vmem:[%s1154] sm:$0xff]
      %v1156 = vld [vmem:[%s1154 + $0x8] sm:$0xff]
      %v1157 = vld [vmem:[%s1154 + $0x10] sm:$0xff]
      %v1158 = vld [vmem:[%s1154 + $0x18] sm:$0xff]
      %v1159 = vld [vmem:[%s1154 + $0x20] sm:$0xff]
      %v1160 = vld [vmem:[%s1154 + $0x28] sm:$0xff]
      %v1161 = vld [vmem:[%s1154 + $0x30] sm:$0xff]
      %v1162 = vld [vmem:[%s1154 + $0x38] sm:$0xff]
      %v1163 = vld [vmem:[%s1154 + $0x40] sm:$0xff]
      %v1164 = vld [vmem:[%s1154 + $0x48] sm:$0xff]
      %v1165 = vld [vmem:[%s1154 + $0x50] sm:$0xff]
      %v1166 = vld [vmem:[%s1154 + $0x58] sm:$0xff]
      %v1167 = vld [vmem:[%s1154 + $0x60] sm:$0xff]
      %v1168 = vld [vmem:[%s1154 + $0x68] sm:$0xff]
      %v1169 = vld [vmem:[%s1154 + $0x70] sm:$0xff]
      %v1170 = vld [vmem:[%s1154 + $0x78] sm:$0xff]
      %1171 = vmatpush.msra.mxu0 %v1170
      %1172 = vmatpush.msra.mxu0 %v1169
      %1173 = vmatpush.msra.mxu0 %v1168
      %1174 = vmatpush.msra.mxu0 %v1167
      %1175 = vmatpush.msra.mxu0 %v1166
      %1176 = vmatpush.msra.mxu0 %v1165
      %1177 = vmatpush.msra.mxu0 %v1164
      %1178 = vmatpush.msra.mxu0 %v1163
      %1179 = vmatpush.msra.mxu0 %v1162
      %1180 = vmatpush.msra.mxu0 %v1161
      %1181 = vmatpush.msra.mxu0 %v1160
      %1182 = vmatpush.msra.mxu0 %v1159
      %1183 = vmatpush.msra.mxu0 %v1158
      %1184 = vmatpush.msra.mxu0 %v1157
      %1185 = vmatpush.msra.mxu0 %v1156
      %1186 = vmatpush.msra.mxu0 %v1155
      %1187 = vmatmul.f32.gmra.mxu0 %v1146
      %v1188 = vpop.f32.mrf.mxu0
      %v1189 = vadd.f32 0.0, %v1188
      %1190 = vmatmul.f32.gmra.mxu0 %v1147
      %v1191 = vpop.f32.mrf.mxu0
      %v1192 = vadd.f32 0.0, %v1191
      %1193 = vmatmul.f32.gmra.mxu0 %v1148
      %v1194 = vpop.f32.mrf.mxu0
      %v1195 = vadd.f32 0.0, %v1194
      %1196 = vmatmul.f32.gmra.mxu0 %v1149
      %v1197 = vpop.f32.mrf.mxu0
      %v1198 = vadd.f32 0.0, %v1197
      %1199 = vmatmul.f32.gmra.mxu0 %v1150
      %v1200 = vpop.f32.mrf.mxu0
      %v1201 = vadd.f32 0.0, %v1200
      %1202 = vmatmul.f32.gmra.mxu0 %v1151
      %v1203 = vpop.f32.mrf.mxu0
      %v1204 = vadd.f32 0.0, %v1203
      %1205 = vmatmul.f32.gmra.mxu0 %v1152
      %v1206 = vpop.f32.mrf.mxu0
      %v1207 = vadd.f32 0.0, %v1206
      %1208 = vmatmul.f32.gmra.mxu0 %v1153
      %v1209 = vpop.f32.mrf.mxu0
      %v1210 = vadd.f32 0.0, %v1209
      %1211 = vdwg.mxu0
      %v1212 = vadd.f32 %v1138, %v1189
      %v1213 = vadd.f32 %v1139, %v1192
      %v1214 = vadd.f32 %v1140, %v1195
      %v1215 = vadd.f32 %v1141, %v1198
      %v1216 = vadd.f32 %v1142, %v1201
      %v1217 = vadd.f32 %v1143, %v1204
      %v1218 = vadd.f32 %v1144, %v1207
      %v1219 = vadd.f32 %v1145, %v1210
      %v1220 = vld [vmem:[%s857 + $0x5] sm:$0xff]
      %v1221 = vld [vmem:[%s857 + $0x15] sm:$0xff]
      %v1222 = vld [vmem:[%s857 + $0x25] sm:$0xff]
      %v1223 = vld [vmem:[%s857 + $0x35] sm:$0xff]
      %v1224 = vld [vmem:[%s857 + $0x45] sm:$0xff]
      %v1225 = vld [vmem:[%s857 + $0x55] sm:$0xff]
      %v1226 = vld [vmem:[%s857 + $0x65] sm:$0xff]
      %v1227 = vld [vmem:[%s857 + $0x75] sm:$0xff]
      %s1228 = scalar_lea.vmem %s4, 640
      %v1229 = vld [vmem:[%s1228] sm:$0xff]
      %v1230 = vld [vmem:[%s1228 + $0x8] sm:$0xff]
      %v1231 = vld [vmem:[%s1228 + $0x10] sm:$0xff]
      %v1232 = vld [vmem:[%s1228 + $0x18] sm:$0xff]
      %v1233 = vld [vmem:[%s1228 + $0x20] sm:$0xff]
      %v1234 = vld [vmem:[%s1228 + $0x28] sm:$0xff]
      %v1235 = vld [vmem:[%s1228 + $0x30] sm:$0xff]
      %v1236 = vld [vmem:[%s1228 + $0x38] sm:$0xff]
      %v1237 = vld [vmem:[%s1228 + $0x40] sm:$0xff]
      %v1238 = vld [vmem:[%s1228 + $0x48] sm:$0xff]
      %v1239 = vld [vmem:[%s1228 + $0x50] sm:$0xff]
      %v1240 = vld [vmem:[%s1228 + $0x58] sm:$0xff]
      %v1241 = vld [vmem:[%s1228 + $0x60] sm:$0xff]
      %v1242 = vld [vmem:[%s1228 + $0x68] sm:$0xff]
      %v1243 = vld [vmem:[%s1228 + $0x70] sm:$0xff]
      %v1244 = vld [vmem:[%s1228 + $0x78] sm:$0xff]
      %1245 = vmatpush.msra.mxu0 %v1244
      %1246 = vmatpush.msra.mxu0 %v1243
      %1247 = vmatpush.msra.mxu0 %v1242
      %1248 = vmatpush.msra.mxu0 %v1241
      %1249 = vmatpush.msra.mxu0 %v1240
      %1250 = vmatpush.msra.mxu0 %v1239
      %1251 = vmatpush.msra.mxu0 %v1238
      %1252 = vmatpush.msra.mxu0 %v1237
      %1253 = vmatpush.msra.mxu0 %v1236
      %1254 = vmatpush.msra.mxu0 %v1235
      %1255 = vmatpush.msra.mxu0 %v1234
      %1256 = vmatpush.msra.mxu0 %v1233
      %1257 = vmatpush.msra.mxu0 %v1232
      %1258 = vmatpush.msra.mxu0 %v1231
      %1259 = vmatpush.msra.mxu0 %v1230
      %1260 = vmatpush.msra.mxu0 %v1229
      %1261 = vmatmul.f32.gmra.mxu0 %v1220
      %v1262 = vpop.f32.mrf.mxu0
      %v1263 = vadd.f32 0.0, %v1262
      %1264 = vmatmul.f32.gmra.mxu0 %v1221
      %v1265 = vpop.f32.mrf.mxu0
      %v1266 = vadd.f32 0.0, %v1265
      %1267 = vmatmul.f32.gmra.mxu0 %v1222
      %v1268 = vpop.f32.mrf.mxu0
      %v1269 = vadd.f32 0.0, %v1268
      %1270 = vmatmul.f32.gmra.mxu0 %v1223
      %v1271 = vpop.f32.mrf.mxu0
      %v1272 = vadd.f32 0.0, %v1271
      %1273 = vmatmul.f32.gmra.mxu0 %v1224
      %v1274 = vpop.f32.mrf.mxu0
      %v1275 = vadd.f32 0.0, %v1274
      %1276 = vmatmul.f32.gmra.mxu0 %v1225
      %v1277 = vpop.f32.mrf.mxu0
      %v1278 = vadd.f32 0.0, %v1277
      %1279 = vmatmul.f32.gmra.mxu0 %v1226
      %v1280 = vpop.f32.mrf.mxu0
      %v1281 = vadd.f32 0.0, %v1280
      %1282 = vmatmul.f32.gmra.mxu0 %v1227
      %v1283 = vpop.f32.mrf.mxu0
      %v1284 = vadd.f32 0.0, %v1283
      %1285 = vdwg.mxu0
      %v1286 = vadd.f32 %v1212, %v1263
      %v1287 = vadd.f32 %v1213, %v1266
      %v1288 = vadd.f32 %v1214, %v1269
      %v1289 = vadd.f32 %v1215, %v1272
      %v1290 = vadd.f32 %v1216, %v1275
      %v1291 = vadd.f32 %v1217, %v1278
      %v1292 = vadd.f32 %v1218, %v1281
      %v1293 = vadd.f32 %v1219, %v1284
      %s1294 = scalar_lea.vmem [#allocation2], 80
      %v1295 = vld [vmem:[%s1294 + $0x1] sm:$0xff]
      %v1296 = vld [vmem:[%s1294 + $0x11] sm:$0xff]
      %v1297 = vld [vmem:[%s1294 + $0x21] sm:$0xff]
      %v1298 = vld [vmem:[%s1294 + $0x31] sm:$0xff]
      %v1299 = vld [vmem:[%s1294 + $0x41] sm:$0xff]
      %v1300 = vld [vmem:[%s1294 + $0x51] sm:$0xff]
      %v1301 = vld [vmem:[%s1294 + $0x61] sm:$0xff]
      %v1302 = vld [vmem:[%s1294 + $0x71] sm:$0xff]
      %s1303 = scalar_lea.vmem %s4, 768
      %v1304 = vld [vmem:[%s1303] sm:$0xff]
      %v1305 = vld [vmem:[%s1303 + $0x8] sm:$0xff]
      %v1306 = vld [vmem:[%s1303 + $0x10] sm:$0xff]
      %v1307 = vld [vmem:[%s1303 + $0x18] sm:$0xff]
      %v1308 = vld [vmem:[%s1303 + $0x20] sm:$0xff]
      %v1309 = vld [vmem:[%s1303 + $0x28] sm:$0xff]
      %v1310 = vld [vmem:[%s1303 + $0x30] sm:$0xff]
      %v1311 = vld [vmem:[%s1303 + $0x38] sm:$0xff]
      %v1312 = vld [vmem:[%s1303 + $0x40] sm:$0xff]
      %v1313 = vld [vmem:[%s1303 + $0x48] sm:$0xff]
      %v1314 = vld [vmem:[%s1303 + $0x50] sm:$0xff]
      %v1315 = vld [vmem:[%s1303 + $0x58] sm:$0xff]
      %v1316 = vld [vmem:[%s1303 + $0x60] sm:$0xff]
      %v1317 = vld [vmem:[%s1303 + $0x68] sm:$0xff]
      %v1318 = vld [vmem:[%s1303 + $0x70] sm:$0xff]
      %v1319 = vld [vmem:[%s1303 + $0x78] sm:$0xff]
      %1320 = vmatpush.msra.mxu0 %v1319
      %1321 = vmatpush.msra.mxu0 %v1318
      %1322 = vmatpush.msra.mxu0 %v1317
      %1323 = vmatpush.msra.mxu0 %v1316
      %1324 = vmatpush.msra.mxu0 %v1315
      %1325 = vmatpush.msra.mxu0 %v1314
      %1326 = vmatpush.msra.mxu0 %v1313
      %1327 = vmatpush.msra.mxu0 %v1312
      %1328 = vmatpush.msra.mxu0 %v1311
      %1329 = vmatpush.msra.mxu0 %v1310
      %1330 = vmatpush.msra.mxu0 %v1309
      %1331 = vmatpush.msra.mxu0 %v1308
      %1332 = vmatpush.msra.mxu0 %v1307
      %1333 = vmatpush.msra.mxu0 %v1306
      %1334 = vmatpush.msra.mxu0 %v1305
      %1335 = vmatpush.msra.mxu0 %v1304
      %1336 = vmatmul.f32.gmra.mxu0 %v1295
      %v1337 = vpop.f32.mrf.mxu0
      %v1338 = vadd.f32 0.0, %v1337
      %1339 = vmatmul.f32.gmra.mxu0 %v1296
      %v1340 = vpop.f32.mrf.mxu0
      %v1341 = vadd.f32 0.0, %v1340
      %1342 = vmatmul.f32.gmra.mxu0 %v1297
      %v1343 = vpop.f32.mrf.mxu0
      %v1344 = vadd.f32 0.0, %v1343
      %1345 = vmatmul.f32.gmra.mxu0 %v1298
      %v1346 = vpop.f32.mrf.mxu0
      %v1347 = vadd.f32 0.0, %v1346
      %1348 = vmatmul.f32.gmra.mxu0 %v1299
      %v1349 = vpop.f32.mrf.mxu0
      %v1350 = vadd.f32 0.0, %v1349
      %1351 = vmatmul.f32.gmra.mxu0 %v1300
      %v1352 = vpop.f32.mrf.mxu0
      %v1353 = vadd.f32 0.0, %v1352
      %1354 = vmatmul.f32.gmra.mxu0 %v1301
      %v1355 = vpop.f32.mrf.mxu0
      %v1356 = vadd.f32 0.0, %v1355
      %1357 = vmatmul.f32.gmra.mxu0 %v1302
      %v1358 = vpop.f32.mrf.mxu0
      %v1359 = vadd.f32 0.0, %v1358
      %1360 = vdwg.mxu0
      %v1361 = vadd.f32 %v1286, %v1338
      %v1362 = vadd.f32 %v1287, %v1341
      %v1363 = vadd.f32 %v1288, %v1344
      %v1364 = vadd.f32 %v1289, %v1347
      %v1365 = vadd.f32 %v1290, %v1350
      %v1366 = vadd.f32 %v1291, %v1353
      %v1367 = vadd.f32 %v1292, %v1356
      %v1368 = vadd.f32 %v1293, %v1359
      %v1369 = vld [vmem:[%s1294 + $0x3] sm:$0xff]
      %v1370 = vld [vmem:[%s1294 + $0x13] sm:$0xff]
      %v1371 = vld [vmem:[%s1294 + $0x23] sm:$0xff]
      %v1372 = vld [vmem:[%s1294 + $0x33] sm:$0xff]
      %v1373 = vld [vmem:[%s1294 + $0x43] sm:$0xff]
      %v1374 = vld [vmem:[%s1294 + $0x53] sm:$0xff]
      %v1375 = vld [vmem:[%s1294 + $0x63] sm:$0xff]
      %v1376 = vld [vmem:[%s1294 + $0x73] sm:$0xff]
      %s1377 = scalar_lea.vmem %s4, 896
      %v1378 = vld [vmem:[%s1377] sm:$0xff]
      %v1379 = vld [vmem:[%s1377 + $0x8] sm:$0xff]
      %v1380 = vld [vmem:[%s1377 + $0x10] sm:$0xff]
      %v1381 = vld [vmem:[%s1377 + $0x18] sm:$0xff]
      %v1382 = vld [vmem:[%s1377 + $0x20] sm:$0xff]
      %v1383 = vld [vmem:[%s1377 + $0x28] sm:$0xff]
      %v1384 = vld [vmem:[%s1377 + $0x30] sm:$0xff]
      %v1385 = vld [vmem:[%s1377 + $0x38] sm:$0xff]
      %v1386 = vld [vmem:[%s1377 + $0x40] sm:$0xff]
      %v1387 = vld [vmem:[%s1377 + $0x48] sm:$0xff]
      %v1388 = vld [vmem:[%s1377 + $0x50] sm:$0xff]
      %v1389 = vld [vmem:[%s1377 + $0x58] sm:$0xff]
      %v1390 = vld [vmem:[%s1377 + $0x60] sm:$0xff]
      %v1391 = vld [vmem:[%s1377 + $0x68] sm:$0xff]
      %v1392 = vld [vmem:[%s1377 + $0x70] sm:$0xff]
      %v1393 = vld [vmem:[%s1377 + $0x78] sm:$0xff]
      %1394 = vmatpush.msra.mxu0 %v1393
      %1395 = vmatpush.msra.mxu0 %v1392
      %1396 = vmatpush.msra.mxu0 %v1391
      %1397 = vmatpush.msra.mxu0 %v1390
      %1398 = vmatpush.msra.mxu0 %v1389
      %1399 = vmatpush.msra.mxu0 %v1388
      %1400 = vmatpush.msra.mxu0 %v1387
      %1401 = vmatpush.msra.mxu0 %v1386
      %1402 = vmatpush.msra.mxu0 %v1385
      %1403 = vmatpush.msra.mxu0 %v1384
      %1404 = vmatpush.msra.mxu0 %v1383
      %1405 = vmatpush.msra.mxu0 %v1382
      %1406 = vmatpush.msra.mxu0 %v1381
      %1407 = vmatpush.msra.mxu0 %v1380
      %1408 = vmatpush.msra.mxu0 %v1379
      %1409 = vmatpush.msra.mxu0 %v1378
      %1410 = vmatmul.f32.gmra.mxu0 %v1369
      %v1411 = vpop.f32.mrf.mxu0
      %v1412 = vadd.f32 0.0, %v1411
      %1413 = vmatmul.f32.gmra.mxu0 %v1370
      %v1414 = vpop.f32.mrf.mxu0
      %v1415 = vadd.f32 0.0, %v1414
      %1416 = vmatmul.f32.gmra.mxu0 %v1371
      %v1417 = vpop.f32.mrf.mxu0
      %v1418 = vadd.f32 0.0, %v1417
      %1419 = vmatmul.f32.gmra.mxu0 %v1372
      %v1420 = vpop.f32.mrf.mxu0
      %v1421 = vadd.f32 0.0, %v1420
      %1422 = vmatmul.f32.gmra.mxu0 %v1373
      %v1423 = vpop.f32.mrf.mxu0
      %v1424 = vadd.f32 0.0, %v1423
      %1425 = vmatmul.f32.gmra.mxu0 %v1374
      %v1426 = vpop.f32.mrf.mxu0
      %v1427 = vadd.f32 0.0, %v1426
      %1428 = vmatmul.f32.gmra.mxu0 %v1375
      %v1429 = vpop.f32.mrf.mxu0
      %v1430 = vadd.f32 0.0, %v1429
      %1431 = vmatmul.f32.gmra.mxu0 %v1376
      %v1432 = vpop.f32.mrf.mxu0
      %v1433 = vadd.f32 0.0, %v1432
      %1434 = vdwg.mxu0
      %v1435 = vadd.f32 %v1361, %v1412
      %v1436 = vadd.f32 %v1362, %v1415
      %v1437 = vadd.f32 %v1363, %v1418
      %v1438 = vadd.f32 %v1364, %v1421
      %v1439 = vadd.f32 %v1365, %v1424
      %v1440 = vadd.f32 %v1366, %v1427
      %v1441 = vadd.f32 %v1367, %v1430
      %v1442 = vadd.f32 %v1368, %v1433
      %v1443 = vld [vmem:[%s1294 + $0x5] sm:$0xff]
      %v1444 = vld [vmem:[%s1294 + $0x15] sm:$0xff]
      %v1445 = vld [vmem:[%s1294 + $0x25] sm:$0xff]
      %v1446 = vld [vmem:[%s1294 + $0x35] sm:$0xff]
      %v1447 = vld [vmem:[%s1294 + $0x45] sm:$0xff]
      %v1448 = vld [vmem:[%s1294 + $0x55] sm:$0xff]
      %v1449 = vld [vmem:[%s1294 + $0x65] sm:$0xff]
      %v1450 = vld [vmem:[%s1294 + $0x75] sm:$0xff]
      %s1451 = scalar_lea.vmem %s4, 1024
      %v1452 = vld [vmem:[%s1451] sm:$0xff]
      %v1453 = vld [vmem:[%s1451 + $0x8] sm:$0xff]
      %v1454 = vld [vmem:[%s1451 + $0x10] sm:$0xff]
      %v1455 = vld [vmem:[%s1451 + $0x18] sm:$0xff]
      %v1456 = vld [vmem:[%s1451 + $0x20] sm:$0xff]
      %v1457 = vld [vmem:[%s1451 + $0x28] sm:$0xff]
      %v1458 = vld [vmem:[%s1451 + $0x30] sm:$0xff]
      %v1459 = vld [vmem:[%s1451 + $0x38] sm:$0xff]
      %v1460 = vld [vmem:[%s1451 + $0x40] sm:$0xff]
      %v1461 = vld [vmem:[%s1451 + $0x48] sm:$0xff]
      %v1462 = vld [vmem:[%s1451 + $0x50] sm:$0xff]
      %v1463 = vld [vmem:[%s1451 + $0x58] sm:$0xff]
      %v1464 = vld [vmem:[%s1451 + $0x60] sm:$0xff]
      %v1465 = vld [vmem:[%s1451 + $0x68] sm:$0xff]
      %v1466 = vld [vmem:[%s1451 + $0x70] sm:$0xff]
      %v1467 = vld [vmem:[%s1451 + $0x78] sm:$0xff]
      %1468 = vmatpush.msra.mxu0 %v1467
      %1469 = vmatpush.msra.mxu0 %v1466
      %1470 = vmatpush.msra.mxu0 %v1465
      %1471 = vmatpush.msra.mxu0 %v1464
      %1472 = vmatpush.msra.mxu0 %v1463
      %1473 = vmatpush.msra.mxu0 %v1462
      %1474 = vmatpush.msra.mxu0 %v1461
      %1475 = vmatpush.msra.mxu0 %v1460
      %1476 = vmatpush.msra.mxu0 %v1459
      %1477 = vmatpush.msra.mxu0 %v1458
      %1478 = vmatpush.msra.mxu0 %v1457
      %1479 = vmatpush.msra.mxu0 %v1456
      %1480 = vmatpush.msra.mxu0 %v1455
      %1481 = vmatpush.msra.mxu0 %v1454
      %1482 = vmatpush.msra.mxu0 %v1453
      %1483 = vmatpush.msra.mxu0 %v1452
      %1484 = vmatmul.f32.gmra.mxu0 %v1443
      %v1485 = vpop.f32.mrf.mxu0
      %v1486 = vadd.f32 0.0, %v1485
      %1487 = vmatmul.f32.gmra.mxu0 %v1444
      %v1488 = vpop.f32.mrf.mxu0
      %v1489 = vadd.f32 0.0, %v1488
      %1490 = vmatmul.f32.gmra.mxu0 %v1445
      %v1491 = vpop.f32.mrf.mxu0
      %v1492 = vadd.f32 0.0, %v1491
      %1493 = vmatmul.f32.gmra.mxu0 %v1446
      %v1494 = vpop.f32.mrf.mxu0
      %v1495 = vadd.f32 0.0, %v1494
      %1496 = vmatmul.f32.gmra.mxu0 %v1447
      %v1497 = vpop.f32.mrf.mxu0
      %v1498 = vadd.f32 0.0, %v1497
      %1499 = vmatmul.f32.gmra.mxu0 %v1448
      %v1500 = vpop.f32.mrf.mxu0
      %v1501 = vadd.f32 0.0, %v1500
      %1502 = vmatmul.f32.gmra.mxu0 %v1449
      %v1503 = vpop.f32.mrf.mxu0
      %v1504 = vadd.f32 0.0, %v1503
      %1505 = vmatmul.f32.gmra.mxu0 %v1450
      %v1506 = vpop.f32.mrf.mxu0
      %v1507 = vadd.f32 0.0, %v1506
      %1508 = vdwg.mxu0
      %v1509 = vadd.f32 %v1435, %v1486
      %v1510 = vadd.f32 %v1436, %v1489
      %v1511 = vadd.f32 %v1437, %v1492
      %v1512 = vadd.f32 %v1438, %v1495
      %v1513 = vadd.f32 %v1439, %v1498
      %v1514 = vadd.f32 %v1440, %v1501
      %v1515 = vadd.f32 %v1441, %v1504
      %v1516 = vadd.f32 %v1442, %v1507
      %v1517 = vld [vmem:[#allocation2] sm:$0xff]
      %v1518 = vld [vmem:[#allocation2 + $0x10] sm:$0xff]
      %v1519 = vld [vmem:[#allocation2 + $0x20] sm:$0xff]
      %v1520 = vld [vmem:[#allocation2 + $0x30] sm:$0xff]
      %v1521 = vld [vmem:[#allocation2 + $0x40] sm:$0xff]
      %v1522 = vld [vmem:[#allocation2 + $0x50] sm:$0xff]
      %v1523 = vld [vmem:[#allocation2 + $0x60] sm:$0xff]
      %v1524 = vld [vmem:[#allocation2 + $0x70] sm:$0xff]
      %s1525 = scalar_lea.vmem %s4, 1152
      %v1526 = vld [vmem:[%s1525] sm:$0xff]
      %v1527 = vld [vmem:[%s1525 + $0x8] sm:$0xff]
      %v1528 = vld [vmem:[%s1525 + $0x10] sm:$0xff]
      %v1529 = vld [vmem:[%s1525 + $0x18] sm:$0xff]
      %v1530 = vld [vmem:[%s1525 + $0x20] sm:$0xff]
      %v1531 = vld [vmem:[%s1525 + $0x28] sm:$0xff]
      %v1532 = vld [vmem:[%s1525 + $0x30] sm:$0xff]
      %v1533 = vld [vmem:[%s1525 + $0x38] sm:$0xff]
      %v1534 = vld [vmem:[%s1525 + $0x40] sm:$0xff]
      %v1535 = vld [vmem:[%s1525 + $0x48] sm:$0xff]
      %v1536 = vld [vmem:[%s1525 + $0x50] sm:$0xff]
      %v1537 = vld [vmem:[%s1525 + $0x58] sm:$0xff]
      %v1538 = vld [vmem:[%s1525 + $0x60] sm:$0xff]
      %v1539 = vld [vmem:[%s1525 + $0x68] sm:$0xff]
      %v1540 = vld [vmem:[%s1525 + $0x70] sm:$0xff]
      %v1541 = vld [vmem:[%s1525 + $0x78] sm:$0xff]
      %1542 = vmatpush.msra.mxu0 %v1541
      %1543 = vmatpush.msra.mxu0 %v1540
      %1544 = vmatpush.msra.mxu0 %v1539
      %1545 = vmatpush.msra.mxu0 %v1538
      %1546 = vmatpush.msra.mxu0 %v1537
      %1547 = vmatpush.msra.mxu0 %v1536
      %1548 = vmatpush.msra.mxu0 %v1535
      %1549 = vmatpush.msra.mxu0 %v1534
      %1550 = vmatpush.msra.mxu0 %v1533
      %1551 = vmatpush.msra.mxu0 %v1532
      %1552 = vmatpush.msra.mxu0 %v1531
      %1553 = vmatpush.msra.mxu0 %v1530
      %1554 = vmatpush.msra.mxu0 %v1529
      %1555 = vmatpush.msra.mxu0 %v1528
      %1556 = vmatpush.msra.mxu0 %v1527
      %1557 = vmatpush.msra.mxu0 %v1526
      %1558 = vmatmul.f32.gmra.mxu0 %v1517
      %v1559 = vpop.f32.mrf.mxu0
      %v1560 = vadd.f32 0.0, %v1559
      %1561 = vmatmul.f32.gmra.mxu0 %v1518
      %v1562 = vpop.f32.mrf.mxu0
      %v1563 = vadd.f32 0.0, %v1562
      %1564 = vmatmul.f32.gmra.mxu0 %v1519
      %v1565 = vpop.f32.mrf.mxu0
      %v1566 = vadd.f32 0.0, %v1565
      %1567 = vmatmul.f32.gmra.mxu0 %v1520
      %v1568 = vpop.f32.mrf.mxu0
      %v1569 = vadd.f32 0.0, %v1568
      %1570 = vmatmul.f32.gmra.mxu0 %v1521
      %v1571 = vpop.f32.mrf.mxu0
      %v1572 = vadd.f32 0.0, %v1571
      %1573 = vmatmul.f32.gmra.mxu0 %v1522
      %v1574 = vpop.f32.mrf.mxu0
      %v1575 = vadd.f32 0.0, %v1574
      %1576 = vmatmul.f32.gmra.mxu0 %v1523
      %v1577 = vpop.f32.mrf.mxu0
      %v1578 = vadd.f32 0.0, %v1577
      %1579 = vmatmul.f32.gmra.mxu0 %v1524
      %v1580 = vpop.f32.mrf.mxu0
      %v1581 = vadd.f32 0.0, %v1580
      %1582 = vdwg.mxu0
      %v1583 = vadd.f32 %v1509, %v1560
      %v1584 = vadd.f32 %v1510, %v1563
      %v1585 = vadd.f32 %v1511, %v1566
      %v1586 = vadd.f32 %v1512, %v1569
      %v1587 = vadd.f32 %v1513, %v1572
      %v1588 = vadd.f32 %v1514, %v1575
      %v1589 = vadd.f32 %v1515, %v1578
      %v1590 = vadd.f32 %v1516, %v1581
      %v1591 = vld [vmem:[#allocation2 + $0x3] sm:$0xff]
      %v1592 = vld [vmem:[#allocation2 + $0x13] sm:$0xff]
      %v1593 = vld [vmem:[#allocation2 + $0x23] sm:$0xff]
      %v1594 = vld [vmem:[#allocation2 + $0x33] sm:$0xff]
      %v1595 = vld [vmem:[#allocation2 + $0x43] sm:$0xff]
      %v1596 = vld [vmem:[#allocation2 + $0x53] sm:$0xff]
      %v1597 = vld [vmem:[#allocation2 + $0x63] sm:$0xff]
      %v1598 = vld [vmem:[#allocation2 + $0x73] sm:$0xff]
      %s1599 = scalar_lea.vmem %s4, 1280
      %v1600 = vld [vmem:[%s1599] sm:$0xff]
      %v1601 = vld [vmem:[%s1599 + $0x8] sm:$0xff]
      %v1602 = vld [vmem:[%s1599 + $0x10] sm:$0xff]
      %v1603 = vld [vmem:[%s1599 + $0x18] sm:$0xff]
      %v1604 = vld [vmem:[%s1599 + $0x20] sm:$0xff]
      %v1605 = vld [vmem:[%s1599 + $0x28] sm:$0xff]
      %v1606 = vld [vmem:[%s1599 + $0x30] sm:$0xff]
      %v1607 = vld [vmem:[%s1599 + $0x38] sm:$0xff]
      %v1608 = vld [vmem:[%s1599 + $0x40] sm:$0xff]
      %v1609 = vld [vmem:[%s1599 + $0x48] sm:$0xff]
      %v1610 = vld [vmem:[%s1599 + $0x50] sm:$0xff]
      %v1611 = vld [vmem:[%s1599 + $0x58] sm:$0xff]
      %v1612 = vld [vmem:[%s1599 + $0x60] sm:$0xff]
      %v1613 = vld [vmem:[%s1599 + $0x68] sm:$0xff]
      %v1614 = vld [vmem:[%s1599 + $0x70] sm:$0xff]
      %v1615 = vld [vmem:[%s1599 + $0x78] sm:$0xff]
      %1616 = vmatpush.msra.mxu0 %v1615
      %1617 = vmatpush.msra.mxu0 %v1614
      %1618 = vmatpush.msra.mxu0 %v1613
      %1619 = vmatpush.msra.mxu0 %v1612
      %1620 = vmatpush.msra.mxu0 %v1611
      %1621 = vmatpush.msra.mxu0 %v1610
      %1622 = vmatpush.msra.mxu0 %v1609
      %1623 = vmatpush.msra.mxu0 %v1608
      %1624 = vmatpush.msra.mxu0 %v1607
      %1625 = vmatpush.msra.mxu0 %v1606
      %1626 = vmatpush.msra.mxu0 %v1605
      %1627 = vmatpush.msra.mxu0 %v1604
      %1628 = vmatpush.msra.mxu0 %v1603
      %1629 = vmatpush.msra.mxu0 %v1602
      %1630 = vmatpush.msra.mxu0 %v1601
      %1631 = vmatpush.msra.mxu0 %v1600
      %1632 = vmatmul.f32.gmra.mxu0 %v1591
      %v1633 = vpop.f32.mrf.mxu0
      %v1634 = vadd.f32 0.0, %v1633
      %1635 = vmatmul.f32.gmra.mxu0 %v1592
      %v1636 = vpop.f32.mrf.mxu0
      %v1637 = vadd.f32 0.0, %v1636
      %1638 = vmatmul.f32.gmra.mxu0 %v1593
      %v1639 = vpop.f32.mrf.mxu0
      %v1640 = vadd.f32 0.0, %v1639
      %1641 = vmatmul.f32.gmra.mxu0 %v1594
      %v1642 = vpop.f32.mrf.mxu0
      %v1643 = vadd.f32 0.0, %v1642
      %1644 = vmatmul.f32.gmra.mxu0 %v1595
      %v1645 = vpop.f32.mrf.mxu0
      %v1646 = vadd.f32 0.0, %v1645
      %1647 = vmatmul.f32.gmra.mxu0 %v1596
      %v1648 = vpop.f32.mrf.mxu0
      %v1649 = vadd.f32 0.0, %v1648
      %1650 = vmatmul.f32.gmra.mxu0 %v1597
      %v1651 = vpop.f32.mrf.mxu0
      %v1652 = vadd.f32 0.0, %v1651
      %1653 = vmatmul.f32.gmra.mxu0 %v1598
      %v1654 = vpop.f32.mrf.mxu0
      %v1655 = vadd.f32 0.0, %v1654
      %1656 = vdwg.mxu0
      %v1657 = vadd.f32 %v1583, %v1634
      %v1658 = vadd.f32 %v1584, %v1637
      %v1659 = vadd.f32 %v1585, %v1640
      %v1660 = vadd.f32 %v1586, %v1643
      %v1661 = vadd.f32 %v1587, %v1646
      %v1662 = vadd.f32 %v1588, %v1649
      %v1663 = vadd.f32 %v1589, %v1652
      %v1664 = vadd.f32 %v1590, %v1655
      %v1665 = vld [vmem:[#allocation2 + $0x6] sm:$0xff]
      %v1666 = vld [vmem:[#allocation2 + $0x16] sm:$0xff]
      %v1667 = vld [vmem:[#allocation2 + $0x26] sm:$0xff]
      %v1668 = vld [vmem:[#allocation2 + $0x36] sm:$0xff]
      %v1669 = vld [vmem:[#allocation2 + $0x46] sm:$0xff]
      %v1670 = vld [vmem:[#allocation2 + $0x56] sm:$0xff]
      %v1671 = vld [vmem:[#allocation2 + $0x66] sm:$0xff]
      %v1672 = vld [vmem:[#allocation2 + $0x76] sm:$0xff]
      %s1673 = scalar_lea.vmem %s4, 1408
      %v1674 = vld [vmem:[%s1673] sm:$0xff]
      %v1675 = vld [vmem:[%s1673 + $0x8] sm:$0xff]
      %v1676 = vld [vmem:[%s1673 + $0x10] sm:$0xff]
      %v1677 = vld [vmem:[%s1673 + $0x18] sm:$0xff]
      %v1678 = vld [vmem:[%s1673 + $0x20] sm:$0xff]
      %v1679 = vld [vmem:[%s1673 + $0x28] sm:$0xff]
      %v1680 = vld [vmem:[%s1673 + $0x30] sm:$0xff]
      %v1681 = vld [vmem:[%s1673 + $0x38] sm:$0xff]
      %v1682 = vld [vmem:[%s1673 + $0x40] sm:$0xff]
      %v1683 = vld [vmem:[%s1673 + $0x48] sm:$0xff]
      %v1684 = vld [vmem:[%s1673 + $0x50] sm:$0xff]
      %v1685 = vld [vmem:[%s1673 + $0x58] sm:$0xff]
      %v1686 = vld [vmem:[%s1673 + $0x60] sm:$0xff]
      %v1687 = vld [vmem:[%s1673 + $0x68] sm:$0xff]
      %v1688 = vld [vmem:[%s1673 + $0x70] sm:$0xff]
      %v1689 = vld [vmem:[%s1673 + $0x78] sm:$0xff]
      %1690 = vmatpush.msra.mxu0 %v1689
      %1691 = vmatpush.msra.mxu0 %v1688
      %1692 = vmatpush.msra.mxu0 %v1687
      %1693 = vmatpush.msra.mxu0 %v1686
      %1694 = vmatpush.msra.mxu0 %v1685
      %1695 = vmatpush.msra.mxu0 %v1684
      %1696 = vmatpush.msra.mxu0 %v1683
      %1697 = vmatpush.msra.mxu0 %v1682
      %1698 = vmatpush.msra.mxu0 %v1681
      %1699 = vmatpush.msra.mxu0 %v1680
      %1700 = vmatpush.msra.mxu0 %v1679
      %1701 = vmatpush.msra.mxu0 %v1678
      %1702 = vmatpush.msra.mxu0 %v1677
      %1703 = vmatpush.msra.mxu0 %v1676
      %1704 = vmatpush.msra.mxu0 %v1675
      %1705 = vmatpush.msra.mxu0 %v1674
      %1706 = vmatmul.f32.gmra.mxu0 %v1665
      %v1707 = vpop.f32.mrf.mxu0
      %v1708 = vadd.f32 0.0, %v1707
      %1709 = vmatmul.f32.gmra.mxu0 %v1666
      %v1710 = vpop.f32.mrf.mxu0
      %v1711 = vadd.f32 0.0, %v1710
      %1712 = vmatmul.f32.gmra.mxu0 %v1667
      %v1713 = vpop.f32.mrf.mxu0
      %v1714 = vadd.f32 0.0, %v1713
      %1715 = vmatmul.f32.gmra.mxu0 %v1668
      %v1716 = vpop.f32.mrf.mxu0
      %v1717 = vadd.f32 0.0, %v1716
      %1718 = vmatmul.f32.gmra.mxu0 %v1669
      %v1719 = vpop.f32.mrf.mxu0
      %v1720 = vadd.f32 0.0, %v1719
      %1721 = vmatmul.f32.gmra.mxu0 %v1670
      %v1722 = vpop.f32.mrf.mxu0
      %v1723 = vadd.f32 0.0, %v1722
      %1724 = vmatmul.f32.gmra.mxu0 %v1671
      %v1725 = vpop.f32.mrf.mxu0
      %v1726 = vadd.f32 0.0, %v1725
      %1727 = vmatmul.f32.gmra.mxu0 %v1672
      %v1728 = vpop.f32.mrf.mxu0
      %v1729 = vadd.f32 0.0, %v1728
      %1730 = vdwg.mxu0
      %v1731 = vadd.f32 %v1657, %v1708
      %v1732 = vadd.f32 %v1658, %v1711
      %v1733 = vadd.f32 %v1659, %v1714
      %v1734 = vadd.f32 %v1660, %v1717
      %v1735 = vadd.f32 %v1661, %v1720
      %v1736 = vadd.f32 %v1662, %v1723
      %v1737 = vadd.f32 %v1663, %v1726
      %v1738 = vadd.f32 %v1664, %v1729
      %v1739 = vld [vmem:[%s857] sm:$0xff]
      %v1740 = vld [vmem:[%s857 + $0x10] sm:$0xff]
      %v1741 = vld [vmem:[%s857 + $0x20] sm:$0xff]
      %v1742 = vld [vmem:[%s857 + $0x30] sm:$0xff]
      %v1743 = vld [vmem:[%s857 + $0x40] sm:$0xff]
      %v1744 = vld [vmem:[%s857 + $0x50] sm:$0xff]
      %v1745 = vld [vmem:[%s857 + $0x60] sm:$0xff]
      %v1746 = vld [vmem:[%s857 + $0x70] sm:$0xff]
      %s1747 = scalar_lea.vmem %s4, 1536
      %v1748 = vld [vmem:[%s1747] sm:$0xff]
      %v1749 = vld [vmem:[%s1747 + $0x8] sm:$0xff]
      %v1750 = vld [vmem:[%s1747 + $0x10] sm:$0xff]
      %v1751 = vld [vmem:[%s1747 + $0x18] sm:$0xff]
      %v1752 = vld [vmem:[%s1747 + $0x20] sm:$0xff]
      %v1753 = vld [vmem:[%s1747 + $0x28] sm:$0xff]
      %v1754 = vld [vmem:[%s1747 + $0x30] sm:$0xff]
      %v1755 = vld [vmem:[%s1747 + $0x38] sm:$0xff]
      %v1756 = vld [vmem:[%s1747 + $0x40] sm:$0xff]
      %v1757 = vld [vmem:[%s1747 + $0x48] sm:$0xff]
      %v1758 = vld [vmem:[%s1747 + $0x50] sm:$0xff]
      %v1759 = vld [vmem:[%s1747 + $0x58] sm:$0xff]
      %v1760 = vld [vmem:[%s1747 + $0x60] sm:$0xff]
      %v1761 = vld [vmem:[%s1747 + $0x68] sm:$0xff]
      %v1762 = vld [vmem:[%s1747 + $0x70] sm:$0xff]
      %v1763 = vld [vmem:[%s1747 + $0x78] sm:$0xff]
      %1764 = vmatpush.msra.mxu0 %v1763
      %1765 = vmatpush.msra.mxu0 %v1762
      %1766 = vmatpush.msra.mxu0 %v1761
      %1767 = vmatpush.msra.mxu0 %v1760
      %1768 = vmatpush.msra.mxu0 %v1759
      %1769 = vmatpush.msra.mxu0 %v1758
      %1770 = vmatpush.msra.mxu0 %v1757
      %1771 = vmatpush.msra.mxu0 %v1756
      %1772 = vmatpush.msra.mxu0 %v1755
      %1773 = vmatpush.msra.mxu0 %v1754
      %1774 = vmatpush.msra.mxu0 %v1753
      %1775 = vmatpush.msra.mxu0 %v1752
      %1776 = vmatpush.msra.mxu0 %v1751
      %1777 = vmatpush.msra.mxu0 %v1750
      %1778 = vmatpush.msra.mxu0 %v1749
      %1779 = vmatpush.msra.mxu0 %v1748
      %1780 = vmatmul.f32.gmra.mxu0 %v1739
      %v1781 = vpop.f32.mrf.mxu0
      %v1782 = vadd.f32 0.0, %v1781
      %1783 = vmatmul.f32.gmra.mxu0 %v1740
      %v1784 = vpop.f32.mrf.mxu0
      %v1785 = vadd.f32 0.0, %v1784
      %1786 = vmatmul.f32.gmra.mxu0 %v1741
      %v1787 = vpop.f32.mrf.mxu0
      %v1788 = vadd.f32 0.0, %v1787
      %1789 = vmatmul.f32.gmra.mxu0 %v1742
      %v1790 = vpop.f32.mrf.mxu0
      %v1791 = vadd.f32 0.0, %v1790
      %1792 = vmatmul.f32.gmra.mxu0 %v1743
      %v1793 = vpop.f32.mrf.mxu0
      %v1794 = vadd.f32 0.0, %v1793
      %1795 = vmatmul.f32.gmra.mxu0 %v1744
      %v1796 = vpop.f32.mrf.mxu0
      %v1797 = vadd.f32 0.0, %v1796
      %1798 = vmatmul.f32.gmra.mxu0 %v1745
      %v1799 = vpop.f32.mrf.mxu0
      %v1800 = vadd.f32 0.0, %v1799
      %1801 = vmatmul.f32.gmra.mxu0 %v1746
      %v1802 = vpop.f32.mrf.mxu0
      %v1803 = vadd.f32 0.0, %v1802
      %1804 = vdwg.mxu0
      %v1805 = vadd.f32 %v1731, %v1782
      %v1806 = vadd.f32 %v1732, %v1785
      %v1807 = vadd.f32 %v1733, %v1788
      %v1808 = vadd.f32 %v1734, %v1791
      %v1809 = vadd.f32 %v1735, %v1794
      %v1810 = vadd.f32 %v1736, %v1797
      %v1811 = vadd.f32 %v1737, %v1800
      %v1812 = vadd.f32 %v1738, %v1803
      %s1813 = scalar_lea.vmem %s4, 1664
      %v1814 = vld [vmem:[%s1813] sm:$0xff]
      %v1815 = vld [vmem:[%s1813 + $0x8] sm:$0xff]
      %v1816 = vld [vmem:[%s1813 + $0x10] sm:$0xff]
      %v1817 = vld [vmem:[%s1813 + $0x18] sm:$0xff]
      %v1818 = vld [vmem:[%s1813 + $0x20] sm:$0xff]
      %v1819 = vld [vmem:[%s1813 + $0x28] sm:$0xff]
      %v1820 = vld [vmem:[%s1813 + $0x30] sm:$0xff]
      %v1821 = vld [vmem:[%s1813 + $0x38] sm:$0xff]
      %v1822 = vld [vmem:[%s1813 + $0x40] sm:$0xff]
      %v1823 = vld [vmem:[%s1813 + $0x48] sm:$0xff]
      %v1824 = vld [vmem:[%s1813 + $0x50] sm:$0xff]
      %v1825 = vld [vmem:[%s1813 + $0x58] sm:$0xff]
      %v1826 = vld [vmem:[%s1813 + $0x60] sm:$0xff]
      %v1827 = vld [vmem:[%s1813 + $0x68] sm:$0xff]
      %v1828 = vld [vmem:[%s1813 + $0x70] sm:$0xff]
      %v1829 = vld [vmem:[%s1813 + $0x78] sm:$0xff]
      %1830 = vmatpush.msra.mxu0 %v1829
      %1831 = vmatpush.msra.mxu0 %v1828
      %1832 = vmatpush.msra.mxu0 %v1827
      %1833 = vmatpush.msra.mxu0 %v1826
      %1834 = vmatpush.msra.mxu0 %v1825
      %1835 = vmatpush.msra.mxu0 %v1824
      %1836 = vmatpush.msra.mxu0 %v1823
      %1837 = vmatpush.msra.mxu0 %v1822
      %1838 = vmatpush.msra.mxu0 %v1821
      %1839 = vmatpush.msra.mxu0 %v1820
      %1840 = vmatpush.msra.mxu0 %v1819
      %1841 = vmatpush.msra.mxu0 %v1818
      %1842 = vmatpush.msra.mxu0 %v1817
      %1843 = vmatpush.msra.mxu0 %v1816
      %1844 = vmatpush.msra.mxu0 %v1815
      %1845 = vmatpush.msra.mxu0 %v1814
      %1846 = vmatmul.f32.gmra.mxu0 %v1146
      %v1847 = vpop.f32.mrf.mxu0
      %v1848 = vadd.f32 0.0, %v1847
      %1849 = vmatmul.f32.gmra.mxu0 %v1147
      %v1850 = vpop.f32.mrf.mxu0
      %v1851 = vadd.f32 0.0, %v1850
      %1852 = vmatmul.f32.gmra.mxu0 %v1148
      %v1853 = vpop.f32.mrf.mxu0
      %v1854 = vadd.f32 0.0, %v1853
      %1855 = vmatmul.f32.gmra.mxu0 %v1149
      %v1856 = vpop.f32.mrf.mxu0
      %v1857 = vadd.f32 0.0, %v1856
      %1858 = vmatmul.f32.gmra.mxu0 %v1150
      %v1859 = vpop.f32.mrf.mxu0
      %v1860 = vadd.f32 0.0, %v1859
      %1861 = vmatmul.f32.gmra.mxu0 %v1151
      %v1862 = vpop.f32.mrf.mxu0
      %v1863 = vadd.f32 0.0, %v1862
      %1864 = vmatmul.f32.gmra.mxu0 %v1152
      %v1865 = vpop.f32.mrf.mxu0
      %v1866 = vadd.f32 0.0, %v1865
      %1867 = vmatmul.f32.gmra.mxu0 %v1153
      %v1868 = vpop.f32.mrf.mxu0
      %v1869 = vadd.f32 0.0, %v1868
      %1870 = vdwg.mxu0
      %v1871 = vadd.f32 %v1805, %v1848
      %v1872 = vadd.f32 %v1806, %v1851
      %v1873 = vadd.f32 %v1807, %v1854
      %v1874 = vadd.f32 %v1808, %v1857
      %v1875 = vadd.f32 %v1809, %v1860
      %v1876 = vadd.f32 %v1810, %v1863
      %v1877 = vadd.f32 %v1811, %v1866
      %v1878 = vadd.f32 %v1812, %v1869
      %v1879 = vld [vmem:[%s857 + $0x6] sm:$0xff]
      %v1880 = vld [vmem:[%s857 + $0x16] sm:$0xff]
      %v1881 = vld [vmem:[%s857 + $0x26] sm:$0xff]
      %v1882 = vld [vmem:[%s857 + $0x36] sm:$0xff]
      %v1883 = vld [vmem:[%s857 + $0x46] sm:$0xff]
      %v1884 = vld [vmem:[%s857 + $0x56] sm:$0xff]
      %v1885 = vld [vmem:[%s857 + $0x66] sm:$0xff]
      %v1886 = vld [vmem:[%s857 + $0x76] sm:$0xff]
      %s1887 = scalar_lea.vmem %s4, 1792
      %v1888 = vld [vmem:[%s1887] sm:$0xff]
      %v1889 = vld [vmem:[%s1887 + $0x8] sm:$0xff]
      %v1890 = vld [vmem:[%s1887 + $0x10] sm:$0xff]
      %v1891 = vld [vmem:[%s1887 + $0x18] sm:$0xff]
      %v1892 = vld [vmem:[%s1887 + $0x20] sm:$0xff]
      %v1893 = vld [vmem:[%s1887 + $0x28] sm:$0xff]
      %v1894 = vld [vmem:[%s1887 + $0x30] sm:$0xff]
      %v1895 = vld [vmem:[%s1887 + $0x38] sm:$0xff]
      %v1896 = vld [vmem:[%s1887 + $0x40] sm:$0xff]
      %v1897 = vld [vmem:[%s1887 + $0x48] sm:$0xff]
      %v1898 = vld [vmem:[%s1887 + $0x50] sm:$0xff]
      %v1899 = vld [vmem:[%s1887 + $0x58] sm:$0xff]
      %v1900 = vld [vmem:[%s1887 + $0x60] sm:$0xff]
      %v1901 = vld [vmem:[%s1887 + $0x68] sm:$0xff]
      %v1902 = vld [vmem:[%s1887 + $0x70] sm:$0xff]
      %v1903 = vld [vmem:[%s1887 + $0x78] sm:$0xff]
      %1904 = vmatpush.msra.mxu0 %v1903
      %1905 = vmatpush.msra.mxu0 %v1902
      %1906 = vmatpush.msra.mxu0 %v1901
      %1907 = vmatpush.msra.mxu0 %v1900
      %1908 = vmatpush.msra.mxu0 %v1899
      %1909 = vmatpush.msra.mxu0 %v1898
      %1910 = vmatpush.msra.mxu0 %v1897
      %1911 = vmatpush.msra.mxu0 %v1896
      %1912 = vmatpush.msra.mxu0 %v1895
      %1913 = vmatpush.msra.mxu0 %v1894
      %1914 = vmatpush.msra.mxu0 %v1893
      %1915 = vmatpush.msra.mxu0 %v1892
      %1916 = vmatpush.msra.mxu0 %v1891
      %1917 = vmatpush.msra.mxu0 %v1890
      %1918 = vmatpush.msra.mxu0 %v1889
      %1919 = vmatpush.msra.mxu0 %v1888
      %1920 = vmatmul.f32.gmra.mxu0 %v1879
      %v1921 = vpop.f32.mrf.mxu0
      %v1922 = vadd.f32 0.0, %v1921
      %1923 = vmatmul.f32.gmra.mxu0 %v1880
      %v1924 = vpop.f32.mrf.mxu0
      %v1925 = vadd.f32 0.0, %v1924
      %1926 = vmatmul.f32.gmra.mxu0 %v1881
      %v1927 = vpop.f32.mrf.mxu0
      %v1928 = vadd.f32 0.0, %v1927
      %1929 = vmatmul.f32.gmra.mxu0 %v1882
      %v1930 = vpop.f32.mrf.mxu0
      %v1931 = vadd.f32 0.0, %v1930
      %1932 = vmatmul.f32.gmra.mxu0 %v1883
      %v1933 = vpop.f32.mrf.mxu0
      %v1934 = vadd.f32 0.0, %v1933
      %1935 = vmatmul.f32.gmra.mxu0 %v1884
      %v1936 = vpop.f32.mrf.mxu0
      %v1937 = vadd.f32 0.0, %v1936
      %1938 = vmatmul.f32.gmra.mxu0 %v1885
      %v1939 = vpop.f32.mrf.mxu0
      %v1940 = vadd.f32 0.0, %v1939
      %1941 = vmatmul.f32.gmra.mxu0 %v1886
      %v1942 = vpop.f32.mrf.mxu0
      %v1943 = vadd.f32 0.0, %v1942
      %1944 = vdwg.mxu0
      %v1945 = vadd.f32 %v1871, %v1922
      %v1946 = vadd.f32 %v1872, %v1925
      %v1947 = vadd.f32 %v1873, %v1928
      %v1948 = vadd.f32 %v1874, %v1931
      %v1949 = vadd.f32 %v1875, %v1934
      %v1950 = vadd.f32 %v1876, %v1937
      %v1951 = vadd.f32 %v1877, %v1940
      %v1952 = vadd.f32 %v1878, %v1943
      %s1953 = scalar_lea.vmem [#allocation2], 96
      %v1954 = vld [vmem:[%s1953] sm:$0xff]
      %v1955 = vld [vmem:[%s1953 + $0x10] sm:$0xff]
      %v1956 = vld [vmem:[%s1953 + $0x20] sm:$0xff]
      %v1957 = vld [vmem:[%s1953 + $0x30] sm:$0xff]
      %v1958 = vld [vmem:[%s1953 + $0x40] sm:$0xff]
      %v1959 = vld [vmem:[%s1953 + $0x50] sm:$0xff]
      %v1960 = vld [vmem:[%s1953 + $0x60] sm:$0xff]
      %v1961 = vld [vmem:[%s1953 + $0x70] sm:$0xff]
      %s1962 = scalar_lea.vmem %s4, 1920
      %v1963 = vld [vmem:[%s1962] sm:$0xff]
      %v1964 = vld [vmem:[%s1962 + $0x8] sm:$0xff]
      %v1965 = vld [vmem:[%s1962 + $0x10] sm:$0xff]
      %v1966 = vld [vmem:[%s1962 + $0x18] sm:$0xff]
      %v1967 = vld [vmem:[%s1962 + $0x20] sm:$0xff]
      %v1968 = vld [vmem:[%s1962 + $0x28] sm:$0xff]
      %v1969 = vld [vmem:[%s1962 + $0x30] sm:$0xff]
      %v1970 = vld [vmem:[%s1962 + $0x38] sm:$0xff]
      %v1971 = vld [vmem:[%s1962 + $0x40] sm:$0xff]
      %v1972 = vld [vmem:[%s1962 + $0x48] sm:$0xff]
      %v1973 = vld [vmem:[%s1962 + $0x50] sm:$0xff]
      %v1974 = vld [vmem:[%s1962 + $0x58] sm:$0xff]
      %v1975 = vld [vmem:[%s1962 + $0x60] sm:$0xff]
      %v1976 = vld [vmem:[%s1962 + $0x68] sm:$0xff]
      %v1977 = vld [vmem:[%s1962 + $0x70] sm:$0xff]
      %v1978 = vld [vmem:[%s1962 + $0x78] sm:$0xff]
      %1979 = vmatpush.msra.mxu0 %v1978
      %1980 = vmatpush.msra.mxu0 %v1977
      %1981 = vmatpush.msra.mxu0 %v1976
      %1982 = vmatpush.msra.mxu0 %v1975
      %1983 = vmatpush.msra.mxu0 %v1974
      %1984 = vmatpush.msra.mxu0 %v1973
      %1985 = vmatpush.msra.mxu0 %v1972
      %1986 = vmatpush.msra.mxu0 %v1971
      %1987 = vmatpush.msra.mxu0 %v1970
      %1988 = vmatpush.msra.mxu0 %v1969
      %1989 = vmatpush.msra.mxu0 %v1968
      %1990 = vmatpush.msra.mxu0 %v1967
      %1991 = vmatpush.msra.mxu0 %v1966
      %1992 = vmatpush.msra.mxu0 %v1965
      %1993 = vmatpush.msra.mxu0 %v1964
      %1994 = vmatpush.msra.mxu0 %v1963
      %1995 = vmatmul.f32.gmra.mxu0 %v1954
      %v1996 = vpop.f32.mrf.mxu0
      %v1997 = vadd.f32 0.0, %v1996
      %1998 = vmatmul.f32.gmra.mxu0 %v1955
      %v1999 = vpop.f32.mrf.mxu0
      %v2000 = vadd.f32 0.0, %v1999
      %2001 = vmatmul.f32.gmra.mxu0 %v1956
      %v2002 = vpop.f32.mrf.mxu0
      %v2003 = vadd.f32 0.0, %v2002
      %2004 = vmatmul.f32.gmra.mxu0 %v1957
      %v2005 = vpop.f32.mrf.mxu0
      %v2006 = vadd.f32 0.0, %v2005
      %2007 = vmatmul.f32.gmra.mxu0 %v1958
      %v2008 = vpop.f32.mrf.mxu0
      %v2009 = vadd.f32 0.0, %v2008
      %2010 = vmatmul.f32.gmra.mxu0 %v1959
      %v2011 = vpop.f32.mrf.mxu0
      %v2012 = vadd.f32 0.0, %v2011
      %2013 = vmatmul.f32.gmra.mxu0 %v1960
      %v2014 = vpop.f32.mrf.mxu0
      %v2015 = vadd.f32 0.0, %v2014
      %2016 = vmatmul.f32.gmra.mxu0 %v1961
      %v2017 = vpop.f32.mrf.mxu0
      %v2018 = vadd.f32 0.0, %v2017
      %2019 = vdwg.mxu0
      %v2020 = vadd.f32 %v1945, %v1997
      %v2021 = vadd.f32 %v1946, %v2000
      %v2022 = vadd.f32 %v1947, %v2003
      %v2023 = vadd.f32 %v1948, %v2006
      %v2024 = vadd.f32 %v1949, %v2009
      %v2025 = vadd.f32 %v1950, %v2012
      %v2026 = vadd.f32 %v1951, %v2015
      %v2027 = vadd.f32 %v1952, %v2018
      %v2028 = vld [vmem:[%s1953 + $0x3] sm:$0xff]
      %v2029 = vld [vmem:[%s1953 + $0x13] sm:$0xff]
      %v2030 = vld [vmem:[%s1953 + $0x23] sm:$0xff]
      %v2031 = vld [vmem:[%s1953 + $0x33] sm:$0xff]
      %v2032 = vld [vmem:[%s1953 + $0x43] sm:$0xff]
      %v2033 = vld [vmem:[%s1953 + $0x53] sm:$0xff]
      %v2034 = vld [vmem:[%s1953 + $0x63] sm:$0xff]
      %v2035 = vld [vmem:[%s1953 + $0x73] sm:$0xff]
      %s2036 = scalar_lea.vmem %s4, 2048
      %v2037 = vld [vmem:[%s2036] sm:$0xff]
      %v2038 = vld [vmem:[%s2036 + $0x8] sm:$0xff]
      %v2039 = vld [vmem:[%s2036 + $0x10] sm:$0xff]
      %v2040 = vld [vmem:[%s2036 + $0x18] sm:$0xff]
      %v2041 = vld [vmem:[%s2036 + $0x20] sm:$0xff]
      %v2042 = vld [vmem:[%s2036 + $0x28] sm:$0xff]
      %v2043 = vld [vmem:[%s2036 + $0x30] sm:$0xff]
      %v2044 = vld [vmem:[%s2036 + $0x38] sm:$0xff]
      %v2045 = vld [vmem:[%s2036 + $0x40] sm:$0xff]
      %v2046 = vld [vmem:[%s2036 + $0x48] sm:$0xff]
      %v2047 = vld [vmem:[%s2036 + $0x50] sm:$0xff]
      %v2048 = vld [vmem:[%s2036 + $0x58] sm:$0xff]
      %v2049 = vld [vmem:[%s2036 + $0x60] sm:$0xff]
      %v2050 = vld [vmem:[%s2036 + $0x68] sm:$0xff]
      %v2051 = vld [vmem:[%s2036 + $0x70] sm:$0xff]
      %v2052 = vld [vmem:[%s2036 + $0x78] sm:$0xff]
      %2053 = vmatpush.msra.mxu0 %v2052
      %2054 = vmatpush.msra.mxu0 %v2051
      %2055 = vmatpush.msra.mxu0 %v2050
      %2056 = vmatpush.msra.mxu0 %v2049
      %2057 = vmatpush.msra.mxu0 %v2048
      %2058 = vmatpush.msra.mxu0 %v2047
      %2059 = vmatpush.msra.mxu0 %v2046
      %2060 = vmatpush.msra.mxu0 %v2045
      %2061 = vmatpush.msra.mxu0 %v2044
      %2062 = vmatpush.msra.mxu0 %v2043
      %2063 = vmatpush.msra.mxu0 %v2042
      %2064 = vmatpush.msra.mxu0 %v2041
      %2065 = vmatpush.msra.mxu0 %v2040
      %2066 = vmatpush.msra.mxu0 %v2039
      %2067 = vmatpush.msra.mxu0 %v2038
      %2068 = vmatpush.msra.mxu0 %v2037
      %2069 = vmatmul.f32.gmra.mxu0 %v2028
      %v2070 = vpop.f32.mrf.mxu0
      %v2071 = vadd.f32 0.0, %v2070
      %2072 = vmatmul.f32.gmra.mxu0 %v2029
      %v2073 = vpop.f32.mrf.mxu0
      %v2074 = vadd.f32 0.0, %v2073
      %2075 = vmatmul.f32.gmra.mxu0 %v2030
      %v2076 = vpop.f32.mrf.mxu0
      %v2077 = vadd.f32 0.0, %v2076
      %2078 = vmatmul.f32.gmra.mxu0 %v2031
      %v2079 = vpop.f32.mrf.mxu0
      %v2080 = vadd.f32 0.0, %v2079
      %2081 = vmatmul.f32.gmra.mxu0 %v2032
      %v2082 = vpop.f32.mrf.mxu0
      %v2083 = vadd.f32 0.0, %v2082
      %2084 = vmatmul.f32.gmra.mxu0 %v2033
      %v2085 = vpop.f32.mrf.mxu0
      %v2086 = vadd.f32 0.0, %v2085
      %2087 = vmatmul.f32.gmra.mxu0 %v2034
      %v2088 = vpop.f32.mrf.mxu0
      %v2089 = vadd.f32 0.0, %v2088
      %2090 = vmatmul.f32.gmra.mxu0 %v2035
      %v2091 = vpop.f32.mrf.mxu0
      %v2092 = vadd.f32 0.0, %v2091
      %2093 = vdwg.mxu0
      %v2094 = vadd.f32 %v2020, %v2071
      %v2095 = vadd.f32 %v2021, %v2074
      %v2096 = vadd.f32 %v2022, %v2077
      %v2097 = vadd.f32 %v2023, %v2080
      %v2098 = vadd.f32 %v2024, %v2083
      %v2099 = vadd.f32 %v2025, %v2086
      %v2100 = vadd.f32 %v2026, %v2089
      %v2101 = vadd.f32 %v2027, %v2092
      %v2102 = vld [vmem:[%s1953 + $0x6] sm:$0xff]
      %v2103 = vld [vmem:[%s1953 + $0x16] sm:$0xff]
      %v2104 = vld [vmem:[%s1953 + $0x26] sm:$0xff]
      %v2105 = vld [vmem:[%s1953 + $0x36] sm:$0xff]
      %v2106 = vld [vmem:[%s1953 + $0x46] sm:$0xff]
      %v2107 = vld [vmem:[%s1953 + $0x56] sm:$0xff]
      %v2108 = vld [vmem:[%s1953 + $0x66] sm:$0xff]
      %v2109 = vld [vmem:[%s1953 + $0x76] sm:$0xff]
      %s2110 = scalar_lea.vmem %s4, 2176
      %v2111 = vld [vmem:[%s2110] sm:$0xff]
      %v2112 = vld [vmem:[%s2110 + $0x8] sm:$0xff]
      %v2113 = vld [vmem:[%s2110 + $0x10] sm:$0xff]
      %v2114 = vld [vmem:[%s2110 + $0x18] sm:$0xff]
      %v2115 = vld [vmem:[%s2110 + $0x20] sm:$0xff]
      %v2116 = vld [vmem:[%s2110 + $0x28] sm:$0xff]
      %v2117 = vld [vmem:[%s2110 + $0x30] sm:$0xff]
      %v2118 = vld [vmem:[%s2110 + $0x38] sm:$0xff]
      %v2119 = vld [vmem:[%s2110 + $0x40] sm:$0xff]
      %v2120 = vld [vmem:[%s2110 + $0x48] sm:$0xff]
      %v2121 = vld [vmem:[%s2110 + $0x50] sm:$0xff]
      %v2122 = vld [vmem:[%s2110 + $0x58] sm:$0xff]
      %v2123 = vld [vmem:[%s2110 + $0x60] sm:$0xff]
      %v2124 = vld [vmem:[%s2110 + $0x68] sm:$0xff]
      %v2125 = vld [vmem:[%s2110 + $0x70] sm:$0xff]
      %v2126 = vld [vmem:[%s2110 + $0x78] sm:$0xff]
      %2127 = vmatpush.msra.mxu0 %v2126
      %2128 = vmatpush.msra.mxu0 %v2125
      %2129 = vmatpush.msra.mxu0 %v2124
      %2130 = vmatpush.msra.mxu0 %v2123
      %2131 = vmatpush.msra.mxu0 %v2122
      %2132 = vmatpush.msra.mxu0 %v2121
      %2133 = vmatpush.msra.mxu0 %v2120
      %2134 = vmatpush.msra.mxu0 %v2119
      %2135 = vmatpush.msra.mxu0 %v2118
      %2136 = vmatpush.msra.mxu0 %v2117
      %2137 = vmatpush.msra.mxu0 %v2116
      %2138 = vmatpush.msra.mxu0 %v2115
      %2139 = vmatpush.msra.mxu0 %v2114
      %2140 = vmatpush.msra.mxu0 %v2113
      %2141 = vmatpush.msra.mxu0 %v2112
      %2142 = vmatpush.msra.mxu0 %v2111
      %2143 = vmatmul.f32.gmra.mxu0 %v2102
      %v2144 = vpop.f32.mrf.mxu0
      %v2145 = vadd.f32 0.0, %v2144
      %2146 = vmatmul.f32.gmra.mxu0 %v2103
      %v2147 = vpop.f32.mrf.mxu0
      %v2148 = vadd.f32 0.0, %v2147
      %2149 = vmatmul.f32.gmra.mxu0 %v2104
      %v2150 = vpop.f32.mrf.mxu0
      %v2151 = vadd.f32 0.0, %v2150
      %2152 = vmatmul.f32.gmra.mxu0 %v2105
      %v2153 = vpop.f32.mrf.mxu0
      %v2154 = vadd.f32 0.0, %v2153
      %2155 = vmatmul.f32.gmra.mxu0 %v2106
      %v2156 = vpop.f32.mrf.mxu0
      %v2157 = vadd.f32 0.0, %v2156
      %2158 = vmatmul.f32.gmra.mxu0 %v2107
      %v2159 = vpop.f32.mrf.mxu0
      %v2160 = vadd.f32 0.0, %v2159
      %2161 = vmatmul.f32.gmra.mxu0 %v2108
      %v2162 = vpop.f32.mrf.mxu0
      %v2163 = vadd.f32 0.0, %v2162
      %2164 = vmatmul.f32.gmra.mxu0 %v2109
      %v2165 = vpop.f32.mrf.mxu0
      %v2166 = vadd.f32 0.0, %v2165
      %2167 = vdwg.mxu0
      %v2168 = vadd.f32 %v2094, %v2145
      %v2169 = vadd.f32 %v2095, %v2148
      %v2170 = vadd.f32 %v2096, %v2151
      %v2171 = vadd.f32 %v2097, %v2154
      %v2172 = vadd.f32 %v2098, %v2157
      %v2173 = vadd.f32 %v2099, %v2160
      %v2174 = vadd.f32 %v2100, %v2163
      %v2175 = vadd.f32 %v2101, %v2166
      %v2176 = vld [vmem:[%s5] sm:$0x1]
      %v2177 = vld [vmem:[%s6] sm:$0x1]
      %v2178 = vmul.f32 %v2168, %v2168
      %v2179 = vmul.f32 %v2169, %v2169
      %v2180 = vmul.f32 %v2170, %v2170
      %v2181 = vmul.f32 %v2171, %v2171
      %v2182 = vmul.f32 %v2172, %v2172
      %v2183 = vmul.f32 %v2173, %v2173
      %v2184 = vmul.f32 %v2174, %v2174
      %v2185 = vmul.f32 %v2175, %v2175
      %v2186 = vadd.f32 %v2168, %v2169
      %v2187 = vadd.f32 %v2186, %v2170
      %v2188 = vadd.f32 %v2187, %v2171
      %v2189 = vadd.f32 %v2188, %v2172
      %v2190 = vadd.f32 %v2189, %v2173
      %v2191 = vadd.f32 %v2190, %v2174
      %v2192 = vadd.f32 %v2191, %v2175
      %2193 = vadd.xlane.f32.xlu0 %v2192
      %v2194 = vpop.xlane.xlu0 %2193
      %v2195 = vrot.slane %v2194, 4
      %v2196 = vadd.f32 %v2194, %v2195
      %v2197 = vrot.slane %v2196, 2
      %v2198 = vadd.f32 %v2196, %v2197
      %v2199 = vrot.slane %v2198, 1
      %v2200 = vadd.f32 %v2198, %v2199
      %s2201 = vtos %v2200
      %v2202 = vadd.f32 %v2178, %v2179
      %v2203 = vadd.f32 %v2202, %v2180
      %v2204 = vadd.f32 %v2203, %v2181
      %v2205 = vadd.f32 %v2204, %v2182
      %v2206 = vadd.f32 %v2205, %v2183
      %v2207 = vadd.f32 %v2206, %v2184
      %v2208 = vadd.f32 %v2207, %v2185
      %2209 = vadd.xlane.f32.xlu0 %v2208
      %v2210 = vpop.xlane.xlu0 %2209
      %v2211 = vrot.slane %v2210, 4
      %v2212 = vadd.f32 %v2210, %v2211
      %v2213 = vrot.slane %v2212, 2
      %v2214 = vadd.f32 %v2212, %v2213
      %v2215 = vrot.slane %v2214, 1
      %v2216 = vadd.f32 %v2214, %v2215
      %s2217 = vtos %v2216
      %v2218 = vrcp.pop 8192.0
      %v2219 = vmul.f32 8192.0, %v2218
      %v2220 = vsub.f32 1.0, %v2219
      %v2221 = vmul.f32 %v2218, %v2220
      %v2222 = vadd.f32 %v2218, %v2221
      %vm2223 = vweird.f32 %v2218
      %v2224 = vsel %vm2223, %v2218, %v2222
      %s2225 = vtos %v2224
      %s2226 = smul.f32 %s2201, %s2225
      %v2227 = vrcp.pop 8192.0
      %v2228 = vmul.f32 8192.0, %v2227
      %v2229 = vsub.f32 1.0, %v2228
      %v2230 = vmul.f32 %v2227, %v2229
      %v2231 = vadd.f32 %v2227, %v2230
      %vm2232 = vweird.f32 %v2227
      %v2233 = vsel %vm2232, %v2227, %v2231
      %s2234 = vtos %v2233
      %s2235 = smul.f32 %s2217, %s2234
      %s2236 = smul.f32 %s2226, %s2226
      %s2237 = ssub.f32 %s2235, %s2236
      %s2238 = smax.f32 %s2237, 0.0
      %s2239 = sadd.f32 %s2238, 1e-05
      %v2240 = vstv %s2239
      %v2241 = vrsqrt.pop %v2240
      %v2242 = vmul.f32 %v2241, %v2240
      %v2243 = vmul.f32 %v2242, %v2241
      %v2244 = vmul.f32 0.5, %v2243
      %v2245 = vsub.f32 1.5, %v2244
      %v2246 = vmul.f32 %v2241, %v2245
      %vm2247 = vweird.f32 %v2240
      %vm2248 = vweird.f32 %v2241
      %vm2249 = vmor %vm2247, %vm2248
      %v2250 = vsel %vm2249, %v2241, %v2246
      %s2251 = vtos %v2250
      %v2252 = vstv %s2226
      %v2253 = vsub.f32 %v2168, %v2252
      %v2254 = vsub.f32 %v2169, %v2252
      %v2255 = vsub.f32 %v2170, %v2252
      %v2256 = vsub.f32 %v2171, %v2252
      %v2257 = vsub.f32 %v2172, %v2252
      %v2258 = vsub.f32 %v2173, %v2252
      %v2259 = vsub.f32 %v2174, %v2252
      %v2260 = vsub.f32 %v2175, %v2252
      %v2261 = vstv %s2251
      %v2262 = vmul.f32 %v2253, %v2261
      %v2263 = vmul.f32 %v2254, %v2261
      %v2264 = vmul.f32 %v2255, %v2261
      %v2265 = vmul.f32 %v2256, %v2261
      %v2266 = vmul.f32 %v2257, %v2261
      %v2267 = vmul.f32 %v2258, %v2261
      %v2268 = vmul.f32 %v2259, %v2261
      %v2269 = vmul.f32 %v2260, %v2261
      %v2271 = vperm.slane %v2176, 0
      %v2273 = vmul.f32 %v2262, %v2271
      %v2274 = vmul.f32 %v2263, %v2271
      %v2275 = vmul.f32 %v2264, %v2271
      %v2276 = vmul.f32 %v2265, %v2271
      %v2277 = vmul.f32 %v2266, %v2271
      %v2278 = vmul.f32 %v2267, %v2271
      %v2279 = vmul.f32 %v2268, %v2271
      %v2280 = vmul.f32 %v2269, %v2271
      %v2282 = vperm.slane %v2177, 0
      %v2284 = vadd.f32 %v2273, %v2282
      %v2285 = vadd.f32 %v2274, %v2282
      %v2286 = vadd.f32 %v2275, %v2282
      %v2287 = vadd.f32 %v2276, %v2282
      %v2288 = vadd.f32 %v2277, %v2282
      %v2289 = vadd.f32 %v2278, %v2282
      %v2290 = vadd.f32 %v2279, %v2282
      %v2291 = vadd.f32 %v2280, %v2282
      %v2292 = vmax.f32 %v2284, 0.0
      %v2293 = vmax.f32 %v2285, 0.0
      %v2294 = vmax.f32 %v2286, 0.0
      %v2295 = vmax.f32 %v2287, 0.0
      %v2296 = vmax.f32 %v2288, 0.0
      %v2297 = vmax.f32 %v2289, 0.0
      %v2298 = vmax.f32 %v2290, 0.0
      %v2299 = vmax.f32 %v2291, 0.0
      %v2300 = vadd.f32 %v2292, %v2293
      %v2301 = vadd.f32 %v2300, %v2294
      %v2302 = vadd.f32 %v2301, %v2295
      %v2303 = vadd.f32 %v2302, %v2296
      %v2304 = vadd.f32 %v2303, %v2297
      %v2305 = vadd.f32 %v2304, %v2298
      %v2306 = vadd.f32 %v2305, %v2299
      %v2307 = vrot.slane %v2306, 4
      %v2308 = vadd.f32 %v2306, %v2307
      %v2309 = vrot.slane %v2308, 2
      %v2310 = vadd.f32 %v2308, %v2309
      %v2311 = vrot.slane %v2310, 1
      %v2312 = vadd.f32 %v2310, %v2311
      %v2313 = vld [vmem:[%s7] sm:$0xff]
      %v2314 = vld [vmem:[%s7 + $0x8] sm:$0xff]
      %v2315 = vld [vmem:[%s7 + $0x10] sm:$0xff]
      %v2316 = vld [vmem:[%s7 + $0x18] sm:$0xff]
      %v2317 = vld [vmem:[%s7 + $0x20] sm:$0xff]
      %v2318 = vld [vmem:[%s7 + $0x28] sm:$0xff]
      %v2319 = vld [vmem:[%s7 + $0x30] sm:$0xff]
      %v2320 = vld [vmem:[%s7 + $0x38] sm:$0xff]
      %v2321 = vld [vmem:[%s7 + $0x40] sm:$0xff]
      %v2322 = vld [vmem:[%s7 + $0x48] sm:$0xff]
      %v2323 = vld [vmem:[%s7 + $0x50] sm:$0xff]
      %v2324 = vld [vmem:[%s7 + $0x58] sm:$0xff]
      %v2325 = vld [vmem:[%s7 + $0x60] sm:$0xff]
      %v2326 = vld [vmem:[%s7 + $0x68] sm:$0xff]
      %v2327 = vld [vmem:[%s7 + $0x70] sm:$0xff]
      %v2328 = vld [vmem:[%s7 + $0x78] sm:$0xff]
      %2329 = vmatpush.msra.mxu0 %v2328
      %2330 = vmatpush.msra.mxu0 %v2327
      %2331 = vmatpush.msra.mxu0 %v2326
      %2332 = vmatpush.msra.mxu0 %v2325
      %2333 = vmatpush.msra.mxu0 %v2324
      %2334 = vmatpush.msra.mxu0 %v2323
      %2335 = vmatpush.msra.mxu0 %v2322
      %2336 = vmatpush.msra.mxu0 %v2321
      %2337 = vmatpush.msra.mxu0 %v2320
      %2338 = vmatpush.msra.mxu0 %v2319
      %2339 = vmatpush.msra.mxu0 %v2318
      %2340 = vmatpush.msra.mxu0 %v2317
      %2341 = vmatpush.msra.mxu0 %v2316
      %2342 = vmatpush.msra.mxu0 %v2315
      %2343 = vmatpush.msra.mxu0 %v2314
      %2344 = vmatpush.msra.mxu0 %v2313
      %2345 = vmatmul.f32.gmra.mxu0 %v2312
      %v2346 = vpop.f32.mrf.mxu0
      %v2347 = vadd.f32 0.0, %v2346
      %2348 = vdwg.mxu0
      %v2349 = vmul.f32 %v2347, 0.001953125
      %v2350 = vld [vmem:[%s9] sm:$0xff]
      %v2351 = vld [vmem:[%s9 + $0x8] sm:$0xff]
      %v2352 = vld [vmem:[%s10] sm:$0x1]
      %vm2353 = vcmask 130048
      %v2355 = vsel %vm2353, %v2349, 0
      %2357 = vmatpush.msra.mxu0 0.0
      %2358 = vmatpush.msra.mxu0 0.0
      %2359 = vmatpush.msra.mxu0 0.0
      %2360 = vmatpush.msra.mxu0 0.0
      %2361 = vmatpush.msra.mxu0 0.0
      %2362 = vmatpush.msra.mxu0 0.0
      %2363 = vmatpush.msra.mxu0 0.0
      %2364 = vmatpush.msra.mxu0 0.0
      %2365 = vmatpush.msra.mxu0 0.0
      %2366 = vmatpush.msra.mxu0 0.0
      %2367 = vmatpush.msra.mxu0 0.0
      %2368 = vmatpush.msra.mxu0 0.0
      %2369 = vmatpush.msra.mxu0 0.0
      %2370 = vmatpush.msra.mxu0 0.0
      %2371 = vmatpush.msra.mxu0 %v2351
      %2372 = vmatpush.msra.mxu0 %v2350
      %2373 = vmatmul.f32.gmra.mxu0 %v2355
      %v2374 = vpop.f32.mrf.mxu0
      %v2375 = vadd.f32 %v2352, %v2374
      %2376 = vdwg.mxu0
      %v2377 = vmax.f32 %v2375, 0.0
      %v2378 = vld [vmem:[%s11] sm:$0xf]
      %v2379 = vld [vmem:[%s12] sm:$0x1]
      %vm2380 = vcmask 31744
      %v2382 = vsel %vm2380, %v2377, 0
      %vm2384 = vcmask 1043456
      %v2386 = vsel %vm2384, %v2378, 0
      %2388 = vmatpush.msra.mxu0 0.0
      %2389 = vmatpush.msra.mxu0 0.0
      %2390 = vmatpush.msra.mxu0 0.0
      %2391 = vmatpush.msra.mxu0 0.0
      %2392 = vmatpush.msra.mxu0 0.0
      %2393 = vmatpush.msra.mxu0 0.0
      %2394 = vmatpush.msra.mxu0 0.0
      %2395 = vmatpush.msra.mxu0 0.0
      %2396 = vmatpush.msra.mxu0 0.0
      %2397 = vmatpush.msra.mxu0 0.0
      %2398 = vmatpush.msra.mxu0 0.0
      %2399 = vmatpush.msra.mxu0 0.0
      %2400 = vmatpush.msra.mxu0 0.0
      %2401 = vmatpush.msra.mxu0 0.0
      %2402 = vmatpush.msra.mxu0 0.0
      %2403 = vmatpush.msra.mxu0 %v2386
      %2404 = vmatmul.f32.gmra.mxu0 %v2382
      %v2405 = vpop.f32.mrf.mxu0
      %v2406 = vadd.f32 %v2379, %v2405
      %2407 = vdwg.mxu0
      %v2408 = vsub.f32 0.0, %v2406
      %v2409 = vmul.f32 %v2408, 1.442695
      %v2410 = vpow.pop %v2409
      %v2411 = vadd.f32 %v2410, 1.0
      %v2412 = vrcp.pop %v2411
      %v2413 = vld [vmem:[%s8] sm:$0xff]
      %v2414 = vld [vmem:[%s8 + $0x8] sm:$0xff]
      %v2416 = vsel %vm2353, %v2412, 0
      %2418 = vmatpush.msra.mxu0 0.0
      %2419 = vmatpush.msra.mxu0 0.0
      %2420 = vmatpush.msra.mxu0 0.0
      %2421 = vmatpush.msra.mxu0 0.0
      %2422 = vmatpush.msra.mxu0 0.0
      %2423 = vmatpush.msra.mxu0 0.0
      %2424 = vmatpush.msra.mxu0 0.0
      %2425 = vmatpush.msra.mxu0 0.0
      %2426 = vmatpush.msra.mxu0 0.0
      %2427 = vmatpush.msra.mxu0 0.0
      %2428 = vmatpush.msra.mxu0 0.0
      %2429 = vmatpush.msra.mxu0 0.0
      %2430 = vmatpush.msra.mxu0 0.0
      %2431 = vmatpush.msra.mxu0 0.0
      %2432 = vmatpush.msra.mxu0 %v2414
      %2433 = vmatpush.msra.mxu0 %v2413
      %2434 = vmatmul.f32.gmra.mxu0 %v2416
      %v2435 = vpop.f32.mrf.mxu0
      %v2436 = vadd.f32 0.0, %v2435
      %2437 = vdwg.mxu0
      %v2438 = vperm.slane %v2436, 0
      %v2439 = vmul.f32 %v2292, %v2438
      %v2440 = vmul.f32 %v2293, %v2438
      %v2441 = vmul.f32 %v2294, %v2438
      %v2442 = vmul.f32 %v2295, %v2438
      %v2443 = vmul.f32 %v2296, %v2438
      %v2444 = vmul.f32 %v2297, %v2438
      %v2445 = vmul.f32 %v2298, %v2438
      %v2446 = vmul.f32 %v2299, %v2438
      %v2447 = vld [vmem:[%s13] sm:$0xff]
      %v2448 = vld [vmem:[%s13 + $0x8] sm:$0xff]
      %v2449 = vld [vmem:[%s13 + $0x10] sm:$0xff]
      %v2450 = vld [vmem:[%s13 + $0x18] sm:$0xff]
      %v2451 = vld [vmem:[%s13 + $0x20] sm:$0xff]
      %v2452 = vld [vmem:[%s13 + $0x28] sm:$0xff]
      %v2453 = vld [vmem:[%s13 + $0x30] sm:$0xff]
      %v2454 = vld [vmem:[%s13 + $0x38] sm:$0xff]
      %v2455 = vld [vmem:[%s13 + $0x40] sm:$0xff]
      %v2456 = vld [vmem:[%s13 + $0x48] sm:$0xff]
      %v2457 = vld [vmem:[%s13 + $0x50] sm:$0xff]
      %v2458 = vld [vmem:[%s13 + $0x58] sm:$0xff]
      %v2459 = vld [vmem:[%s13 + $0x60] sm:$0xff]
      %v2460 = vld [vmem:[%s13 + $0x68] sm:$0xff]
      %v2461 = vld [vmem:[%s13 + $0x70] sm:$0xff]
      %v2462 = vld [vmem:[%s13 + $0x78] sm:$0xff]
      %2463 = vmatpush.msra.mxu0 %v2462
      %2464 = vmatpush.msra.mxu0 %v2461
      %2465 = vmatpush.msra.mxu0 %v2460
      %2466 = vmatpush.msra.mxu0 %v2459
      %2467 = vmatpush.msra.mxu0 %v2458
      %2468 = vmatpush.msra.mxu0 %v2457
      %2469 = vmatpush.msra.mxu0 %v2456
      %2470 = vmatpush.msra.mxu0 %v2455
      %2471 = vmatpush.msra.mxu0 %v2454
      %2472 = vmatpush.msra.mxu0 %v2453
      %2473 = vmatpush.msra.mxu0 %v2452
      %2474 = vmatpush.msra.mxu0 %v2451
      %2475 = vmatpush.msra.mxu0 %v2450
      %2476 = vmatpush.msra.mxu0 %v2449
      %2477 = vmatpush.msra.mxu0 %v2448
      %2478 = vmatpush.msra.mxu0 %v2447
      %2479 = vmatmul.f32.gmra.mxu0 %v2439
      %v2480 = vpop.f32.mrf.mxu0
      %v2481 = vadd.f32 0.0, %v2480
      %2482 = vmatmul.f32.gmra.mxu0 %v2440
      %v2483 = vpop.f32.mrf.mxu0
      %v2484 = vadd.f32 0.0, %v2483
      %2485 = vmatmul.f32.gmra.mxu0 %v2441
      %v2486 = vpop.f32.mrf.mxu0
      %v2487 = vadd.f32 0.0, %v2486
      %2488 = vmatmul.f32.gmra.mxu0 %v2442
      %v2489 = vpop.f32.mrf.mxu0
      %v2490 = vadd.f32 0.0, %v2489
      %2491 = vmatmul.f32.gmra.mxu0 %v2443
      %v2492 = vpop.f32.mrf.mxu0
      %v2493 = vadd.f32 0.0, %v2492
      %2494 = vmatmul.f32.gmra.mxu0 %v2444
      %v2495 = vpop.f32.mrf.mxu0
      %v2496 = vadd.f32 0.0, %v2495
      %2497 = vmatmul.f32.gmra.mxu0 %v2445
      %v2498 = vpop.f32.mrf.mxu0
      %v2499 = vadd.f32 0.0, %v2498
      %2500 = vmatmul.f32.gmra.mxu0 %v2446
      %v2501 = vpop.f32.mrf.mxu0
      %v2502 = vadd.f32 0.0, %v2501
      %2503 = vdwg.mxu0
      %v2504 = vld [vmem:[%s14] sm:$0x1]
      %v2505 = vld [vmem:[%s15] sm:$0x1]
      %v2506 = vmul.f32 %v2481, %v2481
      %v2507 = vmul.f32 %v2484, %v2484
      %v2508 = vmul.f32 %v2487, %v2487
      %v2509 = vmul.f32 %v2490, %v2490
      %v2510 = vmul.f32 %v2493, %v2493
      %v2511 = vmul.f32 %v2496, %v2496
      %v2512 = vmul.f32 %v2499, %v2499
      %v2513 = vmul.f32 %v2502, %v2502
      %v2514 = vadd.f32 %v2481, %v2484
      %v2515 = vadd.f32 %v2514, %v2487
      %v2516 = vadd.f32 %v2515, %v2490
      %v2517 = vadd.f32 %v2516, %v2493
      %v2518 = vadd.f32 %v2517, %v2496
      %v2519 = vadd.f32 %v2518, %v2499
      %v2520 = vadd.f32 %v2519, %v2502
      %2521 = vadd.xlane.f32.xlu0 %v2520
      %v2522 = vpop.xlane.xlu0 %2521
      %v2523 = vrot.slane %v2522, 4
      %v2524 = vadd.f32 %v2522, %v2523
      %v2525 = vrot.slane %v2524, 2
      %v2526 = vadd.f32 %v2524, %v2525
      %v2527 = vrot.slane %v2526, 1
      %v2528 = vadd.f32 %v2526, %v2527
      %s2529 = vtos %v2528
      %v2530 = vadd.f32 %v2506, %v2507
      %v2531 = vadd.f32 %v2530, %v2508
      %v2532 = vadd.f32 %v2531, %v2509
      %v2533 = vadd.f32 %v2532, %v2510
      %v2534 = vadd.f32 %v2533, %v2511
      %v2535 = vadd.f32 %v2534, %v2512
      %v2536 = vadd.f32 %v2535, %v2513
      %2537 = vadd.xlane.f32.xlu0 %v2536
      %v2538 = vpop.xlane.xlu0 %2537
      %v2539 = vrot.slane %v2538, 4
      %v2540 = vadd.f32 %v2538, %v2539
      %v2541 = vrot.slane %v2540, 2
      %v2542 = vadd.f32 %v2540, %v2541
      %v2543 = vrot.slane %v2542, 1
      %v2544 = vadd.f32 %v2542, %v2543
      %s2545 = vtos %v2544
      %v2546 = vsel %vm658, %v2481, 0.0
      %v2547 = vsel %vm658, %v2484, 0.0
      %v2548 = vsel %vm658, %v2487, 0.0
      %v2549 = vsel %vm658, %v2490, 0.0
      %v2550 = vsel %vm658, %v2493, 0.0
      %v2551 = vsel %vm658, %v2496, 0.0
      %v2552 = vsel %vm658, %v2499, 0.0
      %v2553 = vsel %vm658, %v2502, 0.0
      %v2554 = vadd.f32 %v2546, %v2547
      %v2555 = vadd.f32 %v2554, %v2548
      %v2556 = vadd.f32 %v2555, %v2549
      %v2557 = vadd.f32 %v2556, %v2550
      %v2558 = vadd.f32 %v2557, %v2551
      %v2559 = vadd.f32 %v2558, %v2552
      %v2560 = vadd.f32 %v2559, %v2553
      %2561 = vadd.xlane.f32.xlu0 %v2560
      %v2562 = vpop.xlane.xlu0 %2561
      %v2563 = vrot.slane %v2562, 4
      %v2564 = vadd.f32 %v2562, %v2563
      %v2565 = vrot.slane %v2564, 2
      %v2566 = vadd.f32 %v2564, %v2565
      %v2567 = vrot.slane %v2566, 1
      %v2568 = vadd.f32 %v2566, %v2567
      %s2569 = vtos %v2568
      %v2570 = vsel %vm658, %v2506, 0.0
      %v2571 = vsel %vm658, %v2507, 0.0
      %v2572 = vsel %vm658, %v2508, 0.0
      %v2573 = vsel %vm658, %v2509, 0.0
      %v2574 = vsel %vm658, %v2510, 0.0
      %v2575 = vsel %vm658, %v2511, 0.0
      %v2576 = vsel %vm658, %v2512, 0.0
      %v2577 = vsel %vm658, %v2513, 0.0
      %v2578 = vadd.f32 %v2570, %v2571
      %v2579 = vadd.f32 %v2578, %v2572
      %v2580 = vadd.f32 %v2579, %v2573
      %v2581 = vadd.f32 %v2580, %v2574
      %v2582 = vadd.f32 %v2581, %v2575
      %v2583 = vadd.f32 %v2582, %v2576
      %v2584 = vadd.f32 %v2583, %v2577
      %2585 = vadd.xlane.f32.xlu0 %v2584
      %v2586 = vpop.xlane.xlu0 %2585
      %v2587 = vrot.slane %v2586, 4
      %v2588 = vadd.f32 %v2586, %v2587
      %v2589 = vrot.slane %v2588, 2
      %v2590 = vadd.f32 %v2588, %v2589
      %v2591 = vrot.slane %v2590, 1
      %v2592 = vadd.f32 %v2590, %v2591
      %s2593 = vtos %v2592
      %v2594 = vrcp.pop 4096.0
      %v2595 = vmul.f32 4096.0, %v2594
      %v2596 = vsub.f32 1.0, %v2595
      %v2597 = vmul.f32 %v2594, %v2596
      %v2598 = vadd.f32 %v2594, %v2597
      %vm2599 = vweird.f32 %v2594
      %v2600 = vsel %vm2599, %v2594, %v2598
      %s2601 = vtos %v2600
      %s2602 = smul.f32 %s2569, %s2601
      %s2603 = ssub.f32 %s2529, %s2569
      %v2604 = vrcp.pop 4096.0
      %v2605 = vmul.f32 4096.0, %v2604
      %v2606 = vsub.f32 1.0, %v2605
      %v2607 = vmul.f32 %v2604, %v2606
      %v2608 = vadd.f32 %v2604, %v2607
      %vm2609 = vweird.f32 %v2604
      %v2610 = vsel %vm2609, %v2604, %v2608
      %s2611 = vtos %v2610
      %s2612 = smul.f32 %s2603, %s2611
      %v2613 = vrcp.pop 4096.0
      %v2614 = vmul.f32 4096.0, %v2613
      %v2615 = vsub.f32 1.0, %v2614
      %v2616 = vmul.f32 %v2613, %v2615
      %v2617 = vadd.f32 %v2613, %v2616
      %vm2618 = vweird.f32 %v2613
      %v2619 = vsel %vm2618, %v2613, %v2617
      %s2620 = vtos %v2619
      %s2621 = smul.f32 %s2593, %s2620
      %s2622 = smul.f32 %s2602, %s2602
      %s2623 = ssub.f32 %s2621, %s2622
      %s2624 = smax.f32 %s2623, 0.0
      %s2625 = ssub.f32 %s2545, %s2593
      %v2626 = vrcp.pop 4096.0
      %v2627 = vmul.f32 4096.0, %v2626
      %v2628 = vsub.f32 1.0, %v2627
      %v2629 = vmul.f32 %v2626, %v2628
      %v2630 = vadd.f32 %v2626, %v2629
      %vm2631 = vweird.f32 %v2626
      %v2632 = vsel %vm2631, %v2626, %v2630
      %s2633 = vtos %v2632
      %s2634 = smul.f32 %s2625, %s2633
      %s2635 = smul.f32 %s2612, %s2612
      %s2636 = ssub.f32 %s2634, %s2635
      %s2637 = smax.f32 %s2636, 0.0
      %v2638 = vstv %s2602
      %v2639 = vstv %s2612
      %v2640 = vsel %vm536, %v2638, %v2639
      %s2641 = sadd.f32 %s2624, 1e-05
      %v2642 = vstv %s2641
      %v2643 = vrsqrt.pop %v2642
      %v2644 = vmul.f32 %v2643, %v2642
      %v2645 = vmul.f32 %v2644, %v2643
      %v2646 = vmul.f32 0.5, %v2645
      %v2647 = vsub.f32 1.5, %v2646
      %v2648 = vmul.f32 %v2643, %v2647
      %vm2649 = vweird.f32 %v2642
      %vm2650 = vweird.f32 %v2643
      %vm2651 = vmor %vm2649, %vm2650
      %v2652 = vsel %vm2651, %v2643, %v2648
      %s2653 = vtos %v2652
      %s2654 = sadd.f32 %s2637, 1e-05
      %v2655 = vstv %s2654
      %v2656 = vrsqrt.pop %v2655
      %v2657 = vmul.f32 %v2656, %v2655
      %v2658 = vmul.f32 %v2657, %v2656
      %v2659 = vmul.f32 0.5, %v2658
      %v2660 = vsub.f32 1.5, %v2659
      %v2661 = vmul.f32 %v2656, %v2660
      %vm2662 = vweird.f32 %v2655
      %vm2663 = vweird.f32 %v2656
      %vm2664 = vmor %vm2662, %vm2663
      %v2665 = vsel %vm2664, %v2656, %v2661
      %s2666 = vtos %v2665
      %v2667 = vstv %s2653
      %v2668 = vstv %s2666
      %v2669 = vsel %vm536, %v2667, %v2668
      %v2670 = vsub.f32 %v2481, %v2640
      %v2671 = vsub.f32 %v2484, %v2640
      %v2672 = vsub.f32 %v2487, %v2640
      %v2673 = vsub.f32 %v2490, %v2640
      %v2674 = vsub.f32 %v2493, %v2640
      %v2675 = vsub.f32 %v2496, %v2640
      %v2676 = vsub.f32 %v2499, %v2640
      %v2677 = vsub.f32 %v2502, %v2640
      %v2678 = vmul.f32 %v2670, %v2669
      %v2679 = vmul.f32 %v2671, %v2669
      %v2680 = vmul.f32 %v2672, %v2669
      %v2681 = vmul.f32 %v2673, %v2669
      %v2682 = vmul.f32 %v2674, %v2669
      %v2683 = vmul.f32 %v2675, %v2669
      %v2684 = vmul.f32 %v2676, %v2669
      %v2685 = vmul.f32 %v2677, %v2669
      %v2687 = vperm.slane %v2504, 0
      %v2689 = vmul.f32 %v2678, %v2687
      %v2690 = vmul.f32 %v2679, %v2687
      %v2691 = vmul.f32 %v2680, %v2687
      %v2692 = vmul.f32 %v2681, %v2687
      %v2693 = vmul.f32 %v2682, %v2687
      %v2694 = vmul.f32 %v2683, %v2687
      %v2695 = vmul.f32 %v2684, %v2687
      %v2696 = vmul.f32 %v2685, %v2687
      %v2698 = vperm.slane %v2505, 0
      %v2700 = vadd.f32 %v2689, %v2698
      %v2701 = vadd.f32 %v2690, %v2698
      %v2702 = vadd.f32 %v2691, %v2698
      %v2703 = vadd.f32 %v2692, %v2698
      %v2704 = vadd.f32 %v2693, %v2698
      %v2705 = vadd.f32 %v2694, %v2698
      %v2706 = vadd.f32 %v2695, %v2698
      %v2707 = vadd.f32 %v2696, %v2698
      %2708 = vst [vmem:[%s521] sm:$0xff] %v2700
      %2709 = vst [vmem:[%s521 + $0x8] sm:$0xff] %v2701
      %2710 = vst [vmem:[%s521 + $0x10] sm:$0xff] %v2702
      %2711 = vst [vmem:[%s521 + $0x18] sm:$0xff] %v2703
      %2712 = vst [vmem:[%s521 + $0x20] sm:$0xff] %v2704
      %2713 = vst [vmem:[%s521 + $0x28] sm:$0xff] %v2705
      %2714 = vst [vmem:[%s521 + $0x30] sm:$0xff] %v2706
      %2715 = vst [vmem:[%s521 + $0x38] sm:$0xff] %v2707
      %p2716 = scmp.lt.s32.totalorder %s27, 1
      %s2717 = scalar_select %p2716, %s27, 1
      %s2718 = smul.addr %s2717, 8
      %s2719 = smul.addr %s2718, 8
      %s2720 = scalar_lea.vmem %s16, %s2719
      // Predicated region
      $region85: #{amb_conv_forward.1} parent=83 // pred_check
        %p2721 = pneg %p386
      $region86: #{amb_conv_forward.1} parent=83 // pred_check_branch
        %2723 = sbr.rel (%p2721) target = $region88
      $region87: #{amb_conv_forward.1} parent=83 // pred_region
        _
      $region88: #{amb_conv_forward.1} parent=83 // pred_fallthru
        _
    $region84: #{amb_conv_forward.1} parent=5 // pred_fallthru
      _
    %p2724 = scmp.le.s32.totalorder 2, %s22
    // Predicated region
    $region89: #{amb_conv_forward.1} parent=5 // pred_check
      %p2725 = pneg %p2724
    $region90: #{amb_conv_forward.1} parent=5 // pred_check_branch
      %2727 = sbr.rel (%p2725) target = $region92
    $region91: #{amb_conv_forward.1} parent=5 // pred_region
      %s2728 = ssub.s32 %s22, 2
      // Predicated region
      $region93: #{amb_conv_forward.1} parent=91 // pred_check
        %p2729 = pneg %p392
      $region94: #{amb_conv_forward.1} parent=91 // pred_check_branch
        %2731 = sbr.rel (%p2729) target = $region96
      $region95: #{amb_conv_forward.1} parent=91 // pred_region
        %p2732 = scmp.lt.s32.totalorder %s28, 1
        %s2733 = scalar_select %p2732, %s28, 1
        %s2734 = smul.addr %s2733, 8
        %s2735 = smul.addr %s2734, 8
        %s2736 = scalar_lea.vmem %s16, %s2735
      $region96: #{amb_conv_forward.1} parent=91 // pred_fallthru
        _
    $region92: #{amb_conv_forward.1} parent=5 // pred_fallthru
      _
  $region6: #{amb_conv_forward.1} parent=0 // loop_footer
    %s26 = sadd.s32 1, %s22
  $region7: #{amb_conv_forward.1} parent=0 // loop_footer_branch
    %21 = sbr.rel target = $region3
  $region8: #{amb_conv_forward.1} parent=0 // loop_exit
    _

</llo_original>
